<compile_context>
chip_gen: v7x
topology: tpu7x:2x2x1
jax: 0.10.0
libtpu: 0.0.40
codegen_flags: <defaults>
</compile_context>

<pallas_src>
import functools
import math

import numpy as np
import jax
import jax.numpy as jnp
from jax.experimental import pallas as pl
from jax.experimental.pallas import tpu as pltpu

_EPS = 1e-5
_PPARAMS = pltpu.CompilerParams(dimension_semantics=("parallel",))


# ----------------------------- in-kernel helpers -----------------------------

def _layer_norm(x, g, b, eps=_EPS):
    mean = jnp.mean(x, axis=-1, keepdims=True)
    var = jnp.mean(jnp.square(x - mean), axis=-1, keepdims=True)
    return (x - mean) * jax.lax.rsqrt(var + eps) * g + b


def _shift_mats(n):
    """down @ x == x shifted down one row (row 0 zero); up @ x == x shifted up one
    row (last row zero).  Built from 2-D iota, applied on the MXU -> in-kernel
    'same' padding for the k=3 convolutions with no relayout."""
    r = jax.lax.broadcasted_iota(jnp.int32, (n, n), 0)
    c = jax.lax.broadcasted_iota(jnp.int32, (n, n), 1)
    down = (c == r - 1).astype(jnp.float32)
    up = (c == r + 1).astype(jnp.float32)
    return down, up


def _conv1d_k3(x, w_ref, b_ref, down, up):
    """Conv1d(kernel=3, padding='same') on channels-last x: (S, Cin).
    w_ref: (3, Cin, Cout) tap-major; b_ref: (1, Cout)."""
    x_prev = jnp.dot(down, x, preferred_element_type=jnp.float32)
    x_next = jnp.dot(up, x, preferred_element_type=jnp.float32)
    y = jnp.dot(x_prev, w_ref[0].astype(jnp.float32), preferred_element_type=jnp.float32)
    y = y + jnp.dot(x, w_ref[1].astype(jnp.float32), preferred_element_type=jnp.float32)
    y = y + jnp.dot(x_next, w_ref[2].astype(jnp.float32), preferred_element_type=jnp.float32)
    return y + b_ref[...].astype(jnp.float32)


# ----------------------------- Pallas kernels -----------------------------

def _qkv_kernel(x_ref, g_ref, b_ref, w_ref, wb_ref, o_ref):
    """LayerNorm1 + fused Q/K/V Conv1d projections.  Output (S, 3H) channels-last."""
    x = x_ref[0].astype(jnp.float32)                       # (S, H)
    pre = _layer_norm(x, g_ref[...].astype(jnp.float32), b_ref[...].astype(jnp.float32))
    down, up = _shift_mats(x.shape[0])
    o_ref[0] = _conv1d_k3(pre, w_ref, wb_ref, down, up).astype(o_ref.dtype)


def _attn_kernel(q_ref, k_ref, v_ref, o_ref, *, n_heads, scale):
    """All heads of softmax(q k^T / attention_size) v for one batch element.
    Inputs are the reference's reinterpreted (S, nh*d) layouts; heads are static
    lane slices so no in-kernel reshape/transpose is needed."""
    q = q_ref[0].astype(jnp.float32)                       # (S, H)
    k = k_ref[0].astype(jnp.float32)
    v = v_ref[0].astype(jnp.float32)
    d = q.shape[1] // n_heads
    for h in range(n_heads):
        qh = q[:, h * d:(h + 1) * d]
        kh = k[:, h * d:(h + 1) * d]
        vh = v[:, h * d:(h + 1) * d]
        s = jax.lax.dot_general(qh, kh, (((1,), (1,)), ((), ())),
                                preferred_element_type=jnp.float32) * scale
        s = s - jnp.max(s, axis=-1, keepdims=True)
        e = jnp.exp(s)
        p = e * pl.reciprocal(jnp.sum(e, axis=-1, keepdims=True), approx=True)
        oh = jnp.dot(p, vh, preferred_element_type=jnp.float32)
        o_ref[0, :, h * d:(h + 1) * d] = oh.astype(o_ref.dtype)


def _ffn_kernel(a_ref, x_ref, fw_ref, fb_ref, g_ref, b_ref,
                c1w_ref, c1b_ref, c2w_ref, c2b_ref, o_ref):
    """attention fc-conv + residual + LayerNorm2 + conv1/ReLU/conv2 + residual."""
    a = a_ref[0].astype(jnp.float32)                       # merged attention heads (S, H)
    x = x_ref[0].astype(jnp.float32)                       # block input (S, H)
    down, up = _shift_mats(x.shape[0])
    x1 = x + _conv1d_k3(a, fw_ref, fb_ref, down, up)
    pre = _layer_norm(x1, g_ref[...].astype(jnp.float32), b_ref[...].astype(jnp.float32))
    t = jnp.maximum(_conv1d_k3(pre, c1w_ref, c1b_ref, down, up), 0.0)
    t = _conv1d_k3(t, c2w_ref, c2b_ref, down, up)
    o_ref[0] = (x1 + t).astype(o_ref.dtype)


def _duration_kernel(x_ref, c1w_ref, c1b_ref, g1_ref, b1_ref,
                     c2w_ref, c2b_ref, g2_ref, b2_ref, fw_ref, fb_ref, o_ref):
    """Fused DurationPredictor: conv -> LN -> ReLU -> conv -> LN -> ReLU -> Linear(H,1)."""
    x = x_ref[0].astype(jnp.float32)
    down, up = _shift_mats(x.shape[0])
    h = _conv1d_k3(x, c1w_ref, c1b_ref, down, up)
    h = jnp.maximum(_layer_norm(h, g1_ref[...].astype(jnp.float32),
                                b1_ref[...].astype(jnp.float32)), 0.0)
    h = _conv1d_k3(h, c2w_ref, c2b_ref, down, up)
    h = jnp.maximum(_layer_norm(h, g2_ref[...].astype(jnp.float32),
                                b2_ref[...].astype(jnp.float32)), 0.0)
    y = jnp.sum(h * fw_ref[...].astype(jnp.float32), axis=-1, keepdims=True)
    o_ref[0] = (y + fb_ref[...].astype(jnp.float32)).astype(o_ref.dtype)


def _linear_kernel(x_ref, w_ref, b_ref, o_ref):
    x = x_ref[0].astype(jnp.float32)
    y = jnp.dot(x, w_ref[...].astype(jnp.float32), preferred_element_type=jnp.float32)
    o_ref[0] = (y + b_ref[...].astype(jnp.float32)).astype(o_ref.dtype)


# ----------------------------- pallas_call wrappers -----------------------------

def _bspec_batch(tail):
    nd = len(tail)
    return pl.BlockSpec((1,) + tail, lambda i: (i,) + (0,) * nd)


def _bspec_full(shape):
    nd = len(shape)
    return pl.BlockSpec(shape, lambda i: (0,) * nd)


def qkv_proj(x, p):
    B, S, H = x.shape
    return pl.pallas_call(
        _qkv_kernel,
        grid=(B,),
        in_specs=[
            _bspec_batch((S, H)),
            _bspec_full((1, H)), _bspec_full((1, H)),
            _bspec_full((3, H, 3 * H)), _bspec_full((1, 3 * H)),
        ],
        out_specs=_bspec_batch((S, 3 * H)),
        out_shape=jax.ShapeDtypeStruct((B, S, 3 * H), x.dtype),
        compiler_params=_PPARAMS,
    )(x, p["n1_g"], p["n1_b"], p["wqkv_w"], p["wqkv_b"])


def attention_core(q, k, v, *, n_heads):
    B, S, H = q.shape
    scale = 1.0 / float(H // n_heads)          # reference divides by attention_size (= d)
    kern = functools.partial(_attn_kernel, n_heads=n_heads, scale=scale)
    return pl.pallas_call(
        kern,
        grid=(B,),
        in_specs=[_bspec_batch((S, H)), _bspec_batch((S, H)), _bspec_batch((S, H))],
        out_specs=_bspec_batch((S, H)),
        out_shape=jax.ShapeDtypeStruct((B, S, H), q.dtype),
        compiler_params=_PPARAMS,
    )(q, k, v)


def ffn_block(attn_merged, x, p):
    B, S, H = x.shape
    Fh = p["c1_w"].shape[2]
    return pl.pallas_call(
        _ffn_kernel,
        grid=(B,),
        in_specs=[
            _bspec_batch((S, H)), _bspec_batch((S, H)),
            _bspec_full((3, H, H)), _bspec_full((1, H)),
            _bspec_full((1, H)), _bspec_full((1, H)),
            _bspec_full((3, H, Fh)), _bspec_full((1, Fh)),
            _bspec_full((3, Fh, H)), _bspec_full((1, H)),
        ],
        out_specs=_bspec_batch((S, H)),
        out_shape=jax.ShapeDtypeStruct((B, S, H), x.dtype),
        compiler_params=_PPARAMS,
    )(attn_merged, x, p["fc_w"], p["fc_b"], p["n2_g"], p["n2_b"],
      p["c1_w"], p["c1_b"], p["c2_w"], p["c2_b"])


def duration_predictor(x, p):
    B, S, H = x.shape
    return pl.pallas_call(
        _duration_kernel,
        grid=(B,),
        in_specs=[
            _bspec_batch((S, H)),
            _bspec_full((3, H, H)), _bspec_full((1, H)),
            _bspec_full((1, H)), _bspec_full((1, H)),
            _bspec_full((3, H, H)), _bspec_full((1, H)),
            _bspec_full((1, H)), _bspec_full((1, H)),
            _bspec_full((1, H)), _bspec_full((1, 1)),
        ],
        out_specs=_bspec_batch((S, 1)),
        out_shape=jax.ShapeDtypeStruct((B, S, 1), x.dtype),
        compiler_params=_PPARAMS,
    )(x, p["c1_w"], p["c1_b"], p["ln1_g"], p["ln1_b"],
      p["c2_w"], p["c2_b"], p["ln2_g"], p["ln2_b"], p["fc_w"], p["fc_b"])


def final_linear(x, w, b):
    B, T, H = x.shape
    O = w.shape[1]
    return pl.pallas_call(
        _linear_kernel,
        grid=(B,),
        in_specs=[_bspec_batch((T, H)), _bspec_full((H, O)), _bspec_full((1, O))],
        out_specs=_bspec_batch((T, O)),
        out_shape=jax.ShapeDtypeStruct((B, T, O), x.dtype),
        compiler_params=_PPARAMS,
    )(x, w, b)


# ----------------------------- model (kernels + thin glue) -----------------------------

def fft_block(x, p, n_heads):
    """One FFTBlock.  x: (B, S, H) channels-last."""
    B, S, H = x.shape
    qkv = qkv_proj(x, p)                                               # (B, S, 3H)
    # Reference's .view(B, -1, nh, d) of the contiguous (B, H, S) conv outputs:
    # a row-major memory reinterpretation (mixes channel & time) -> reshape.
    r = jnp.reshape(jnp.transpose(qkv, (0, 2, 1)), (B, 3, S, H))
    attn = attention_core(r[:, 0], r[:, 1], r[:, 2], n_heads=n_heads)  # (B, S, H) == contiguous (B,S,nh,d)
    # .transpose(1,2).contiguous().view(B, nh*d, -1), then channels-last for the fc conv:
    merged_cl = jnp.transpose(jnp.reshape(attn, (B, H, S)), (0, 2, 1))
    return ffn_block(merged_cl, x, p)


@functools.partial(jax.jit, static_argnames=("n_heads",))
def _encoder_forward(params, tokens, *, n_heads):
    emb = params["emb"]
    H = emb.shape[1]
    B = tokens.shape[0]
    # PhonemeEmbedding + PositionalEncoding1.  NOTE: reproduces the reference's
    # pos_embedding[:batch] indexing (broadcast over the sequence axis).
    x = jnp.take(emb, tokens, axis=0) * math.sqrt(H)
    x = x + params["pe"][:B][:, None, :]
    for p in params["fft1"]:
        x = fft_block(x, p, n_heads)
    log_lengths = jnp.squeeze(duration_predictor(x, params["lr"]), -1) * 1.0  # alpha = 1.0
    return x, log_lengths


@functools.partial(jax.jit, static_argnames=("n_heads",))
def _decoder_forward(params, x, idx, mask, *, n_heads):
    B = x.shape[0]
    # On-device repeat/pad: gather precomputed source rows, zero the padding
    # (pad_sequence pads with zeros), then PositionalEncoding2 (same broadcast quirk).
    reg = jnp.take_along_axis(x, idx[:, :, None], axis=1) * mask
    y = reg + params["pe"][:B][:, None, :]
    for p in params["fft2"]:
        y = fft_block(y, p, n_heads)
    y = final_linear(y, params["fc_w"], params["fc_b"])
    return jnp.transpose(y, (0, 2, 1))


def _length_regulator_plan(aligned, src_len):
    # TODO(synk): the regulated length T is data-dependent (repeat_interleave +
    # pad_sequence); the repeat-index plan is computed on host from the host-side
    # true durations (tiny (B,S) int work, no device->host sync of activations).
    dur = np.rint(np.asarray(aligned)).astype(np.int64)
    B, S_d = dur.shape
    min_len = min(S_d, src_len)
    dur = np.clip(dur[:, :min_len], 0, None)
    T = max(int(dur.sum(axis=1).max()), 1)
    idx = np.zeros((B, T), dtype=np.int32)
    mask = np.zeros((B, T, 1), dtype=np.float32)
    for b in range(B):
        src = np.repeat(np.arange(min_len, dtype=np.int32), dur[b])
        idx[b, :src.shape[0]] = src
        mask[b, :src.shape[0], 0] = 1.0
    return jnp.asarray(idx), jnp.asarray(mask)


def fastspeech_forward(params, tokens, aligned, *, n_heads):
    B, S = tokens.shape
    x, log_lengths = _encoder_forward(params, tokens, n_heads=n_heads)
    idx, mask = _length_regulator_plan(aligned, S)
    mel = _decoder_forward(params, x, idx, mask, n_heads=n_heads)
    return mel, log_lengths                                 # (B, out_size, T), (B, S)


# ----------------------------- parameters -----------------------------

def positional_encoding_table(emb_size, maxlen=5000):
    den = np.exp(-np.arange(0, emb_size, 2, dtype=np.float64) * math.log(10000.0) / emb_size)
    pos = np.arange(0, maxlen, dtype=np.float64).reshape(maxlen, 1)
    pe = np.zeros((maxlen, emb_size), dtype=np.float32)
    pe[:, 0::2] = np.sin(pos * den)
    pe[:, 1::2] = np.cos(pos * den)
    return jnp.asarray(pe)


def init_params(key, *, out_size, vocab_size, hidden, fft_hidden, n_blocks=6):
    """Parameters in PyTorch layouts (Conv1d: (Cout, Cin, 3); Linear: (O, H))."""
    keys = iter(jax.random.split(key, 512))

    def nrm(shape, scale=0.05):
        return scale * jax.random.normal(next(keys), shape, dtype=jnp.float32)

    def conv_p(cout, cin):
        return nrm((cout, cin, 3)), nrm((cout,), 0.01)

    def fft_p():
        p = {
            "n1_g": jnp.ones((hidden,), jnp.float32),
            "n1_b": jnp.zeros((hidden,), jnp.float32),
            "n2_g": jnp.ones((hidden,), jnp.float32),
            "n2_b": jnp.zeros((hidden,), jnp.float32),
        }
        p["wq_w"], p["wq_b"] = conv_p(hidden, hidden)
        p["wk_w"], p["wk_b"] = conv_p(hidden, hidden)
        p["wv_w"], p["wv_b"] = conv_p(hidden, hidden)
        p["fc_w"], p["fc_b"] = conv_p(hidden, hidden)
        p["c1_w"], p["c1_b"] = conv_p(fft_hidden, hidden)
        p["c2_w"], p["c2_b"] = conv_p(hidden, fft_hidden)
        return p

    lr = {
        "ln1_g": jnp.ones((hidden,), jnp.float32),
        "ln1_b": jnp.zeros((hidden,), jnp.float32),
        "ln2_g": jnp.ones((hidden,), jnp.float32),
        "ln2_b": jnp.zeros((hidden,), jnp.float32),
    }
    lr["c1_w"], lr["c1_b"] = conv_p(hidden, hidden)
    lr["c2_w"], lr["c2_b"] = conv_p(hidden, hidden)
    lr["fc_w"], lr["fc_b"] = nrm((1, hidden), 0.1), nrm((1,), 0.01)

    return {
        "emb": nrm((vocab_size, hidden), 0.1),
        "pe": positional_encoding_table(hidden),
        "fft1": [fft_p() for _ in range(n_blocks)],
        "fft2": [fft_p() for _ in range(n_blocks)],
        "lr": lr,
        "fc_w": nrm((out_size, hidden), 0.1),
        "fc_b": nrm((out_size,), 0.01),
    }


def prepare_params(params):
    """One-time layout conversion to kernel-ready layouts (hoisted out of the
    steady-state forward pass): Conv1d (Cout,Cin,3) -> (3,Cin,Cout); Linear
    (O,H) -> (H,O); vectors -> (1,C) rows; Q/K/V conv weights fused."""
    def conv_w(w):
        return jnp.transpose(w, (2, 1, 0))

    def row(v):
        return jnp.reshape(v, (1, -1))

    def prep_fft(p):
        return {
            "n1_g": row(p["n1_g"]), "n1_b": row(p["n1_b"]),
            "n2_g": row(p["n2_g"]), "n2_b": row(p["n2_b"]),
            "wqkv_w": jnp.concatenate(
                [conv_w(p["wq_w"]), conv_w(p["wk_w"]), conv_w(p["wv_w"])], axis=-1),
            "wqkv_b": jnp.concatenate(
                [row(p["wq_b"]), row(p["wk_b"]), row(p["wv_b"])], axis=-1),
            "fc_w": conv_w(p["fc_w"]), "fc_b": row(p["fc_b"]),
            "c1_w": conv_w(p["c1_w"]), "c1_b": row(p["c1_b"]),
            "c2_w": conv_w(p["c2_w"]), "c2_b": row(p["c2_b"]),
        }

    lr = params["lr"]
    prepared = {
        "emb": params["emb"],
        "pe": params["pe"],
        "fft1": [prep_fft(p) for p in params["fft1"]],
        "fft2": [prep_fft(p) for p in params["fft2"]],
        "lr": {
            "c1_w": conv_w(lr["c1_w"]), "c1_b": row(lr["c1_b"]),
            "ln1_g": row(lr["ln1_g"]), "ln1_b": row(lr["ln1_b"]),
            "c2_w": conv_w(lr["c2_w"]), "c2_b": row(lr["c2_b"]),
            "ln2_g": row(lr["ln2_g"]), "ln2_b": row(lr["ln2_b"]),
            "fc_w": jnp.reshape(lr["fc_w"], (1, -1)),
            "fc_b": jnp.reshape(lr["fc_b"], (1, 1)),
        },
        "fc_w": jnp.transpose(params["fc_w"]),
        "fc_b": row(params["fc_b"]),
    }
    return jax.device_put(prepared)


# ----------------------------- main -----------------------------

if __name__ == "__main__":
    B, S = 2, 8
    hidden = 32
    n_heads = 4
    out_size = 10
    vocab_size = 40
    fft_hidden = 64   # conv_hidden_size of the FFT blocks (small synthetic config)

    key = jax.random.PRNGKey(0)
    k_tok, k_dur, k_par = jax.random.split(key, 3)
    tokens = jax.random.randint(k_tok, (B, S), 0, vocab_size, dtype=jnp.int32)
    # True phoneme durations kept as a host array (the regulator plan needs them on host).
    aligned = np.asarray(jax.random.randint(k_dur, (B, S), 1, 4), dtype=np.float32)

    params = prepare_params(init_params(
        k_par, out_size=out_size, vocab_size=vocab_size,
        hidden=hidden, fft_hidden=fft_hidden, n_blocks=6))

    mel, log_lengths = fastspeech_forward(params, tokens, aligned, n_heads=n_heads)
    jax.block_until_ready(mel)
    jax.block_until_ready(log_lengths)

    assert mel.shape[0] == B and mel.shape[1] == out_size
    assert log_lengths.shape == (B, S)
    print("KERNEL_OK")
</pallas_src>

<mosaic_0001>
module attributes {stable_mosaic.version = 11 : i64} {
  func.func @_qkv_kernel(%arg0: i32, %arg1: memref<1x8x32xf32, #tpu.memory_space<vmem>>, %arg2: memref<1x32xf32, #tpu.memory_space<vmem>>, %arg3: memref<1x32xf32, #tpu.memory_space<vmem>>, %arg4: memref<3x32x96xf32, #tpu.memory_space<vmem>>, %arg5: memref<1x96xf32, #tpu.memory_space<vmem>>, %arg6: memref<1x8x96xf32, #tpu.memory_space<vmem>>) attributes {dimension_semantics = [#tpu.dimension_semantics<parallel>], iteration_bounds = array<i64: 2>, scalar_prefetch = 0 : i64, scratch_operands = 0 : i64, tpu.core_type = #tpu.core_type<tc>, window_params = [{transform_indices = @transform_0, window_bounds = array<i64: 1, 8, 32>}, {pipeline_mode = #tpu.pipeline_mode<synchronous>, transform_indices = @transform_1, window_bounds = array<i64: 1, 32>}, {pipeline_mode = #tpu.pipeline_mode<synchronous>, transform_indices = @transform_2, window_bounds = array<i64: 1, 32>}, {pipeline_mode = #tpu.pipeline_mode<synchronous>, transform_indices = @transform_3, window_bounds = array<i64: 3, 32, 96>}, {pipeline_mode = #tpu.pipeline_mode<synchronous>, transform_indices = @transform_4, window_bounds = array<i64: 1, 96>}, {transform_indices = @transform_5, window_bounds = array<i64: 1, 8, 96>}]} {
    %c0 = arith.constant 0 : index
    %c0_0 = arith.constant 0 : index
    %c0_1 = arith.constant 0 : index
    %0 = vector.load %arg1[%c0, %c0_0, %c0_1] : memref<1x8x32xf32, #tpu.memory_space<vmem>>, vector<1x8x32xf32>
    %1 = vector.shape_cast %0 : vector<1x8x32xf32> to vector<8x32xf32>
    %c0_2 = arith.constant 0 : index
    %c0_3 = arith.constant 0 : index
    %2 = vector.load %arg2[%c0_2, %c0_3] : memref<1x32xf32, #tpu.memory_space<vmem>>, vector<1x32xf32>
    %c0_4 = arith.constant 0 : index
    %c0_5 = arith.constant 0 : index
    %3 = vector.load %arg3[%c0_4, %c0_5] : memref<1x32xf32, #tpu.memory_space<vmem>>, vector<1x32xf32>
    %cst = arith.constant dense<0.000000e+00> : vector<8xf32>
    %4 = vector.multi_reduction <add>, %1, %cst [1] : vector<8x32xf32> to vector<8xf32>
    %5 = vector.shape_cast %4 : vector<8xf32> to vector<8x1xf32>
    %cst_6 = arith.constant 3.200000e+01 : f32
    %6 = vector.broadcast %cst_6 : f32 to vector<8x1xf32>
    %7 = arith.divf %5, %6 : vector<8x1xf32>
    %8 = vector.broadcast %7 : vector<8x1xf32> to vector<8x32xf32>
    %9 = arith.subf %1, %8 : vector<8x32xf32>
    %10 = arith.mulf %9, %9 : vector<8x32xf32>
    %cst_7 = arith.constant dense<0.000000e+00> : vector<8xf32>
    %11 = vector.multi_reduction <add>, %10, %cst_7 [1] : vector<8x32xf32> to vector<8xf32>
    %12 = vector.shape_cast %11 : vector<8xf32> to vector<8x1xf32>
    %cst_8 = arith.constant 3.200000e+01 : f32
    %13 = vector.broadcast %cst_8 : f32 to vector<8x1xf32>
    %14 = arith.divf %12, %13 : vector<8x1xf32>
    %15 = vector.broadcast %7 : vector<8x1xf32> to vector<8x32xf32>
    %16 = arith.subf %1, %15 : vector<8x32xf32>
    %cst_9 = arith.constant 9.99999974E-6 : f32
    %17 = vector.broadcast %cst_9 : f32 to vector<8x1xf32>
    %18 = arith.addf %14, %17 : vector<8x1xf32>
    %19 = math.rsqrt %18 : vector<8x1xf32>
    %20 = vector.broadcast %19 : vector<8x1xf32> to vector<8x32xf32>
    %21 = arith.mulf %16, %20 : vector<8x32xf32>
    %22 = vector.broadcast %2 : vector<1x32xf32> to vector<8x32xf32>
    %23 = arith.mulf %21, %22 : vector<8x32xf32>
    %24 = vector.broadcast %3 : vector<1x32xf32> to vector<8x32xf32>
    %25 = arith.addf %23, %24 : vector<8x32xf32>
    %26 = tpu.iota {dimensions = array<i32: 0>} : vector<8x8xi32>
    %27 = tpu.iota {dimensions = array<i32: 1>} : vector<8x8xi32>
    %c1_i32 = arith.constant 1 : i32
    %28 = vector.broadcast %c1_i32 : i32 to vector<8x8xi32>
    %29 = arith.subi %26, %28 : vector<8x8xi32>
    %30 = arith.cmpi eq, %27, %29 : vector<8x8xi32>
    %31 = arith.extui %30 : vector<8x8xi1> to vector<8x8xi32>
    %32 = arith.sitofp %31 : vector<8x8xi32> to vector<8x8xf32>
    %c1_i32_10 = arith.constant 1 : i32
    %33 = vector.broadcast %c1_i32_10 : i32 to vector<8x8xi32>
    %34 = arith.addi %26, %33 : vector<8x8xi32>
    %35 = arith.cmpi eq, %27, %34 : vector<8x8xi32>
    %36 = arith.extui %35 : vector<8x8xi1> to vector<8x8xi32>
    %37 = arith.sitofp %36 : vector<8x8xi32> to vector<8x8xf32>
    %cst_11 = arith.constant dense<0.000000e+00> : vector<8x32xf32>
    %38 = tpu.matmul %32, %25, %cst_11 {dimension_numbers = #tpu.dot_dimension_numbers<[1], [0], [0], [1], [0, 0, 1, 1], [], []>} : vector<8x8xf32>, vector<8x32xf32>, vector<8x32xf32> -> vector<8x32xf32>
    %cst_12 = arith.constant dense<0.000000e+00> : vector<8x32xf32>
    %39 = tpu.matmul %37, %25, %cst_12 {dimension_numbers = #tpu.dot_dimension_numbers<[1], [0], [0], [1], [0, 0, 1, 1], [], []>} : vector<8x8xf32>, vector<8x32xf32>, vector<8x32xf32> -> vector<8x32xf32>
    %c0_13 = arith.constant 0 : index
    %c0_14 = arith.constant 0 : index
    %c0_15 = arith.constant 0 : index
    %40 = vector.load %arg4[%c0_13, %c0_14, %c0_15] : memref<3x32x96xf32, #tpu.memory_space<vmem>>, vector<1x32x96xf32>
    %41 = vector.shape_cast %40 : vector<1x32x96xf32> to vector<32x96xf32>
    %cst_16 = arith.constant dense<0.000000e+00> : vector<8x96xf32>
    %42 = tpu.matmul %38, %41, %cst_16 {dimension_numbers = #tpu.dot_dimension_numbers<[1], [0], [0], [1], [0, 0, 1, 1], [], []>} : vector<8x32xf32>, vector<32x96xf32>, vector<8x96xf32> -> vector<8x96xf32>
    %c1 = arith.constant 1 : index
    %c0_17 = arith.constant 0 : index
    %c0_18 = arith.constant 0 : index
    %43 = vector.load %arg4[%c1, %c0_17, %c0_18] : memref<3x32x96xf32, #tpu.memory_space<vmem>>, vector<1x32x96xf32>
    %44 = vector.shape_cast %43 : vector<1x32x96xf32> to vector<32x96xf32>
    %cst_19 = arith.constant dense<0.000000e+00> : vector<8x96xf32>
    %45 = tpu.matmul %25, %44, %cst_19 {dimension_numbers = #tpu.dot_dimension_numbers<[1], [0], [0], [1], [0, 0, 1, 1], [], []>} : vector<8x32xf32>, vector<32x96xf32>, vector<8x96xf32> -> vector<8x96xf32>
    %46 = arith.addf %42, %45 : vector<8x96xf32>
    %c2 = arith.constant 2 : index
    %c0_20 = arith.constant 0 : index
    %c0_21 = arith.constant 0 : index
    %47 = vector.load %arg4[%c2, %c0_20, %c0_21] : memref<3x32x96xf32, #tpu.memory_space<vmem>>, vector<1x32x96xf32>
    %48 = vector.shape_cast %47 : vector<1x32x96xf32> to vector<32x96xf32>
    %cst_22 = arith.constant dense<0.000000e+00> : vector<8x96xf32>
    %49 = tpu.matmul %39, %48, %cst_22 {dimension_numbers = #tpu.dot_dimension_numbers<[1], [0], [0], [1], [0, 0, 1, 1], [], []>} : vector<8x32xf32>, vector<32x96xf32>, vector<8x96xf32> -> vector<8x96xf32>
    %50 = arith.addf %46, %49 : vector<8x96xf32>
    %c0_23 = arith.constant 0 : index
    %c0_24 = arith.constant 0 : index
    %51 = vector.load %arg5[%c0_23, %c0_24] : memref<1x96xf32, #tpu.memory_space<vmem>>, vector<1x96xf32>
    %52 = vector.broadcast %51 : vector<1x96xf32> to vector<8x96xf32>
    %53 = arith.addf %50, %52 : vector<8x96xf32>
    %c0_25 = arith.constant 0 : index
    %c0_26 = arith.constant 0 : index
    %c0_27 = arith.constant 0 : index
    %54 = vector.load %arg6[%c0_25, %c0_26, %c0_27] : memref<1x8x96xf32, #tpu.memory_space<vmem>>, vector<1x8x96xf32>
    %55 = vector.shape_cast %54 : vector<1x8x96xf32> to vector<8x96xf32>
    %56 = vector.shape_cast %53 : vector<8x96xf32> to vector<1x8x96xf32>
    tpu.vector_store %arg6[%c0_25, %c0_26, %c0_27], %56 {strides = array<i32>} : memref<1x8x96xf32, #tpu.memory_space<vmem>>, vector<1x8x96xf32>,
    return
  }
  func.func @transform_0(%arg0: i32) -> (i32, i32, i32) {
    %c0_i32 = arith.constant 0 : i32
    %c0_i32_0 = arith.constant 0 : i32
    %c0_i32_1 = arith.constant 0 : i32
    return %arg0, %c0_i32, %c0_i32_0 : i32, i32, i32
  }
  func.func @transform_1(%arg0: i32) -> (i32, i32) {
    %c0_i32 = arith.constant 0 : i32
    %c0_i32_0 = arith.constant 0 : i32
    %c0_i32_1 = arith.constant 0 : i32
    return %c0_i32, %c0_i32_0 : i32, i32
  }
  func.func @transform_2(%arg0: i32) -> (i32, i32) {
    %c0_i32 = arith.constant 0 : i32
    %c0_i32_0 = arith.constant 0 : i32
    %c0_i32_1 = arith.constant 0 : i32
    return %c0_i32, %c0_i32_0 : i32, i32
  }
  func.func @transform_3(%arg0: i32) -> (i32, i32, i32) {
    %c0_i32 = arith.constant 0 : i32
    %c0_i32_0 = arith.constant 0 : i32
    %c0_i32_1 = arith.constant 0 : i32
    %c0_i32_2 = arith.constant 0 : i32
    return %c0_i32, %c0_i32_0, %c0_i32_1 : i32, i32, i32
  }
  func.func @transform_4(%arg0: i32) -> (i32, i32) {
    %c0_i32 = arith.constant 0 : i32
    %c0_i32_0 = arith.constant 0 : i32
    %c0_i32_1 = arith.constant 0 : i32
    return %c0_i32, %c0_i32_0 : i32, i32
  }
  func.func @transform_5(%arg0: i32) -> (i32, i32, i32) {
    %c0_i32 = arith.constant 0 : i32
    %c0_i32_0 = arith.constant 0 : i32
    %c0_i32_1 = arith.constant 0 : i32
    return %arg0, %c0_i32, %c0_i32_0 : i32, i32, i32
  }
}

module attributes {stable_mosaic.version = 11 : i64} {
  func.func @_attn_kernel(%arg0: i32, %arg1: memref<1x8x32xf32, #tpu.memory_space<vmem>>, %arg2: memref<1x8x32xf32, #tpu.memory_space<vmem>>, %arg3: memref<1x8x32xf32, #tpu.memory_space<vmem>>, %arg4: memref<1x8x32xf32, #tpu.memory_space<vmem>>) attributes {dimension_semantics = [#tpu.dimension_semantics<parallel>], iteration_bounds = array<i64: 2>, scalar_prefetch = 0 : i64, scratch_operands = 0 : i64, tpu.core_type = #tpu.core_type<tc>, window_params = [{transform_indices = @transform_0, window_bounds = array<i64: 1, 8, 32>}, {transform_indices = @transform_1, window_bounds = array<i64: 1, 8, 32>}, {transform_indices = @transform_2, window_bounds = array<i64: 1, 8, 32>}, {transform_indices = @transform_3, window_bounds = array<i64: 1, 8, 32>}]} {
    %c0 = arith.constant 0 : index
    %c0_0 = arith.constant 0 : index
    %c0_1 = arith.constant 0 : index
    %0 = vector.load %arg1[%c0, %c0_0, %c0_1] : memref<1x8x32xf32, #tpu.memory_space<vmem>>, vector<1x8x32xf32>
    %1 = vector.shape_cast %0 : vector<1x8x32xf32> to vector<8x32xf32>
    %c0_2 = arith.constant 0 : index
    %c0_3 = arith.constant 0 : index
    %c0_4 = arith.constant 0 : index
    %2 = vector.load %arg2[%c0_2, %c0_3, %c0_4] : memref<1x8x32xf32, #tpu.memory_space<vmem>>, vector<1x8x32xf32>
    %3 = vector.shape_cast %2 : vector<1x8x32xf32> to vector<8x32xf32>
    %c0_5 = arith.constant 0 : index
    %c0_6 = arith.constant 0 : index
    %c0_7 = arith.constant 0 : index
    %4 = vector.load %arg3[%c0_5, %c0_6, %c0_7] : memref<1x8x32xf32, #tpu.memory_space<vmem>>, vector<1x8x32xf32>
    %5 = vector.shape_cast %4 : vector<1x8x32xf32> to vector<8x32xf32>
    %6 = vector.extract_strided_slice %1 {offsets = [0, 0], sizes = [8, 8], strides = [1, 1]} : vector<8x32xf32> to vector<8x8xf32>
    %7 = vector.extract_strided_slice %3 {offsets = [0, 0], sizes = [8, 8], strides = [1, 1]} : vector<8x32xf32> to vector<8x8xf32>
    %8 = vector.extract_strided_slice %5 {offsets = [0, 0], sizes = [8, 8], strides = [1, 1]} : vector<8x32xf32> to vector<8x8xf32>
    %cst = arith.constant dense<0.000000e+00> : vector<8x8xf32>
    %9 = tpu.matmul %6, %7, %cst {dimension_numbers = #tpu.dot_dimension_numbers<[1], [1], [0], [0], [0, 0, 1, 0], [], []>} : vector<8x8xf32>, vector<8x8xf32>, vector<8x8xf32> -> vector<8x8xf32>
    %cst_8 = arith.constant 1.250000e-01 : f32
    %10 = vector.broadcast %cst_8 : f32 to vector<8x8xf32>
    %11 = arith.mulf %9, %10 : vector<8x8xf32>
    %cst_9 = arith.constant dense<0xFF800000> : vector<8xf32>
    %12 = vector.multi_reduction <maximumf>, %11, %cst_9 [1] : vector<8x8xf32> to vector<8xf32>
    %13 = vector.shape_cast %12 : vector<8xf32> to vector<8x1xf32>
    %14 = vector.broadcast %13 : vector<8x1xf32> to vector<8x8xf32>
    %15 = arith.subf %11, %14 : vector<8x8xf32>
    %16 = math.exp %15 : vector<8x8xf32>
    %cst_10 = arith.constant dense<0.000000e+00> : vector<8xf32>
    %17 = vector.multi_reduction <add>, %16, %cst_10 [1] : vector<8x8xf32> to vector<8xf32>
    %18 = vector.shape_cast %17 : vector<8xf32> to vector<8x1xf32>
    %19 = tpu.reciprocal %18 {approx = true} : vector<8x1xf32> -> vector<8x1xf32>
    %20 = vector.broadcast %19 : vector<8x1xf32> to vector<8x8xf32>
    %21 = arith.mulf %16, %20 : vector<8x8xf32>
    %cst_11 = arith.constant dense<0.000000e+00> : vector<8x8xf32>
    %22 = tpu.matmul %21, %8, %cst_11 {dimension_numbers = #tpu.dot_dimension_numbers<[1], [0], [0], [1], [0, 0, 1, 1], [], []>} : vector<8x8xf32>, vector<8x8xf32>, vector<8x8xf32> -> vector<8x8xf32>
    %c0_12 = arith.constant 0 : index
    %c0_13 = arith.constant 0 : index
    %c0_14 = arith.constant 0 : index
    %23 = vector.load %arg4[%c0_12, %c0_13, %c0_14] : memref<1x8x32xf32, #tpu.memory_space<vmem>>, vector<1x8x8xf32>
    %24 = vector.shape_cast %23 : vector<1x8x8xf32> to vector<8x8xf32>
    %25 = vector.shape_cast %22 : vector<8x8xf32> to vector<1x8x8xf32>
    tpu.vector_store %arg4[%c0_12, %c0_13, %c0_14], %25 {strides = array<i32>} : memref<1x8x32xf32, #tpu.memory_space<vmem>>, vector<1x8x8xf32>,
    %26 = vector.extract_strided_slice %1 {offsets = [0, 8], sizes = [8, 8], strides = [1, 1]} : vector<8x32xf32> to vector<8x8xf32>
    %27 = vector.extract_strided_slice %3 {offsets = [0, 8], sizes = [8, 8], strides = [1, 1]} : vector<8x32xf32> to vector<8x8xf32>
    %28 = vector.extract_strided_slice %5 {offsets = [0, 8], sizes = [8, 8], strides = [1, 1]} : vector<8x32xf32> to vector<8x8xf32>
    %cst_15 = arith.constant dense<0.000000e+00> : vector<8x8xf32>
    %29 = tpu.matmul %26, %27, %cst_15 {dimension_numbers = #tpu.dot_dimension_numbers<[1], [1], [0], [0], [0, 0, 1, 0], [], []>} : vector<8x8xf32>, vector<8x8xf32>, vector<8x8xf32> -> vector<8x8xf32>
    %cst_16 = arith.constant 1.250000e-01 : f32
    %30 = vector.broadcast %cst_16 : f32 to vector<8x8xf32>
    %31 = arith.mulf %29, %30 : vector<8x8xf32>
    %cst_17 = arith.constant dense<0xFF800000> : vector<8xf32>
    %32 = vector.multi_reduction <maximumf>, %31, %cst_17 [1] : vector<8x8xf32> to vector<8xf32>
    %33 = vector.shape_cast %32 : vector<8xf32> to vector<8x1xf32>
    %34 = vector.broadcast %33 : vector<8x1xf32> to vector<8x8xf32>
    %35 = arith.subf %31, %34 : vector<8x8xf32>
    %36 = math.exp %35 : vector<8x8xf32>
    %cst_18 = arith.constant dense<0.000000e+00> : vector<8xf32>
    %37 = vector.multi_reduction <add>, %36, %cst_18 [1] : vector<8x8xf32> to vector<8xf32>
    %38 = vector.shape_cast %37 : vector<8xf32> to vector<8x1xf32>
    %39 = tpu.reciprocal %38 {approx = true} : vector<8x1xf32> -> vector<8x1xf32>
    %40 = vector.broadcast %39 : vector<8x1xf32> to vector<8x8xf32>
    %41 = arith.mulf %36, %40 : vector<8x8xf32>
    %cst_19 = arith.constant dense<0.000000e+00> : vector<8x8xf32>
    %42 = tpu.matmul %41, %28, %cst_19 {dimension_numbers = #tpu.dot_dimension_numbers<[1], [0], [0], [1], [0, 0, 1, 1], [], []>} : vector<8x8xf32>, vector<8x8xf32>, vector<8x8xf32> -> vector<8x8xf32>
    %c0_20 = arith.constant 0 : index
    %c0_21 = arith.constant 0 : index
    %c8 = arith.constant 8 : index
    %43 = vector.load %arg4[%c0_20, %c0_21, %c8] : memref<1x8x32xf32, #tpu.memory_space<vmem>>, vector<1x8x8xf32>
    %44 = vector.shape_cast %43 : vector<1x8x8xf32> to vector<8x8xf32>
    %45 = vector.shape_cast %42 : vector<8x8xf32> to vector<1x8x8xf32>
    tpu.vector_store %arg4[%c0_20, %c0_21, %c8], %45 {strides = array<i32>} : memref<1x8x32xf32, #tpu.memory_space<vmem>>, vector<1x8x8xf32>,
    %46 = vector.extract_strided_slice %1 {offsets = [0, 16], sizes = [8, 8], strides = [1, 1]} : vector<8x32xf32> to vector<8x8xf32>
    %47 = vector.extract_strided_slice %3 {offsets = [0, 16], sizes = [8, 8], strides = [1, 1]} : vector<8x32xf32> to vector<8x8xf32>
    %48 = vector.extract_strided_slice %5 {offsets = [0, 16], sizes = [8, 8], strides = [1, 1]} : vector<8x32xf32> to vector<8x8xf32>
    %cst_22 = arith.constant dense<0.000000e+00> : vector<8x8xf32>
    %49 = tpu.matmul %46, %47, %cst_22 {dimension_numbers = #tpu.dot_dimension_numbers<[1], [1], [0], [0], [0, 0, 1, 0], [], []>} : vector<8x8xf32>, vector<8x8xf32>, vector<8x8xf32> -> vector<8x8xf32>
    %cst_23 = arith.constant 1.250000e-01 : f32
    %50 = vector.broadcast %cst_23 : f32 to vector<8x8xf32>
    %51 = arith.mulf %49, %50 : vector<8x8xf32>
    %cst_24 = arith.constant dense<0xFF800000> : vector<8xf32>
    %52 = vector.multi_reduction <maximumf>, %51, %cst_24 [1] : vector<8x8xf32> to vector<8xf32>
    %53 = vector.shape_cast %52 : vector<8xf32> to vector<8x1xf32>
    %54 = vector.broadcast %53 : vector<8x1xf32> to vector<8x8xf32>
    %55 = arith.subf %51, %54 : vector<8x8xf32>
    %56 = math.exp %55 : vector<8x8xf32>
    %cst_25 = arith.constant dense<0.000000e+00> : vector<8xf32>
    %57 = vector.multi_reduction <add>, %56, %cst_25 [1] : vector<8x8xf32> to vector<8xf32>
    %58 = vector.shape_cast %57 : vector<8xf32> to vector<8x1xf32>
    %59 = tpu.reciprocal %58 {approx = true} : vector<8x1xf32> -> vector<8x1xf32>
    %60 = vector.broadcast %59 : vector<8x1xf32> to vector<8x8xf32>
    %61 = arith.mulf %56, %60 : vector<8x8xf32>
    %cst_26 = arith.constant dense<0.000000e+00> : vector<8x8xf32>
    %62 = tpu.matmul %61, %48, %cst_26 {dimension_numbers = #tpu.dot_dimension_numbers<[1], [0], [0], [1], [0, 0, 1, 1], [], []>} : vector<8x8xf32>, vector<8x8xf32>, vector<8x8xf32> -> vector<8x8xf32>
    %c0_27 = arith.constant 0 : index
    %c0_28 = arith.constant 0 : index
    %c16 = arith.constant 16 : index
    %63 = vector.load %arg4[%c0_27, %c0_28, %c16] : memref<1x8x32xf32, #tpu.memory_space<vmem>>, vector<1x8x8xf32>
    %64 = vector.shape_cast %63 : vector<1x8x8xf32> to vector<8x8xf32>
    %65 = vector.shape_cast %62 : vector<8x8xf32> to vector<1x8x8xf32>
    tpu.vector_store %arg4[%c0_27, %c0_28, %c16], %65 {strides = array<i32>} : memref<1x8x32xf32, #tpu.memory_space<vmem>>, vector<1x8x8xf32>,
    %66 = vector.extract_strided_slice %1 {offsets = [0, 24], sizes = [8, 8], strides = [1, 1]} : vector<8x32xf32> to vector<8x8xf32>
    %67 = vector.extract_strided_slice %3 {offsets = [0, 24], sizes = [8, 8], strides = [1, 1]} : vector<8x32xf32> to vector<8x8xf32>
    %68 = vector.extract_strided_slice %5 {offsets = [0, 24], sizes = [8, 8], strides = [1, 1]} : vector<8x32xf32> to vector<8x8xf32>
    %cst_29 = arith.constant dense<0.000000e+00> : vector<8x8xf32>
    %69 = tpu.matmul %66, %67, %cst_29 {dimension_numbers = #tpu.dot_dimension_numbers<[1], [1], [0], [0], [0, 0, 1, 0], [], []>} : vector<8x8xf32>, vector<8x8xf32>, vector<8x8xf32> -> vector<8x8xf32>
    %cst_30 = arith.constant 1.250000e-01 : f32
    %70 = vector.broadcast %cst_30 : f32 to vector<8x8xf32>
    %71 = arith.mulf %69, %70 : vector<8x8xf32>
    %cst_31 = arith.constant dense<0xFF800000> : vector<8xf32>
    %72 = vector.multi_reduction <maximumf>, %71, %cst_31 [1] : vector<8x8xf32> to vector<8xf32>
    %73 = vector.shape_cast %72 : vector<8xf32> to vector<8x1xf32>
    %74 = vector.broadcast %73 : vector<8x1xf32> to vector<8x8xf32>
    %75 = arith.subf %71, %74 : vector<8x8xf32>
    %76 = math.exp %75 : vector<8x8xf32>
    %cst_32 = arith.constant dense<0.000000e+00> : vector<8xf32>
    %77 = vector.multi_reduction <add>, %76, %cst_32 [1] : vector<8x8xf32> to vector<8xf32>
    %78 = vector.shape_cast %77 : vector<8xf32> to vector<8x1xf32>
    %79 = tpu.reciprocal %78 {approx = true} : vector<8x1xf32> -> vector<8x1xf32>
    %80 = vector.broadcast %79 : vector<8x1xf32> to vector<8x8xf32>
    %81 = arith.mulf %76, %80 : vector<8x8xf32>
    %cst_33 = arith.constant dense<0.000000e+00> : vector<8x8xf32>
    %82 = tpu.matmul %81, %68, %cst_33 {dimension_numbers = #tpu.dot_dimension_numbers<[1], [0], [0], [1], [0, 0, 1, 1], [], []>} : vector<8x8xf32>, vector<8x8xf32>, vector<8x8xf32> -> vector<8x8xf32>
    %c0_34 = arith.constant 0 : index
    %c0_35 = arith.constant 0 : index
    %c24 = arith.constant 24 : index
    %83 = vector.load %arg4[%c0_34, %c0_35, %c24] : memref<1x8x32xf32, #tpu.memory_space<vmem>>, vector<1x8x8xf32>
    %84 = vector.shape_cast %83 : vector<1x8x8xf32> to vector<8x8xf32>
    %85 = vector.shape_cast %82 : vector<8x8xf32> to vector<1x8x8xf32>
    tpu.vector_store %arg4[%c0_34, %c0_35, %c24], %85 {strides = array<i32>} : memref<1x8x32xf32, #tpu.memory_space<vmem>>, vector<1x8x8xf32>,
    return
  }
  func.func @transform_0(%arg0: i32) -> (i32, i32, i32) {
    %c0_i32 = arith.constant 0 : i32
    %c0_i32_0 = arith.constant 0 : i32
    %c0_i32_1 = arith.constant 0 : i32
    return %arg0, %c0_i32, %c0_i32_0 : i32, i32, i32
  }
  func.func @transform_1(%arg0: i32) -> (i32, i32, i32) {
    %c0_i32 = arith.constant 0 : i32
    %c0_i32_0 = arith.constant 0 : i32
    %c0_i32_1 = arith.constant 0 : i32
    return %arg0, %c0_i32, %c0_i32_0 : i32, i32, i32
  }
  func.func @transform_2(%arg0: i32) -> (i32, i32, i32) {
    %c0_i32 = arith.constant 0 : i32
    %c0_i32_0 = arith.constant 0 : i32
    %c0_i32_1 = arith.constant 0 : i32
    return %arg0, %c0_i32, %c0_i32_0 : i32, i32, i32
  }
  func.func @transform_3(%arg0: i32) -> (i32, i32, i32) {
    %c0_i32 = arith.constant 0 : i32
    %c0_i32_0 = arith.constant 0 : i32
    %c0_i32_1 = arith.constant 0 : i32
    return %arg0, %c0_i32, %c0_i32_0 : i32, i32, i32
  }
}

module attributes {stable_mosaic.version = 11 : i64} {
  func.func @_ffn_kernel(%arg0: i32, %arg1: memref<1x8x32xf32, #tpu.memory_space<vmem>>, %arg2: memref<1x8x32xf32, #tpu.memory_space<vmem>>, %arg3: memref<3x32x32xf32, #tpu.memory_space<vmem>>, %arg4: memref<1x32xf32, #tpu.memory_space<vmem>>, %arg5: memref<1x32xf32, #tpu.memory_space<vmem>>, %arg6: memref<1x32xf32, #tpu.memory_space<vmem>>, %arg7: memref<3x32x64xf32, #tpu.memory_space<vmem>>, %arg8: memref<1x64xf32, #tpu.memory_space<vmem>>, %arg9: memref<3x64x32xf32, #tpu.memory_space<vmem>>, %arg10: memref<1x32xf32, #tpu.memory_space<vmem>>, %arg11: memref<1x8x32xf32, #tpu.memory_space<vmem>>) attributes {dimension_semantics = [#tpu.dimension_semantics<parallel>], iteration_bounds = array<i64: 2>, scalar_prefetch = 0 : i64, scratch_operands = 0 : i64, tpu.core_type = #tpu.core_type<tc>, window_params = [{transform_indices = @transform_0, window_bounds = array<i64: 1, 8, 32>}, {transform_indices = @transform_1, window_bounds = array<i64: 1, 8, 32>}, {pipeline_mode = #tpu.pipeline_mode<synchronous>, transform_indices = @transform_2, window_bounds = array<i64: 3, 32, 32>}, {pipeline_mode = #tpu.pipeline_mode<synchronous>, transform_indices = @transform_3, window_bounds = array<i64: 1, 32>}, {pipeline_mode = #tpu.pipeline_mode<synchronous>, transform_indices = @transform_4, window_bounds = array<i64: 1, 32>}, {pipeline_mode = #tpu.pipeline_mode<synchronous>, transform_indices = @transform_5, window_bounds = array<i64: 1, 32>}, {pipeline_mode = #tpu.pipeline_mode<synchronous>, transform_indices = @transform_6, window_bounds = array<i64: 3, 32, 64>}, {pipeline_mode = #tpu.pipeline_mode<synchronous>, transform_indices = @transform_7, window_bounds = array<i64: 1, 64>}, {pipeline_mode = #tpu.pipeline_mode<synchronous>, transform_indices = @transform_8, window_bounds = array<i64: 3, 64, 32>}, {pipeline_mode = #tpu.pipeline_mode<synchronous>, transform_indices = @transform_9, window_bounds = array<i64: 1, 32>}, {transform_indices = @transform_10, window_bounds = array<i64: 1, 8, 32>}]} {
    %c0 = arith.constant 0 : index
    %c0_0 = arith.constant 0 : index
    %c0_1 = arith.constant 0 : index
    %0 = vector.load %arg1[%c0, %c0_0, %c0_1] : memref<1x8x32xf32, #tpu.memory_space<vmem>>, vector<1x8x32xf32>
    %1 = vector.shape_cast %0 : vector<1x8x32xf32> to vector<8x32xf32>
    %c0_2 = arith.constant 0 : index
    %c0_3 = arith.constant 0 : index
    %c0_4 = arith.constant 0 : index
    %2 = vector.load %arg2[%c0_2, %c0_3, %c0_4] : memref<1x8x32xf32, #tpu.memory_space<vmem>>, vector<1x8x32xf32>
    %3 = vector.shape_cast %2 : vector<1x8x32xf32> to vector<8x32xf32>
    %4 = tpu.iota {dimensions = array<i32: 0>} : vector<8x8xi32>
    %5 = tpu.iota {dimensions = array<i32: 1>} : vector<8x8xi32>
    %c1_i32 = arith.constant 1 : i32
    %6 = vector.broadcast %c1_i32 : i32 to vector<8x8xi32>
    %7 = arith.subi %4, %6 : vector<8x8xi32>
    %8 = arith.cmpi eq, %5, %7 : vector<8x8xi32>
    %9 = arith.extui %8 : vector<8x8xi1> to vector<8x8xi32>
    %10 = arith.sitofp %9 : vector<8x8xi32> to vector<8x8xf32>
    %c1_i32_5 = arith.constant 1 : i32
    %11 = vector.broadcast %c1_i32_5 : i32 to vector<8x8xi32>
    %12 = arith.addi %4, %11 : vector<8x8xi32>
    %13 = arith.cmpi eq, %5, %12 : vector<8x8xi32>
    %14 = arith.extui %13 : vector<8x8xi1> to vector<8x8xi32>
    %15 = arith.sitofp %14 : vector<8x8xi32> to vector<8x8xf32>
    %cst = arith.constant dense<0.000000e+00> : vector<8x32xf32>
    %16 = tpu.matmul %10, %1, %cst {dimension_numbers = #tpu.dot_dimension_numbers<[1], [0], [0], [1], [0, 0, 1, 1], [], []>} : vector<8x8xf32>, vector<8x32xf32>, vector<8x32xf32> -> vector<8x32xf32>
    %cst_6 = arith.constant dense<0.000000e+00> : vector<8x32xf32>
    %17 = tpu.matmul %15, %1, %cst_6 {dimension_numbers = #tpu.dot_dimension_numbers<[1], [0], [0], [1], [0, 0, 1, 1], [], []>} : vector<8x8xf32>, vector<8x32xf32>, vector<8x32xf32> -> vector<8x32xf32>
    %c0_7 = arith.constant 0 : index
    %c0_8 = arith.constant 0 : index
    %c0_9 = arith.constant 0 : index
    %18 = vector.load %arg3[%c0_7, %c0_8, %c0_9] : memref<3x32x32xf32, #tpu.memory_space<vmem>>, vector<1x32x32xf32>
    %19 = vector.shape_cast %18 : vector<1x32x32xf32> to vector<32x32xf32>
    %cst_10 = arith.constant dense<0.000000e+00> : vector<8x32xf32>
    %20 = tpu.matmul %16, %19, %cst_10 {dimension_numbers = #tpu.dot_dimension_numbers<[1], [0], [0], [1], [0, 0, 1, 1], [], []>} : vector<8x32xf32>, vector<32x32xf32>, vector<8x32xf32> -> vector<8x32xf32>
    %c1 = arith.constant 1 : index
    %c0_11 = arith.constant 0 : index
    %c0_12 = arith.constant 0 : index
    %21 = vector.load %arg3[%c1, %c0_11, %c0_12] : memref<3x32x32xf32, #tpu.memory_space<vmem>>, vector<1x32x32xf32>
    %22 = vector.shape_cast %21 : vector<1x32x32xf32> to vector<32x32xf32>
    %cst_13 = arith.constant dense<0.000000e+00> : vector<8x32xf32>
    %23 = tpu.matmul %1, %22, %cst_13 {dimension_numbers = #tpu.dot_dimension_numbers<[1], [0], [0], [1], [0, 0, 1, 1], [], []>} : vector<8x32xf32>, vector<32x32xf32>, vector<8x32xf32> -> vector<8x32xf32>
    %24 = arith.addf %20, %23 : vector<8x32xf32>
    %c2 = arith.constant 2 : index
    %c0_14 = arith.constant 0 : index
    %c0_15 = arith.constant 0 : index
    %25 = vector.load %arg3[%c2, %c0_14, %c0_15] : memref<3x32x32xf32, #tpu.memory_space<vmem>>, vector<1x32x32xf32>
    %26 = vector.shape_cast %25 : vector<1x32x32xf32> to vector<32x32xf32>
    %cst_16 = arith.constant dense<0.000000e+00> : vector<8x32xf32>
    %27 = tpu.matmul %17, %26, %cst_16 {dimension_numbers = #tpu.dot_dimension_numbers<[1], [0], [0], [1], [0, 0, 1, 1], [], []>} : vector<8x32xf32>, vector<32x32xf32>, vector<8x32xf32> -> vector<8x32xf32>
    %28 = arith.addf %24, %27 : vector<8x32xf32>
    %c0_17 = arith.constant 0 : index
    %c0_18 = arith.constant 0 : index
    %29 = vector.load %arg4[%c0_17, %c0_18] : memref<1x32xf32, #tpu.memory_space<vmem>>, vector<1x32xf32>
    %30 = vector.broadcast %29 : vector<1x32xf32> to vector<8x32xf32>
    %31 = arith.addf %28, %30 : vector<8x32xf32>
    %32 = arith.addf %3, %31 : vector<8x32xf32>
    %c0_19 = arith.constant 0 : index
    %c0_20 = arith.constant 0 : index
    %33 = vector.load %arg5[%c0_19, %c0_20] : memref<1x32xf32, #tpu.memory_space<vmem>>, vector<1x32xf32>
    %c0_21 = arith.constant 0 : index
    %c0_22 = arith.constant 0 : index
    %34 = vector.load %arg6[%c0_21, %c0_22] : memref<1x32xf32, #tpu.memory_space<vmem>>, vector<1x32xf32>
    %cst_23 = arith.constant dense<0.000000e+00> : vector<8xf32>
    %35 = vector.multi_reduction <add>, %32, %cst_23 [1] : vector<8x32xf32> to vector<8xf32>
    %36 = vector.shape_cast %35 : vector<8xf32> to vector<8x1xf32>
    %cst_24 = arith.constant 3.200000e+01 : f32
    %37 = vector.broadcast %cst_24 : f32 to vector<8x1xf32>
    %38 = arith.divf %36, %37 : vector<8x1xf32>
    %39 = vector.broadcast %38 : vector<8x1xf32> to vector<8x32xf32>
    %40 = arith.subf %32, %39 : vector<8x32xf32>
    %41 = arith.mulf %40, %40 : vector<8x32xf32>
    %cst_25 = arith.constant dense<0.000000e+00> : vector<8xf32>
    %42 = vector.multi_reduction <add>, %41, %cst_25 [1] : vector<8x32xf32> to vector<8xf32>
    %43 = vector.shape_cast %42 : vector<8xf32> to vector<8x1xf32>
    %cst_26 = arith.constant 3.200000e+01 : f32
    %44 = vector.broadcast %cst_26 : f32 to vector<8x1xf32>
    %45 = arith.divf %43, %44 : vector<8x1xf32>
    %46 = vector.broadcast %38 : vector<8x1xf32> to vector<8x32xf32>
    %47 = arith.subf %32, %46 : vector<8x32xf32>
    %cst_27 = arith.constant 9.99999974E-6 : f32
    %48 = vector.broadcast %cst_27 : f32 to vector<8x1xf32>
    %49 = arith.addf %45, %48 : vector<8x1xf32>
    %50 = math.rsqrt %49 : vector<8x1xf32>
    %51 = vector.broadcast %50 : vector<8x1xf32> to vector<8x32xf32>
    %52 = arith.mulf %47, %51 : vector<8x32xf32>
    %53 = vector.broadcast %33 : vector<1x32xf32> to vector<8x32xf32>
    %54 = arith.mulf %52, %53 : vector<8x32xf32>
    %55 = vector.broadcast %34 : vector<1x32xf32> to vector<8x32xf32>
    %56 = arith.addf %54, %55 : vector<8x32xf32>
    %cst_28 = arith.constant dense<0.000000e+00> : vector<8x32xf32>
    %57 = tpu.matmul %10, %56, %cst_28 {dimension_numbers = #tpu.dot_dimension_numbers<[1], [0], [0], [1], [0, 0, 1, 1], [], []>} : vector<8x8xf32>, vector<8x32xf32>, vector<8x32xf32> -> vector<8x32xf32>
    %cst_29 = arith.constant dense<0.000000e+00> : vector<8x32xf32>
    %58 = tpu.matmul %15, %56, %cst_29 {dimension_numbers = #tpu.dot_dimension_numbers<[1], [0], [0], [1], [0, 0, 1, 1], [], []>} : vector<8x8xf32>, vector<8x32xf32>, vector<8x32xf32> -> vector<8x32xf32>
    %c0_30 = arith.constant 0 : index
    %c0_31 = arith.constant 0 : index
    %c0_32 = arith.constant 0 : index
    %59 = vector.load %arg7[%c0_30, %c0_31, %c0_32] : memref<3x32x64xf32, #tpu.memory_space<vmem>>, vector<1x32x64xf32>
    %60 = vector.shape_cast %59 : vector<1x32x64xf32> to vector<32x64xf32>
    %cst_33 = arith.constant dense<0.000000e+00> : vector<8x64xf32>
    %61 = tpu.matmul %57, %60, %cst_33 {dimension_numbers = #tpu.dot_dimension_numbers<[1], [0], [0], [1], [0, 0, 1, 1], [], []>} : vector<8x32xf32>, vector<32x64xf32>, vector<8x64xf32> -> vector<8x64xf32>
    %c1_34 = arith.constant 1 : index
    %c0_35 = arith.constant 0 : index
    %c0_36 = arith.constant 0 : index
    %62 = vector.load %arg7[%c1_34, %c0_35, %c0_36] : memref<3x32x64xf32, #tpu.memory_space<vmem>>, vector<1x32x64xf32>
    %63 = vector.shape_cast %62 : vector<1x32x64xf32> to vector<32x64xf32>
    %cst_37 = arith.constant dense<0.000000e+00> : vector<8x64xf32>
    %64 = tpu.matmul %56, %63, %cst_37 {dimension_numbers = #tpu.dot_dimension_numbers<[1], [0], [0], [1], [0, 0, 1, 1], [], []>} : vector<8x32xf32>, vector<32x64xf32>, vector<8x64xf32> -> vector<8x64xf32>
    %65 = arith.addf %61, %64 : vector<8x64xf32>
    %c2_38 = arith.constant 2 : index
    %c0_39 = arith.constant 0 : index
    %c0_40 = arith.constant 0 : index
    %66 = vector.load %arg7[%c2_38, %c0_39, %c0_40] : memref<3x32x64xf32, #tpu.memory_space<vmem>>, vector<1x32x64xf32>
    %67 = vector.shape_cast %66 : vector<1x32x64xf32> to vector<32x64xf32>
    %cst_41 = arith.constant dense<0.000000e+00> : vector<8x64xf32>
    %68 = tpu.matmul %58, %67, %cst_41 {dimension_numbers = #tpu.dot_dimension_numbers<[1], [0], [0], [1], [0, 0, 1, 1], [], []>} : vector<8x32xf32>, vector<32x64xf32>, vector<8x64xf32> -> vector<8x64xf32>
    %69 = arith.addf %65, %68 : vector<8x64xf32>
    %c0_42 = arith.constant 0 : index
    %c0_43 = arith.constant 0 : index
    %70 = vector.load %arg8[%c0_42, %c0_43] : memref<1x64xf32, #tpu.memory_space<vmem>>, vector<1x64xf32>
    %71 = vector.broadcast %70 : vector<1x64xf32> to vector<8x64xf32>
    %72 = arith.addf %69, %71 : vector<8x64xf32>
    %cst_44 = arith.constant 0.000000e+00 : f32
    %73 = vector.broadcast %cst_44 : f32 to vector<8x64xf32>
    %74 = arith.maximumf %72, %73 : vector<8x64xf32>
    %cst_45 = arith.constant dense<0.000000e+00> : vector<8x64xf32>
    %75 = tpu.matmul %10, %74, %cst_45 {dimension_numbers = #tpu.dot_dimension_numbers<[1], [0], [0], [1], [0, 0, 1, 1], [], []>} : vector<8x8xf32>, vector<8x64xf32>, vector<8x64xf32> -> vector<8x64xf32>
    %cst_46 = arith.constant dense<0.000000e+00> : vector<8x64xf32>
    %76 = tpu.matmul %15, %74, %cst_46 {dimension_numbers = #tpu.dot_dimension_numbers<[1], [0], [0], [1], [0, 0, 1, 1], [], []>} : vector<8x8xf32>, vector<8x64xf32>, vector<8x64xf32> -> vector<8x64xf32>
    %c0_47 = arith.constant 0 : index
    %c0_48 = arith.constant 0 : index
    %c0_49 = arith.constant 0 : index
    %77 = vector.load %arg9[%c0_47, %c0_48, %c0_49] : memref<3x64x32xf32, #tpu.memory_space<vmem>>, vector<1x64x32xf32>
    %78 = vector.shape_cast %77 : vector<1x64x32xf32> to vector<64x32xf32>
    %cst_50 = arith.constant dense<0.000000e+00> : vector<8x32xf32>
    %79 = tpu.matmul %75, %78, %cst_50 {dimension_numbers = #tpu.dot_dimension_numbers<[1], [0], [0], [1], [0, 0, 1, 1], [], []>} : vector<8x64xf32>, vector<64x32xf32>, vector<8x32xf32> -> vector<8x32xf32>
    %c1_51 = arith.constant 1 : index
    %c0_52 = arith.constant 0 : index
    %c0_53 = arith.constant 0 : index
    %80 = vector.load %arg9[%c1_51, %c0_52, %c0_53] : memref<3x64x32xf32, #tpu.memory_space<vmem>>, vector<1x64x32xf32>
    %81 = vector.shape_cast %80 : vector<1x64x32xf32> to vector<64x32xf32>
    %cst_54 = arith.constant dense<0.000000e+00> : vector<8x32xf32>
    %82 = tpu.matmul %74, %81, %cst_54 {dimension_numbers = #tpu.dot_dimension_numbers<[1], [0], [0], [1], [0, 0, 1, 1], [], []>} : vector<8x64xf32>, vector<64x32xf32>, vector<8x32xf32> -> vector<8x32xf32>
    %83 = arith.addf %79, %82 : vector<8x32xf32>
    %c2_55 = arith.constant 2 : index
    %c0_56 = arith.constant 0 : index
    %c0_57 = arith.constant 0 : index
    %84 = vector.load %arg9[%c2_55, %c0_56, %c0_57] : memref<3x64x32xf32, #tpu.memory_space<vmem>>, vector<1x64x32xf32>
    %85 = vector.shape_cast %84 : vector<1x64x32xf32> to vector<64x32xf32>
    %cst_58 = arith.constant dense<0.000000e+00> : vector<8x32xf32>
    %86 = tpu.matmul %76, %85, %cst_58 {dimension_numbers = #tpu.dot_dimension_numbers<[1], [0], [0], [1], [0, 0, 1, 1], [], []>} : vector<8x64xf32>, vector<64x32xf32>, vector<8x32xf32> -> vector<8x32xf32>
    %87 = arith.addf %83, %86 : vector<8x32xf32>
    %c0_59 = arith.constant 0 : index
    %c0_60 = arith.constant 0 : index
    %88 = vector.load %arg10[%c0_59, %c0_60] : memref<1x32xf32, #tpu.memory_space<vmem>>, vector<1x32xf32>
    %89 = vector.broadcast %88 : vector<1x32xf32> to vector<8x32xf32>
    %90 = arith.addf %87, %89 : vector<8x32xf32>
    %91 = arith.addf %32, %90 : vector<8x32xf32>
    %c0_61 = arith.constant 0 : index
    %c0_62 = arith.constant 0 : index
    %c0_63 = arith.constant 0 : index
    %92 = vector.load %arg11[%c0_61, %c0_62, %c0_63] : memref<1x8x32xf32, #tpu.memory_space<vmem>>, vector<1x8x32xf32>
    %93 = vector.shape_cast %92 : vector<1x8x32xf32> to vector<8x32xf32>
    %94 = vector.shape_cast %91 : vector<8x32xf32> to vector<1x8x32xf32>
    tpu.vector_store %arg11[%c0_61, %c0_62, %c0_63], %94 {strides = array<i32>} : memref<1x8x32xf32, #tpu.memory_space<vmem>>, vector<1x8x32xf32>,
    return
  }
  func.func @transform_0(%arg0: i32) -> (i32, i32, i32) {
    %c0_i32 = arith.constant 0 : i32
    %c0_i32_0 = arith.constant 0 : i32
    %c0_i32_1 = arith.constant 0 : i32
    return %arg0, %c0_i32, %c0_i32_0 : i32, i32, i32
  }
  func.func @transform_1(%arg0: i32) -> (i32, i32, i32) {
    %c0_i32 = arith.constant 0 : i32
    %c0_i32_0 = arith.constant 0 : i32
    %c0_i32_1 = arith.constant 0 : i32
    return %arg0, %c0_i32, %c0_i32_0 : i32, i32, i32
  }
  func.func @transform_2(%arg0: i32) -> (i32, i32, i32) {
    %c0_i32 = arith.constant 0 : i32
    %c0_i32_0 = arith.constant 0 : i32
    %c0_i32_1 = arith.constant 0 : i32
    %c0_i32_2 = arith.constant 0 : i32
    return %c0_i32, %c0_i32_0, %c0_i32_1 : i32, i32, i32
  }
  func.func @transform_3(%arg0: i32) -> (i32, i32) {
    %c0_i32 = arith.constant 0 : i32
    %c0_i32_0 = arith.constant 0 : i32
    %c0_i32_1 = arith.constant 0 : i32
    return %c0_i32, %c0_i32_0 : i32, i32
  }
  func.func @transform_4(%arg0: i32) -> (i32, i32) {
    %c0_i32 = arith.constant 0 : i32
    %c0_i32_0 = arith.constant 0 : i32
    %c0_i32_1 = arith.constant 0 : i32
    return %c0_i32, %c0_i32_0 : i32, i32
  }
  func.func @transform_5(%arg0: i32) -> (i32, i32) {
    %c0_i32 = arith.constant 0 : i32
    %c0_i32_0 = arith.constant 0 : i32
    %c0_i32_1 = arith.constant 0 : i32
    return %c0_i32, %c0_i32_0 : i32, i32
  }
  func.func @transform_6(%arg0: i32) -> (i32, i32, i32) {
    %c0_i32 = arith.constant 0 : i32
    %c0_i32_0 = arith.constant 0 : i32
    %c0_i32_1 = arith.constant 0 : i32
    %c0_i32_2 = arith.constant 0 : i32
    return %c0_i32, %c0_i32_0, %c0_i32_1 : i32, i32, i32
  }
  func.func @transform_7(%arg0: i32) -> (i32, i32) {
    %c0_i32 = arith.constant 0 : i32
    %c0_i32_0 = arith.constant 0 : i32
    %c0_i32_1 = arith.constant 0 : i32
    return %c0_i32, %c0_i32_0 : i32, i32
  }
  func.func @transform_8(%arg0: i32) -> (i32, i32, i32) {
    %c0_i32 = arith.constant 0 : i32
    %c0_i32_0 = arith.constant 0 : i32
    %c0_i32_1 = arith.constant 0 : i32
    %c0_i32_2 = arith.constant 0 : i32
    return %c0_i32, %c0_i32_0, %c0_i32_1 : i32, i32, i32
  }
  func.func @transform_9(%arg0: i32) -> (i32, i32) {
    %c0_i32 = arith.constant 0 : i32
    %c0_i32_0 = arith.constant 0 : i32
    %c0_i32_1 = arith.constant 0 : i32
    return %c0_i32, %c0_i32_0 : i32, i32
  }
  func.func @transform_10(%arg0: i32) -> (i32, i32, i32) {
    %c0_i32 = arith.constant 0 : i32
    %c0_i32_0 = arith.constant 0 : i32
    %c0_i32_1 = arith.constant 0 : i32
    return %arg0, %c0_i32, %c0_i32_0 : i32, i32, i32
  }
}

module attributes {stable_mosaic.version = 11 : i64} {
  func.func @_duration_kernel(%arg0: i32, %arg1: memref<1x8x32xf32, #tpu.memory_space<vmem>>, %arg2: memref<3x32x32xf32, #tpu.memory_space<vmem>>, %arg3: memref<1x32xf32, #tpu.memory_space<vmem>>, %arg4: memref<1x32xf32, #tpu.memory_space<vmem>>, %arg5: memref<1x32xf32, #tpu.memory_space<vmem>>, %arg6: memref<3x32x32xf32, #tpu.memory_space<vmem>>, %arg7: memref<1x32xf32, #tpu.memory_space<vmem>>, %arg8: memref<1x32xf32, #tpu.memory_space<vmem>>, %arg9: memref<1x32xf32, #tpu.memory_space<vmem>>, %arg10: memref<1x32xf32, #tpu.memory_space<vmem>>, %arg11: memref<1x1xf32, #tpu.memory_space<vmem>>, %arg12: memref<1x8x1xf32, #tpu.memory_space<vmem>>) attributes {dimension_semantics = [#tpu.dimension_semantics<parallel>], iteration_bounds = array<i64: 2>, scalar_prefetch = 0 : i64, scratch_operands = 0 : i64, tpu.core_type = #tpu.core_type<tc>, window_params = [{transform_indices = @transform_0, window_bounds = array<i64: 1, 8, 32>}, {pipeline_mode = #tpu.pipeline_mode<synchronous>, transform_indices = @transform_1, window_bounds = array<i64: 3, 32, 32>}, {pipeline_mode = #tpu.pipeline_mode<synchronous>, transform_indices = @transform_2, window_bounds = array<i64: 1, 32>}, {pipeline_mode = #tpu.pipeline_mode<synchronous>, transform_indices = @transform_3, window_bounds = array<i64: 1, 32>}, {pipeline_mode = #tpu.pipeline_mode<synchronous>, transform_indices = @transform_4, window_bounds = array<i64: 1, 32>}, {pipeline_mode = #tpu.pipeline_mode<synchronous>, transform_indices = @transform_5, window_bounds = array<i64: 3, 32, 32>}, {pipeline_mode = #tpu.pipeline_mode<synchronous>, transform_indices = @transform_6, window_bounds = array<i64: 1, 32>}, {pipeline_mode = #tpu.pipeline_mode<synchronous>, transform_indices = @transform_7, window_bounds = array<i64: 1, 32>}, {pipeline_mode = #tpu.pipeline_mode<synchronous>, transform_indices = @transform_8, window_bounds = array<i64: 1, 32>}, {pipeline_mode = #tpu.pipeline_mode<synchronous>, transform_indices = @transform_9, window_bounds = array<i64: 1, 32>}, {pipeline_mode = #tpu.pipeline_mode<synchronous>, transform_indices = @transform_10, window_bounds = array<i64: 1, 1>}, {transform_indices = @transform_11, window_bounds = array<i64: 1, 8, 1>}]} {
    %c0 = arith.constant 0 : index
    %c0_0 = arith.constant 0 : index
    %c0_1 = arith.constant 0 : index
    %0 = vector.load %arg1[%c0, %c0_0, %c0_1] : memref<1x8x32xf32, #tpu.memory_space<vmem>>, vector<1x8x32xf32>
    %1 = vector.shape_cast %0 : vector<1x8x32xf32> to vector<8x32xf32>
    %2 = tpu.iota {dimensions = array<i32: 0>} : vector<8x8xi32>
    %3 = tpu.iota {dimensions = array<i32: 1>} : vector<8x8xi32>
    %c1_i32 = arith.constant 1 : i32
    %4 = vector.broadcast %c1_i32 : i32 to vector<8x8xi32>
    %5 = arith.subi %2, %4 : vector<8x8xi32>
    %6 = arith.cmpi eq, %3, %5 : vector<8x8xi32>
    %7 = arith.extui %6 : vector<8x8xi1> to vector<8x8xi32>
    %8 = arith.sitofp %7 : vector<8x8xi32> to vector<8x8xf32>
    %c1_i32_2 = arith.constant 1 : i32
    %9 = vector.broadcast %c1_i32_2 : i32 to vector<8x8xi32>
    %10 = arith.addi %2, %9 : vector<8x8xi32>
    %11 = arith.cmpi eq, %3, %10 : vector<8x8xi32>
    %12 = arith.extui %11 : vector<8x8xi1> to vector<8x8xi32>
    %13 = arith.sitofp %12 : vector<8x8xi32> to vector<8x8xf32>
    %cst = arith.constant dense<0.000000e+00> : vector<8x32xf32>
    %14 = tpu.matmul %8, %1, %cst {dimension_numbers = #tpu.dot_dimension_numbers<[1], [0], [0], [1], [0, 0, 1, 1], [], []>} : vector<8x8xf32>, vector<8x32xf32>, vector<8x32xf32> -> vector<8x32xf32>
    %cst_3 = arith.constant dense<0.000000e+00> : vector<8x32xf32>
    %15 = tpu.matmul %13, %1, %cst_3 {dimension_numbers = #tpu.dot_dimension_numbers<[1], [0], [0], [1], [0, 0, 1, 1], [], []>} : vector<8x8xf32>, vector<8x32xf32>, vector<8x32xf32> -> vector<8x32xf32>
    %c0_4 = arith.constant 0 : index
    %c0_5 = arith.constant 0 : index
    %c0_6 = arith.constant 0 : index
    %16 = vector.load %arg2[%c0_4, %c0_5, %c0_6] : memref<3x32x32xf32, #tpu.memory_space<vmem>>, vector<1x32x32xf32>
    %17 = vector.shape_cast %16 : vector<1x32x32xf32> to vector<32x32xf32>
    %cst_7 = arith.constant dense<0.000000e+00> : vector<8x32xf32>
    %18 = tpu.matmul %14, %17, %cst_7 {dimension_numbers = #tpu.dot_dimension_numbers<[1], [0], [0], [1], [0, 0, 1, 1], [], []>} : vector<8x32xf32>, vector<32x32xf32>, vector<8x32xf32> -> vector<8x32xf32>
    %c1 = arith.constant 1 : index
    %c0_8 = arith.constant 0 : index
    %c0_9 = arith.constant 0 : index
    %19 = vector.load %arg2[%c1, %c0_8, %c0_9] : memref<3x32x32xf32, #tpu.memory_space<vmem>>, vector<1x32x32xf32>
    %20 = vector.shape_cast %19 : vector<1x32x32xf32> to vector<32x32xf32>
    %cst_10 = arith.constant dense<0.000000e+00> : vector<8x32xf32>
    %21 = tpu.matmul %1, %20, %cst_10 {dimension_numbers = #tpu.dot_dimension_numbers<[1], [0], [0], [1], [0, 0, 1, 1], [], []>} : vector<8x32xf32>, vector<32x32xf32>, vector<8x32xf32> -> vector<8x32xf32>
    %22 = arith.addf %18, %21 : vector<8x32xf32>
    %c2 = arith.constant 2 : index
    %c0_11 = arith.constant 0 : index
    %c0_12 = arith.constant 0 : index
    %23 = vector.load %arg2[%c2, %c0_11, %c0_12] : memref<3x32x32xf32, #tpu.memory_space<vmem>>, vector<1x32x32xf32>
    %24 = vector.shape_cast %23 : vector<1x32x32xf32> to vector<32x32xf32>
    %cst_13 = arith.constant dense<0.000000e+00> : vector<8x32xf32>
    %25 = tpu.matmul %15, %24, %cst_13 {dimension_numbers = #tpu.dot_dimension_numbers<[1], [0], [0], [1], [0, 0, 1, 1], [], []>} : vector<8x32xf32>, vector<32x32xf32>, vector<8x32xf32> -> vector<8x32xf32>
    %26 = arith.addf %22, %25 : vector<8x32xf32>
    %c0_14 = arith.constant 0 : index
    %c0_15 = arith.constant 0 : index
    %27 = vector.load %arg3[%c0_14, %c0_15] : memref<1x32xf32, #tpu.memory_space<vmem>>, vector<1x32xf32>
    %28 = vector.broadcast %27 : vector<1x32xf32> to vector<8x32xf32>
    %29 = arith.addf %26, %28 : vector<8x32xf32>
    %c0_16 = arith.constant 0 : index
    %c0_17 = arith.constant 0 : index
    %30 = vector.load %arg4[%c0_16, %c0_17] : memref<1x32xf32, #tpu.memory_space<vmem>>, vector<1x32xf32>
    %c0_18 = arith.constant 0 : index
    %c0_19 = arith.constant 0 : index
    %31 = vector.load %arg5[%c0_18, %c0_19] : memref<1x32xf32, #tpu.memory_space<vmem>>, vector<1x32xf32>
    %cst_20 = arith.constant dense<0.000000e+00> : vector<8xf32>
    %32 = vector.multi_reduction <add>, %29, %cst_20 [1] : vector<8x32xf32> to vector<8xf32>
    %33 = vector.shape_cast %32 : vector<8xf32> to vector<8x1xf32>
    %cst_21 = arith.constant 3.200000e+01 : f32
    %34 = vector.broadcast %cst_21 : f32 to vector<8x1xf32>
    %35 = arith.divf %33, %34 : vector<8x1xf32>
    %36 = vector.broadcast %35 : vector<8x1xf32> to vector<8x32xf32>
    %37 = arith.subf %29, %36 : vector<8x32xf32>
    %38 = arith.mulf %37, %37 : vector<8x32xf32>
    %cst_22 = arith.constant dense<0.000000e+00> : vector<8xf32>
    %39 = vector.multi_reduction <add>, %38, %cst_22 [1] : vector<8x32xf32> to vector<8xf32>
    %40 = vector.shape_cast %39 : vector<8xf32> to vector<8x1xf32>
    %cst_23 = arith.constant 3.200000e+01 : f32
    %41 = vector.broadcast %cst_23 : f32 to vector<8x1xf32>
    %42 = arith.divf %40, %41 : vector<8x1xf32>
    %43 = vector.broadcast %35 : vector<8x1xf32> to vector<8x32xf32>
    %44 = arith.subf %29, %43 : vector<8x32xf32>
    %cst_24 = arith.constant 9.99999974E-6 : f32
    %45 = vector.broadcast %cst_24 : f32 to vector<8x1xf32>
    %46 = arith.addf %42, %45 : vector<8x1xf32>
    %47 = math.rsqrt %46 : vector<8x1xf32>
    %48 = vector.broadcast %47 : vector<8x1xf32> to vector<8x32xf32>
    %49 = arith.mulf %44, %48 : vector<8x32xf32>
    %50 = vector.broadcast %30 : vector<1x32xf32> to vector<8x32xf32>
    %51 = arith.mulf %49, %50 : vector<8x32xf32>
    %52 = vector.broadcast %31 : vector<1x32xf32> to vector<8x32xf32>
    %53 = arith.addf %51, %52 : vector<8x32xf32>
    %cst_25 = arith.constant 0.000000e+00 : f32
    %54 = vector.broadcast %cst_25 : f32 to vector<8x32xf32>
    %55 = arith.maximumf %53, %54 : vector<8x32xf32>
    %cst_26 = arith.constant dense<0.000000e+00> : vector<8x32xf32>
    %56 = tpu.matmul %8, %55, %cst_26 {dimension_numbers = #tpu.dot_dimension_numbers<[1], [0], [0], [1], [0, 0, 1, 1], [], []>} : vector<8x8xf32>, vector<8x32xf32>, vector<8x32xf32> -> vector<8x32xf32>
    %cst_27 = arith.constant dense<0.000000e+00> : vector<8x32xf32>
    %57 = tpu.matmul %13, %55, %cst_27 {dimension_numbers = #tpu.dot_dimension_numbers<[1], [0], [0], [1], [0, 0, 1, 1], [], []>} : vector<8x8xf32>, vector<8x32xf32>, vector<8x32xf32> -> vector<8x32xf32>
    %c0_28 = arith.constant 0 : index
    %c0_29 = arith.constant 0 : index
    %c0_30 = arith.constant 0 : index
    %58 = vector.load %arg6[%c0_28, %c0_29, %c0_30] : memref<3x32x32xf32, #tpu.memory_space<vmem>>, vector<1x32x32xf32>
    %59 = vector.shape_cast %58 : vector<1x32x32xf32> to vector<32x32xf32>
    %cst_31 = arith.constant dense<0.000000e+00> : vector<8x32xf32>
    %60 = tpu.matmul %56, %59, %cst_31 {dimension_numbers = #tpu.dot_dimension_numbers<[1], [0], [0], [1], [0, 0, 1, 1], [], []>} : vector<8x32xf32>, vector<32x32xf32>, vector<8x32xf32> -> vector<8x32xf32>
    %c1_32 = arith.constant 1 : index
    %c0_33 = arith.constant 0 : index
    %c0_34 = arith.constant 0 : index
    %61 = vector.load %arg6[%c1_32, %c0_33, %c0_34] : memref<3x32x32xf32, #tpu.memory_space<vmem>>, vector<1x32x32xf32>
    %62 = vector.shape_cast %61 : vector<1x32x32xf32> to vector<32x32xf32>
    %cst_35 = arith.constant dense<0.000000e+00> : vector<8x32xf32>
    %63 = tpu.matmul %55, %62, %cst_35 {dimension_numbers = #tpu.dot_dimension_numbers<[1], [0], [0], [1], [0, 0, 1, 1], [], []>} : vector<8x32xf32>, vector<32x32xf32>, vector<8x32xf32> -> vector<8x32xf32>
    %64 = arith.addf %60, %63 : vector<8x32xf32>
    %c2_36 = arith.constant 2 : index
    %c0_37 = arith.constant 0 : index
    %c0_38 = arith.constant 0 : index
    %65 = vector.load %arg6[%c2_36, %c0_37, %c0_38] : memref<3x32x32xf32, #tpu.memory_space<vmem>>, vector<1x32x32xf32>
    %66 = vector.shape_cast %65 : vector<1x32x32xf32> to vector<32x32xf32>
    %cst_39 = arith.constant dense<0.000000e+00> : vector<8x32xf32>
    %67 = tpu.matmul %57, %66, %cst_39 {dimension_numbers = #tpu.dot_dimension_numbers<[1], [0], [0], [1], [0, 0, 1, 1], [], []>} : vector<8x32xf32>, vector<32x32xf32>, vector<8x32xf32> -> vector<8x32xf32>
    %68 = arith.addf %64, %67 : vector<8x32xf32>
    %c0_40 = arith.constant 0 : index
    %c0_41 = arith.constant 0 : index
    %69 = vector.load %arg7[%c0_40, %c0_41] : memref<1x32xf32, #tpu.memory_space<vmem>>, vector<1x32xf32>
    %70 = vector.broadcast %69 : vector<1x32xf32> to vector<8x32xf32>
    %71 = arith.addf %68, %70 : vector<8x32xf32>
    %c0_42 = arith.constant 0 : index
    %c0_43 = arith.constant 0 : index
    %72 = vector.load %arg8[%c0_42, %c0_43] : memref<1x32xf32, #tpu.memory_space<vmem>>, vector<1x32xf32>
    %c0_44 = arith.constant 0 : index
    %c0_45 = arith.constant 0 : index
    %73 = vector.load %arg9[%c0_44, %c0_45] : memref<1x32xf32, #tpu.memory_space<vmem>>, vector<1x32xf32>
    %cst_46 = arith.constant dense<0.000000e+00> : vector<8xf32>
    %74 = vector.multi_reduction <add>, %71, %cst_46 [1] : vector<8x32xf32> to vector<8xf32>
    %75 = vector.shape_cast %74 : vector<8xf32> to vector<8x1xf32>
    %cst_47 = arith.constant 3.200000e+01 : f32
    %76 = vector.broadcast %cst_47 : f32 to vector<8x1xf32>
    %77 = arith.divf %75, %76 : vector<8x1xf32>
    %78 = vector.broadcast %77 : vector<8x1xf32> to vector<8x32xf32>
    %79 = arith.subf %71, %78 : vector<8x32xf32>
    %80 = arith.mulf %79, %79 : vector<8x32xf32>
    %cst_48 = arith.constant dense<0.000000e+00> : vector<8xf32>
    %81 = vector.multi_reduction <add>, %80, %cst_48 [1] : vector<8x32xf32> to vector<8xf32>
    %82 = vector.shape_cast %81 : vector<8xf32> to vector<8x1xf32>
    %cst_49 = arith.constant 3.200000e+01 : f32
    %83 = vector.broadcast %cst_49 : f32 to vector<8x1xf32>
    %84 = arith.divf %82, %83 : vector<8x1xf32>
    %85 = vector.broadcast %77 : vector<8x1xf32> to vector<8x32xf32>
    %86 = arith.subf %71, %85 : vector<8x32xf32>
    %cst_50 = arith.constant 9.99999974E-6 : f32
    %87 = vector.broadcast %cst_50 : f32 to vector<8x1xf32>
    %88 = arith.addf %84, %87 : vector<8x1xf32>
    %89 = math.rsqrt %88 : vector<8x1xf32>
    %90 = vector.broadcast %89 : vector<8x1xf32> to vector<8x32xf32>
    %91 = arith.mulf %86, %90 : vector<8x32xf32>
    %92 = vector.broadcast %72 : vector<1x32xf32> to vector<8x32xf32>
    %93 = arith.mulf %91, %92 : vector<8x32xf32>
    %94 = vector.broadcast %73 : vector<1x32xf32> to vector<8x32xf32>
    %95 = arith.addf %93, %94 : vector<8x32xf32>
    %cst_51 = arith.constant 0.000000e+00 : f32
    %96 = vector.broadcast %cst_51 : f32 to vector<8x32xf32>
    %97 = arith.maximumf %95, %96 : vector<8x32xf32>
    %c0_52 = arith.constant 0 : index
    %c0_53 = arith.constant 0 : index
    %98 = vector.load %arg10[%c0_52, %c0_53] : memref<1x32xf32, #tpu.memory_space<vmem>>, vector<1x32xf32>
    %99 = vector.broadcast %98 : vector<1x32xf32> to vector<8x32xf32>
    %100 = arith.mulf %97, %99 : vector<8x32xf32>
    %cst_54 = arith.constant dense<0.000000e+00> : vector<8xf32>
    %101 = vector.multi_reduction <add>, %100, %cst_54 [1] : vector<8x32xf32> to vector<8xf32>
    %102 = vector.shape_cast %101 : vector<8xf32> to vector<8x1xf32>
    %c0_55 = arith.constant 0 : index
    %c0_56 = arith.constant 0 : index
    %103 = vector.load %arg11[%c0_55, %c0_56] : memref<1x1xf32, #tpu.memory_space<vmem>>, vector<1x1xf32>
    %104 = vector.broadcast %103 : vector<1x1xf32> to vector<8x1xf32>
    %105 = arith.addf %102, %104 : vector<8x1xf32>
    %c0_57 = arith.constant 0 : index
    %c0_58 = arith.constant 0 : index
    %c0_59 = arith.constant 0 : index
    %106 = vector.load %arg12[%c0_57, %c0_58, %c0_59] : memref<1x8x1xf32, #tpu.memory_space<vmem>>, vector<1x8x1xf32>
    %107 = vector.shape_cast %106 : vector<1x8x1xf32> to vector<8x1xf32>
    %108 = vector.shape_cast %105 : vector<8x1xf32> to vector<1x8x1xf32>
    tpu.vector_store %arg12[%c0_57, %c0_58, %c0_59], %108 {strides = array<i32>} : memref<1x8x1xf32, #tpu.memory_space<vmem>>, vector<1x8x1xf32>,
    return
  }
  func.func @transform_0(%arg0: i32) -> (i32, i32, i32) {
    %c0_i32 = arith.constant 0 : i32
    %c0_i32_0 = arith.constant 0 : i32
    %c0_i32_1 = arith.constant 0 : i32
    return %arg0, %c0_i32, %c0_i32_0 : i32, i32, i32
  }
  func.func @transform_1(%arg0: i32) -> (i32, i32, i32) {
    %c0_i32 = arith.constant 0 : i32
    %c0_i32_0 = arith.constant 0 : i32
    %c0_i32_1 = arith.constant 0 : i32
    %c0_i32_2 = arith.constant 0 : i32
    return %c0_i32, %c0_i32_0, %c0_i32_1 : i32, i32, i32
  }
  func.func @transform_2(%arg0: i32) -> (i32, i32) {
    %c0_i32 = arith.constant 0 : i32
    %c0_i32_0 = arith.constant 0 : i32
    %c0_i32_1 = arith.constant 0 : i32
    return %c0_i32, %c0_i32_0 : i32, i32
  }
  func.func @transform_3(%arg0: i32) -> (i32, i32) {
    %c0_i32 = arith.constant 0 : i32
    %c0_i32_0 = arith.constant 0 : i32
    %c0_i32_1 = arith.constant 0 : i32
    return %c0_i32, %c0_i32_0 : i32, i32
  }
  func.func @transform_4(%arg0: i32) -> (i32, i32) {
    %c0_i32 = arith.constant 0 : i32
    %c0_i32_0 = arith.constant 0 : i32
    %c0_i32_1 = arith.constant 0 : i32
    return %c0_i32, %c0_i32_0 : i32, i32
  }
  func.func @transform_5(%arg0: i32) -> (i32, i32, i32) {
    %c0_i32 = arith.constant 0 : i32
    %c0_i32_0 = arith.constant 0 : i32
    %c0_i32_1 = arith.constant 0 : i32
    %c0_i32_2 = arith.constant 0 : i32
    return %c0_i32, %c0_i32_0, %c0_i32_1 : i32, i32, i32
  }
  func.func @transform_6(%arg0: i32) -> (i32, i32) {
    %c0_i32 = arith.constant 0 : i32
    %c0_i32_0 = arith.constant 0 : i32
    %c0_i32_1 = arith.constant 0 : i32
    return %c0_i32, %c0_i32_0 : i32, i32
  }
  func.func @transform_7(%arg0: i32) -> (i32, i32) {
    %c0_i32 = arith.constant 0 : i32
    %c0_i32_0 = arith.constant 0 : i32
    %c0_i32_1 = arith.constant 0 : i32
    return %c0_i32, %c0_i32_0 : i32, i32
  }
  func.func @transform_8(%arg0: i32) -> (i32, i32) {
    %c0_i32 = arith.constant 0 : i32
    %c0_i32_0 = arith.constant 0 : i32
    %c0_i32_1 = arith.constant 0 : i32
    return %c0_i32, %c0_i32_0 : i32, i32
  }
  func.func @transform_9(%arg0: i32) -> (i32, i32) {
    %c0_i32 = arith.constant 0 : i32
    %c0_i32_0 = arith.constant 0 : i32
    %c0_i32_1 = arith.constant 0 : i32
    return %c0_i32, %c0_i32_0 : i32, i32
  }
  func.func @transform_10(%arg0: i32) -> (i32, i32) {
    %c0_i32 = arith.constant 0 : i32
    %c0_i32_0 = arith.constant 0 : i32
    %c0_i32_1 = arith.constant 0 : i32
    return %c0_i32, %c0_i32_0 : i32, i32
  }
  func.func @transform_11(%arg0: i32) -> (i32, i32, i32) {
    %c0_i32 = arith.constant 0 : i32
    %c0_i32_0 = arith.constant 0 : i32
    %c0_i32_1 = arith.constant 0 : i32
    return %arg0, %c0_i32, %c0_i32_0 : i32, i32, i32
  }
}

</mosaic_0001>

<llo_original>
// kernel: _encoder_forward.19
$region0: #{_encoder_forward.19}
  #allocation0 [shape = 'u32[]', space=smem, size = 0x4, offset = 0x4, fixed_abs, tag = 'smem constant byte address 0x4 - core index']
  #allocation1 [shape = 'u32[144,128]{1,0:T(1,128)}', space=vmem, size = 0x12000, scoped, tag = 'internal scratch']
  %s0 = inlined_call_operand.vmem [shape: f32[2,8,32], index: 0, kind: input, shape index: {}]
  %s1 = inlined_call_operand.vmem [shape: f32[1,32], index: 1, kind: input, shape index: {}]
  %s2 = inlined_call_operand.vmem [shape: f32[1,32], index: 2, kind: input, shape index: {}]
  %s3 = inlined_call_operand.vmem [shape: f32[3,32,96], index: 3, kind: input, shape index: {}]
  %s4 = inlined_call_operand.vmem [shape: f32[1,96], index: 4, kind: input, shape index: {}]
  %s5 = inlined_call_operand.vmem [shape: f32[2,8,96], index: 5, kind: output, shape index: {}]
  %s6 = sld [smem:[#allocation0]]
  $region53: #{_encoder_forward.19} parent=0
    _
  %s8 = ssub.s32 1, %s6
  %s9 = scalar_select 0, %s8, %s6
  loop: start=0, step=1, limit=4
  $region2: #{_encoder_forward.19} parent=0 // loop_pre_header
    _
  $region3: #{_encoder_forward.19} parent=0 // loop_header
    %s11 = sphi 0, %s15
    %p12 = scmp.ge.s32.totalorder %s11, 4
    %s21 = sphi 0, %s23
    %s24 = sphi 0, %s21
    %s25 = sphi 0, %s24
    %s41 = sphi 0, %s25
    %s45 = sphi 0, %s45
    %s47 = sphi 0, %s45
    %s48 = sphi 0, %s47
    %s62 = sphi 0, %s48
    %s66 = sphi 0, %s66
    %s68 = sphi 0, %s66
    %s69 = sphi 0, %s68
    %s83 = sphi 0, %s69
    %s87 = sphi 0, %s87
    %s89 = sphi 0, %s87
    %s90 = sphi 0, %s89
    %s104 = sphi 0, %s90
    %s108 = sphi 0, %s108
    %s110 = sphi 0, %s108
    %s111 = sphi 0, %s110
    %s125 = sphi 0, %s111
    %s131 = sphi 0, %s133
    %s134 = sphi 0, %s131
    %s135 = sphi 0, %s134
    %s151 = sphi 0, %s135
  $region4: #{_encoder_forward.19} parent=0 // loop_header_branch
    %14 = sbr.rel (%p12) target = $region8
  $region5: #{_encoder_forward.19} parent=0 // loop_body
    %s16 = ssub.s32 %s11, 1
    %s17 = ssub.s32 %s11, 2
    %s18 = sadd.s32 %s11, 1
    %s19 = ssub.s32 %s11, %s18
    %p20 = scmp.eq.s32.totalorder %s19, 0
    %s22 = sadd.s32 %s21, 1
    %s23 = scalar_select %p20, %s21, %s22
    %p26 = pneg %p20
    %p27 = scmp.eq.s32.totalorder %s11, 1
    %p28 = por %p26, %p27
    %p29 = scmp.ne.s32.totalorder %s21, %s24
    %p30 = scmp.eq.s32.totalorder %s11, 0
    %p31 = por %p29, %p30
    %p32 = scmp.ne.s32.totalorder %s21, %s24
    %p33 = scmp.eq.s32.totalorder %s16, 1
    %p34 = por %p32, %p33
    %p35 = scmp.ne.s32.totalorder %s24, %s25
    %p36 = scmp.eq.s32.totalorder %s16, 0
    %p37 = por %p35, %p36
    %p38 = scmp.ne.s32.totalorder %s24, %s25
    %p39 = scmp.eq.s32.totalorder %s17, 1
    %p40 = por %p38, %p39
    %p42 = scmp.ne.s32.totalorder %s25, %s41
    %p43 = scmp.eq.s32.totalorder %s17, 0
    %p44 = por %p42, %p43
    %s46 = sadd.s32 %s45, 1
    %p49 = scmp.eq.s32.totalorder %s11, 1
    %p50 = scmp.ne.s32.totalorder %s45, %s47
    %p51 = scmp.eq.s32.totalorder %s11, 0
    %p52 = por %p50, %p51
    %p53 = scmp.ne.s32.totalorder %s45, %s47
    %p54 = scmp.eq.s32.totalorder %s16, 1
    %p55 = por %p53, %p54
    %p56 = scmp.ne.s32.totalorder %s47, %s48
    %p57 = scmp.eq.s32.totalorder %s16, 0
    %p58 = por %p56, %p57
    %p59 = scmp.ne.s32.totalorder %s47, %s48
    %p60 = scmp.eq.s32.totalorder %s17, 1
    %p61 = por %p59, %p60
    %p63 = scmp.ne.s32.totalorder %s48, %s62
    %p64 = scmp.eq.s32.totalorder %s17, 0
    %p65 = por %p63, %p64
    %s67 = sadd.s32 %s66, 1
    %p70 = scmp.eq.s32.totalorder %s11, 1
    %p71 = scmp.ne.s32.totalorder %s66, %s68
    %p72 = scmp.eq.s32.totalorder %s11, 0
    %p73 = por %p71, %p72
    %p74 = scmp.ne.s32.totalorder %s66, %s68
    %p75 = scmp.eq.s32.totalorder %s16, 1
    %p76 = por %p74, %p75
    %p77 = scmp.ne.s32.totalorder %s68, %s69
    %p78 = scmp.eq.s32.totalorder %s16, 0
    %p79 = por %p77, %p78
    %p80 = scmp.ne.s32.totalorder %s68, %s69
    %p81 = scmp.eq.s32.totalorder %s17, 1
    %p82 = por %p80, %p81
    %p84 = scmp.ne.s32.totalorder %s69, %s83
    %p85 = scmp.eq.s32.totalorder %s17, 0
    %p86 = por %p84, %p85
    %s88 = sadd.s32 %s87, 1
    %p91 = scmp.eq.s32.totalorder %s11, 1
    %p92 = scmp.ne.s32.totalorder %s87, %s89
    %p93 = scmp.eq.s32.totalorder %s11, 0
    %p94 = por %p92, %p93
    %p95 = scmp.ne.s32.totalorder %s87, %s89
    %p96 = scmp.eq.s32.totalorder %s16, 1
    %p97 = por %p95, %p96
    %p98 = scmp.ne.s32.totalorder %s89, %s90
    %p99 = scmp.eq.s32.totalorder %s16, 0
    %p100 = por %p98, %p99
    %p101 = scmp.ne.s32.totalorder %s89, %s90
    %p102 = scmp.eq.s32.totalorder %s17, 1
    %p103 = por %p101, %p102
    %p105 = scmp.ne.s32.totalorder %s90, %s104
    %p106 = scmp.eq.s32.totalorder %s17, 0
    %p107 = por %p105, %p106
    %s109 = sadd.s32 %s108, 1
    %p112 = scmp.eq.s32.totalorder %s11, 1
    %p113 = scmp.ne.s32.totalorder %s108, %s110
    %p114 = scmp.eq.s32.totalorder %s11, 0
    %p115 = por %p113, %p114
    %p116 = scmp.ne.s32.totalorder %s108, %s110
    %p117 = scmp.eq.s32.totalorder %s16, 1
    %p118 = por %p116, %p117
    %p119 = scmp.ne.s32.totalorder %s110, %s111
    %p120 = scmp.eq.s32.totalorder %s16, 0
    %p121 = por %p119, %p120
    %p122 = scmp.ne.s32.totalorder %s110, %s111
    %p123 = scmp.eq.s32.totalorder %s17, 1
    %p124 = por %p122, %p123
    %p126 = scmp.ne.s32.totalorder %s111, %s125
    %p127 = scmp.eq.s32.totalorder %s17, 0
    %p128 = por %p126, %p127
    %s129 = ssub.s32 %s11, %s18
    %p130 = scmp.eq.s32.totalorder %s129, 0
    %s132 = sadd.s32 %s131, 1
    %s133 = scalar_select %p130, %s131, %s132
    %p136 = pneg %p130
    %p137 = scmp.eq.s32.totalorder %s11, 1
    %p138 = por %p136, %p137
    %p139 = scmp.ne.s32.totalorder %s131, %s134
    %p140 = scmp.eq.s32.totalorder %s11, 0
    %p141 = por %p139, %p140
    %p142 = scmp.ne.s32.totalorder %s131, %s134
    %p143 = scmp.eq.s32.totalorder %s16, 1
    %p144 = por %p142, %p143
    %p145 = scmp.ne.s32.totalorder %s134, %s135
    %p146 = scmp.eq.s32.totalorder %s16, 0
    %p147 = por %p145, %p146
    %p148 = scmp.ne.s32.totalorder %s134, %s135
    %p149 = scmp.eq.s32.totalorder %s17, 1
    %p150 = por %p148, %p149
    %p152 = scmp.ne.s32.totalorder %s135, %s151
    %p153 = scmp.eq.s32.totalorder %s17, 0
    %p154 = por %p152, %p153
    %p155 = scmp.le.s32.totalorder 1, %s11
    %p156 = scmp.lt.s32.totalorder %s11, 3
    %p157 = pnand %p155, %p156
    %p158 = pneg %p157
    // Predicated region
    $region9: #{_encoder_forward.19} parent=5 // pred_check
      _
    $region10: #{_encoder_forward.19} parent=5 // pred_check_branch
      %160 = sbr.rel (%p157) target = $region12
    $region11: #{_encoder_forward.19} parent=5 // pred_region
      %s161 = ssub.s32 %s11, 1
      // Predicated region
      $region13: #{_encoder_forward.19} parent=11 // pred_check
        %p162 = pneg %p58
      $region14: #{_encoder_forward.19} parent=11 // pred_check_branch
        %164 = sbr.rel (%p162) target = $region16
      $region15: #{_encoder_forward.19} parent=11 // pred_region
        _
      $region16: #{_encoder_forward.19} parent=11 // pred_fallthru
        _
      // Predicated region
      $region17: #{_encoder_forward.19} parent=11 // pred_check
        %p165 = pneg %p79
      $region18: #{_encoder_forward.19} parent=11 // pred_check_branch
        %167 = sbr.rel (%p165) target = $region20
      $region19: #{_encoder_forward.19} parent=11 // pred_region
        _
      $region20: #{_encoder_forward.19} parent=11 // pred_fallthru
        _
      // Predicated region
      $region21: #{_encoder_forward.19} parent=11 // pred_check
        %p168 = pneg %p100
      $region22: #{_encoder_forward.19} parent=11 // pred_check_branch
        %170 = sbr.rel (%p168) target = $region24
      $region23: #{_encoder_forward.19} parent=11 // pred_region
        _
      $region24: #{_encoder_forward.19} parent=11 // pred_fallthru
        _
      // Predicated region
      $region25: #{_encoder_forward.19} parent=11 // pred_check
        %p171 = pneg %p121
      $region26: #{_encoder_forward.19} parent=11 // pred_check_branch
        %173 = sbr.rel (%p171) target = $region28
      $region27: #{_encoder_forward.19} parent=11 // pred_region
        _
      $region28: #{_encoder_forward.19} parent=11 // pred_fallthru
        _
    $region12: #{_encoder_forward.19} parent=5 // pred_fallthru
      _
    %p174 = scmp.lt.s32.totalorder %s11, 2
    // Predicated region
    $region29: #{_encoder_forward.19} parent=5 // pred_check
      %p175 = pneg %p174
    $region30: #{_encoder_forward.19} parent=5 // pred_check_branch
      %177 = sbr.rel (%p175) target = $region32
    $region31: #{_encoder_forward.19} parent=5 // pred_region
      // Predicated region
      $region33: #{_encoder_forward.19} parent=31 // pred_check
        %p178 = pneg %p31
      $region34: #{_encoder_forward.19} parent=31 // pred_check_branch
        %180 = sbr.rel (%p178) target = $region36
      $region35: #{_encoder_forward.19} parent=31 // pred_region
        %p181 = scmp.lt.s32.totalorder %s11, 1
        %s182 = scalar_select %p181, %s11, 1
        %s183 = smul.addr %s182, 8
        %s184 = scalar_lea.vmem %s0, %s183
      $region36: #{_encoder_forward.19} parent=31 // pred_fallthru
        _
    $region32: #{_encoder_forward.19} parent=5 // pred_fallthru
      _
    %p185 = scmp.le.s32.totalorder 1, %s11
    %p186 = scmp.lt.s32.totalorder %s11, 3
    %p187 = pnand %p185, %p186
    %p188 = pneg %p187
    // Predicated region
    $region37: #{_encoder_forward.19} parent=5 // pred_check
      _
    $region38: #{_encoder_forward.19} parent=5 // pred_check_branch
      %190 = sbr.rel (%p187) target = $region40
    $region39: #{_encoder_forward.19} parent=5 // pred_region
      %s191 = ssub.s32 %s11, 1
      %p192 = scmp.lt.s32.totalorder %s16, 1
      %s193 = scalar_select %p192, %s16, 1
      %s194 = smul.addr %s193, 8
      %s195 = scalar_lea.vmem %s0, %s194
      %p196 = pneg %p37
      %p197 = pneg %p34
      %p198 = pneg %p58
      %p199 = pneg %p55
      %p200 = pneg %p79
      %p201 = pneg %p76
      %p202 = pneg %p100
      %p203 = pneg %p97
      %p204 = pneg %p121
      %p205 = pneg %p118
      %p206 = pneg %p147
      %p207 = pneg %p144
      %p208 = scmp.lt.s32.totalorder %s16, 1
      %s209 = scalar_select %p208, %s16, 1
      %s210 = smul.addr %s209, 8
      %s211 = scalar_lea.vmem %s5, %s210
      %p212 = scmp.lt.s32.totalorder %s16, 1
      %s213 = scalar_select %p212, %s16, 1
      %s214 = smul.addr %s213, 8
      %s215 = scalar_lea.vmem %s0, %s214
      %p216 = scmp.lt.s32.totalorder %s16, 1
      %s217 = scalar_select %p216, %s16, 1
      %s218 = smul.addr %s217, 8
      %s219 = scalar_lea.vmem %s5, %s218
      %v220 = vld [vmem:[%s215] sm:$0xff]
      %v221 = vld [vmem:[%s1] sm:$0x1]
      %v222 = vld [vmem:[%s2] sm:$0x1]
      %vm223 = vcmask 261120
      %v224 = vsel %vm223, %v220, 0.0
      %225 = vadd.xlane.f32.xlu0 %v224
      %v226 = vpop.xlane.xlu0 %225
      %v227 = vrcp.pop 32.0
      %v228 = vmul.f32 %v226, %v227
      %v229 = vsub.f32 %v220, %v228
      %v230 = vmul.f32 %v229, %v229
      %v231 = vsel %vm223, %v230, 0.0
      %232 = vadd.xlane.f32.xlu0 %v231
      %v233 = vpop.xlane.xlu0 %232
      %v234 = vmul.f32 %v233, %v227
      %v235 = vadd.f32 %v234, 1e-05
      %v236 = vrsqrt.pop %v235
      %v237 = vmul.f32 %v229, %v236
      %v239 = vlaneseq
      %v240 = vshrl.u32 %v239, 7
      %v241 = vsub.s32 0, %v240
      %v242 = vrot.slane %v221, %v241
      %v244 = vmul.f32 %v237, %v242
      %v246 = vlaneseq
      %v247 = vshrl.u32 %v246, 7
      %v248 = vsub.s32 0, %v247
      %v249 = vrot.slane %v222, %v248
      %v251 = vadd.f32 %v244, %v249
      %v252 = vlaneseq
      %v253 = vshrl.u32 %v252, 7
      %v254 = vlaneseq
      %v255 = vand.u32 %v254, 127
      %v256 = vsub.s32 %v253, 1
      %vm257 = vcmp.eq.s32.totalorder %v255, %v256
      %v258 = vsel %vm257, 1, 0
      %v259 = vcvt.s32.f32 %v258
      %v260 = vadd.s32 %v253, 1
      %vm261 = vcmp.eq.s32.totalorder %v255, %v260
      %v262 = vsel %vm261, 1, 0
      %v263 = vcvt.s32.f32 %v262
      %vm264 = vcmask 64512
      %v266 = vsel %vm264, %v259, 0
      %268 = vmatprep.subr.mxu0 0.0
      %269 = vmatpush1.msra.mxu0 %v251
      %270 = vmatprep.subr.mxu0 0.0
      %271 = vmatpush1.msra.mxu0 0.0
      %272 = vmatprep.subr.mxu0 0.0
      %273 = vmatpush1.msra.mxu0 0.0
      %274 = vmatprep.subr.mxu0 0.0
      %275 = vmatpush1.msra.mxu0 0.0
      %276 = vmatprep.subr.mxu0 0.0
      %277 = vmatpush1.msra.mxu0 0.0
      %278 = vmatprep.subr.mxu0 0.0
      %279 = vmatpush1.msra.mxu0 0.0
      %280 = vmatprep.subr.mxu0 0.0
      %281 = vmatpush1.msra.mxu0 0.0
      %282 = vmatprep.subr.mxu0 0.0
      %283 = vmatpush1.msra.mxu0 0.0
      %284 = vmatprep.subr.mxu0 0.0
      %285 = vmatpush1.msra.mxu0 0.0
      %286 = vmatprep.subr.mxu0 0.0
      %287 = vmatpush1.msra.mxu0 0.0
      %288 = vmatprep.subr.mxu0 0.0
      %289 = vmatpush1.msra.mxu0 0.0
      %290 = vmatprep.subr.mxu0 0.0
      %291 = vmatpush1.msra.mxu0 0.0
      %292 = vmatprep.subr.mxu0 0.0
      %293 = vmatpush1.msra.mxu0 0.0
      %294 = vmatprep.subr.mxu0 0.0
      %295 = vmatpush1.msra.mxu0 0.0
      %296 = vmatprep.subr.mxu0 0.0
      %297 = vmatpush1.msra.mxu0 0.0
      %298 = vmatprep.subr.mxu0 0.0
      %299 = vmatpush1.msra.mxu0 0.0
      %300 = vmatprep.subr.mxu0 0.0
      %301 = vmatpush1.msra.mxu0 0.0
      %302 = vmatprep.subr.mxu0 0.0
      %303 = vmatpush1.msra.mxu0 0.0
      %304 = vmatprep.subr.mxu0 0.0
      %305 = vmatpush1.msra.mxu0 0.0
      %306 = vmatprep.subr.mxu0 0.0
      %307 = vmatpush1.msra.mxu0 0.0
      %308 = vmatprep.subr.mxu0 0.0
      %309 = vmatpush1.msra.mxu0 0.0
      %310 = vmatprep.subr.mxu0 0.0
      %311 = vmatpush1.msra.mxu0 0.0
      %312 = vmatprep.subr.mxu0 0.0
      %313 = vmatpush1.msra.mxu0 0.0
      %314 = vmatprep.subr.mxu0 0.0
      %315 = vmatpush1.msra.mxu0 0.0
      %316 = vmatprep.subr.mxu0 0.0
      %317 = vmatpush1.msra.mxu0 0.0
      %318 = vmatprep.subr.mxu0 0.0
      %319 = vmatpush1.msra.mxu0 0.0
      %320 = vmatprep.subr.mxu0 0.0
      %321 = vmatpush1.msra.mxu0 0.0
      %322 = vmatprep.subr.mxu0 0.0
      %323 = vmatpush1.msra.mxu0 0.0
      %324 = vmatprep.subr.mxu0 0.0
      %325 = vmatpush1.msra.mxu0 0.0
      %326 = vmatprep.subr.mxu0 0.0
      %327 = vmatpush1.msra.mxu0 0.0
      %328 = vmatprep.subr.mxu0 0.0
      %329 = vmatpush1.msra.mxu0 0.0
      %330 = vmatprep.subr.mxu0 0.0
      %331 = vmatpush1.msra.mxu0 0.0
      %332 = vmatprep.mubr.f32.mxu0 0.0
      %333 = vmatmul.mubr.f32.gmra.mrb[0].mxu0 %v266
      %v334 = vpop.f32.mrb[0].mxu0
      %v335 = vadd.f32 0.0, %v334
      %v336 = vpop.f32.mrb[0].mxu0
      %337 = vdwg.mxu0
      %v339 = vsel %vm264, %v263, 0
      %341 = vmatprep.subr.mxu0 0.0
      %342 = vmatpush1.msra.mxu0 %v251
      %343 = vmatprep.subr.mxu0 0.0
      %344 = vmatpush1.msra.mxu0 0.0
      %345 = vmatprep.subr.mxu0 0.0
      %346 = vmatpush1.msra.mxu0 0.0
      %347 = vmatprep.subr.mxu0 0.0
      %348 = vmatpush1.msra.mxu0 0.0
      %349 = vmatprep.subr.mxu0 0.0
      %350 = vmatpush1.msra.mxu0 0.0
      %351 = vmatprep.subr.mxu0 0.0
      %352 = vmatpush1.msra.mxu0 0.0
      %353 = vmatprep.subr.mxu0 0.0
      %354 = vmatpush1.msra.mxu0 0.0
      %355 = vmatprep.subr.mxu0 0.0
      %356 = vmatpush1.msra.mxu0 0.0
      %357 = vmatprep.subr.mxu0 0.0
      %358 = vmatpush1.msra.mxu0 0.0
      %359 = vmatprep.subr.mxu0 0.0
      %360 = vmatpush1.msra.mxu0 0.0
      %361 = vmatprep.subr.mxu0 0.0
      %362 = vmatpush1.msra.mxu0 0.0
      %363 = vmatprep.subr.mxu0 0.0
      %364 = vmatpush1.msra.mxu0 0.0
      %365 = vmatprep.subr.mxu0 0.0
      %366 = vmatpush1.msra.mxu0 0.0
      %367 = vmatprep.subr.mxu0 0.0
      %368 = vmatpush1.msra.mxu0 0.0
      %369 = vmatprep.subr.mxu0 0.0
      %370 = vmatpush1.msra.mxu0 0.0
      %371 = vmatprep.subr.mxu0 0.0
      %372 = vmatpush1.msra.mxu0 0.0
      %373 = vmatprep.subr.mxu0 0.0
      %374 = vmatpush1.msra.mxu0 0.0
      %375 = vmatprep.subr.mxu0 0.0
      %376 = vmatpush1.msra.mxu0 0.0
      %377 = vmatprep.subr.mxu0 0.0
      %378 = vmatpush1.msra.mxu0 0.0
      %379 = vmatprep.subr.mxu0 0.0
      %380 = vmatpush1.msra.mxu0 0.0
      %381 = vmatprep.subr.mxu0 0.0
      %382 = vmatpush1.msra.mxu0 0.0
      %383 = vmatprep.subr.mxu0 0.0
      %384 = vmatpush1.msra.mxu0 0.0
      %385 = vmatprep.subr.mxu0 0.0
      %386 = vmatpush1.msra.mxu0 0.0
      %387 = vmatprep.subr.mxu0 0.0
      %388 = vmatpush1.msra.mxu0 0.0
      %389 = vmatprep.subr.mxu0 0.0
      %390 = vmatpush1.msra.mxu0 0.0
      %391 = vmatprep.subr.mxu0 0.0
      %392 = vmatpush1.msra.mxu0 0.0
      %393 = vmatprep.subr.mxu0 0.0
      %394 = vmatpush1.msra.mxu0 0.0
      %395 = vmatprep.subr.mxu0 0.0
      %396 = vmatpush1.msra.mxu0 0.0
      %397 = vmatprep.subr.mxu0 0.0
      %398 = vmatpush1.msra.mxu0 0.0
      %399 = vmatprep.subr.mxu0 0.0
      %400 = vmatpush1.msra.mxu0 0.0
      %401 = vmatprep.subr.mxu0 0.0
      %402 = vmatpush1.msra.mxu0 0.0
      %403 = vmatprep.subr.mxu0 0.0
      %404 = vmatpush1.msra.mxu0 0.0
      %405 = vmatprep.mubr.f32.mxu0 0.0
      %406 = vmatmul.mubr.f32.gmra.mrb[0].mxu0 %v339
      %v407 = vpop.f32.mrb[0].mxu0
      %v408 = vadd.f32 0.0, %v407
      %v409 = vpop.f32.mrb[0].mxu0
      %410 = vdwg.mxu0
      %v411 = vld [vmem:[%s3] sm:$0xff]
      %v412 = vld [vmem:[%s3 + $0x8] sm:$0xff]
      %v413 = vld [vmem:[%s3 + $0x10] sm:$0xff]
      %v414 = vld [vmem:[%s3 + $0x18] sm:$0xff]
      %s415 = scalar_lea.vmem %s3, 32
      %v416 = vld [vmem:[%s415] sm:$0xff]
      %v417 = vld [vmem:[%s415 + $0x8] sm:$0xff]
      %v418 = vld [vmem:[%s415 + $0x10] sm:$0xff]
      %v419 = vld [vmem:[%s415 + $0x18] sm:$0xff]
      %v421 = vsel %vm223, %v251, 0
      %423 = vmatprep.subr.mxu0 0.0
      %424 = vmatpush1.msra.mxu0 %v416
      %425 = vmatprep.subr.mxu0 0.0
      %426 = vmatpush1.msra.mxu0 %v417
      %427 = vmatprep.subr.mxu0 0.0
      %428 = vmatpush1.msra.mxu0 %v418
      %429 = vmatprep.subr.mxu0 0.0
      %430 = vmatpush1.msra.mxu0 %v419
      %431 = vmatprep.subr.mxu0 0.0
      %432 = vmatpush1.msra.mxu0 0.0
      %433 = vmatprep.subr.mxu0 0.0
      %434 = vmatpush1.msra.mxu0 0.0
      %435 = vmatprep.subr.mxu0 0.0
      %436 = vmatpush1.msra.mxu0 0.0
      %437 = vmatprep.subr.mxu0 0.0
      %438 = vmatpush1.msra.mxu0 0.0
      %439 = vmatprep.subr.mxu0 0.0
      %440 = vmatpush1.msra.mxu0 0.0
      %441 = vmatprep.subr.mxu0 0.0
      %442 = vmatpush1.msra.mxu0 0.0
      %443 = vmatprep.subr.mxu0 0.0
      %444 = vmatpush1.msra.mxu0 0.0
      %445 = vmatprep.subr.mxu0 0.0
      %446 = vmatpush1.msra.mxu0 0.0
      %447 = vmatprep.subr.mxu0 0.0
      %448 = vmatpush1.msra.mxu0 0.0
      %449 = vmatprep.subr.mxu0 0.0
      %450 = vmatpush1.msra.mxu0 0.0
      %451 = vmatprep.subr.mxu0 0.0
      %452 = vmatpush1.msra.mxu0 0.0
      %453 = vmatprep.subr.mxu0 0.0
      %454 = vmatpush1.msra.mxu0 0.0
      %455 = vmatprep.subr.mxu0 0.0
      %456 = vmatpush1.msra.mxu0 0.0
      %457 = vmatprep.subr.mxu0 0.0
      %458 = vmatpush1.msra.mxu0 0.0
      %459 = vmatprep.subr.mxu0 0.0
      %460 = vmatpush1.msra.mxu0 0.0
      %461 = vmatprep.subr.mxu0 0.0
      %462 = vmatpush1.msra.mxu0 0.0
      %463 = vmatprep.subr.mxu0 0.0
      %464 = vmatpush1.msra.mxu0 0.0
      %465 = vmatprep.subr.mxu0 0.0
      %466 = vmatpush1.msra.mxu0 0.0
      %467 = vmatprep.subr.mxu0 0.0
      %468 = vmatpush1.msra.mxu0 0.0
      %469 = vmatprep.subr.mxu0 0.0
      %470 = vmatpush1.msra.mxu0 0.0
      %471 = vmatprep.subr.mxu0 0.0
      %472 = vmatpush1.msra.mxu0 0.0
      %473 = vmatprep.subr.mxu0 0.0
      %474 = vmatpush1.msra.mxu0 0.0
      %475 = vmatprep.subr.mxu0 0.0
      %476 = vmatpush1.msra.mxu0 0.0
      %477 = vmatprep.subr.mxu0 0.0
      %478 = vmatpush1.msra.mxu0 0.0
      %479 = vmatprep.subr.mxu0 0.0
      %480 = vmatpush1.msra.mxu0 0.0
      %481 = vmatprep.subr.mxu0 0.0
      %482 = vmatpush1.msra.mxu0 0.0
      %483 = vmatprep.subr.mxu0 0.0
      %484 = vmatpush1.msra.mxu0 0.0
      %485 = vmatprep.subr.mxu0 0.0
      %486 = vmatpush1.msra.mxu0 0.0
      %487 = vmatprep.mubr.f32.mxu0 0.0
      %488 = vmatmul.mubr.f32.gmra.mrb[0].mxu0 %v421
      %v489 = vpop.f32.mrb[0].mxu0
      %v490 = vadd.f32 0.0, %v489
      %v491 = vpop.f32.mrb[0].mxu0
      %492 = vdwg.mxu0
      %v494 = vsel %vm223, %v335, 0
      %496 = vmatprep.subr.mxu0 0.0
      %497 = vmatpush1.msra.mxu0 %v411
      %498 = vmatprep.subr.mxu0 0.0
      %499 = vmatpush1.msra.mxu0 %v412
      %500 = vmatprep.subr.mxu0 0.0
      %501 = vmatpush1.msra.mxu0 %v413
      %502 = vmatprep.subr.mxu0 0.0
      %503 = vmatpush1.msra.mxu0 %v414
      %504 = vmatprep.subr.mxu0 0.0
      %505 = vmatpush1.msra.mxu0 0.0
      %506 = vmatprep.subr.mxu0 0.0
      %507 = vmatpush1.msra.mxu0 0.0
      %508 = vmatprep.subr.mxu0 0.0
      %509 = vmatpush1.msra.mxu0 0.0
      %510 = vmatprep.subr.mxu0 0.0
      %511 = vmatpush1.msra.mxu0 0.0
      %512 = vmatprep.subr.mxu0 0.0
      %513 = vmatpush1.msra.mxu0 0.0
      %514 = vmatprep.subr.mxu0 0.0
      %515 = vmatpush1.msra.mxu0 0.0
      %516 = vmatprep.subr.mxu0 0.0
      %517 = vmatpush1.msra.mxu0 0.0
      %518 = vmatprep.subr.mxu0 0.0
      %519 = vmatpush1.msra.mxu0 0.0
      %520 = vmatprep.subr.mxu0 0.0
      %521 = vmatpush1.msra.mxu0 0.0
      %522 = vmatprep.subr.mxu0 0.0
      %523 = vmatpush1.msra.mxu0 0.0
      %524 = vmatprep.subr.mxu0 0.0
      %525 = vmatpush1.msra.mxu0 0.0
      %526 = vmatprep.subr.mxu0 0.0
      %527 = vmatpush1.msra.mxu0 0.0
      %528 = vmatprep.subr.mxu0 0.0
      %529 = vmatpush1.msra.mxu0 0.0
      %530 = vmatprep.subr.mxu0 0.0
      %531 = vmatpush1.msra.mxu0 0.0
      %532 = vmatprep.subr.mxu0 0.0
      %533 = vmatpush1.msra.mxu0 0.0
      %534 = vmatprep.subr.mxu0 0.0
      %535 = vmatpush1.msra.mxu0 0.0
      %536 = vmatprep.subr.mxu0 0.0
      %537 = vmatpush1.msra.mxu0 0.0
      %538 = vmatprep.subr.mxu0 0.0
      %539 = vmatpush1.msra.mxu0 0.0
      %540 = vmatprep.subr.mxu0 0.0
      %541 = vmatpush1.msra.mxu0 0.0
      %542 = vmatprep.subr.mxu0 0.0
      %543 = vmatpush1.msra.mxu0 0.0
      %544 = vmatprep.subr.mxu0 0.0
      %545 = vmatpush1.msra.mxu0 0.0
      %546 = vmatprep.subr.mxu0 0.0
      %547 = vmatpush1.msra.mxu0 0.0
      %548 = vmatprep.subr.mxu0 0.0
      %549 = vmatpush1.msra.mxu0 0.0
      %550 = vmatprep.subr.mxu0 0.0
      %551 = vmatpush1.msra.mxu0 0.0
      %552 = vmatprep.subr.mxu0 0.0
      %553 = vmatpush1.msra.mxu0 0.0
      %554 = vmatprep.subr.mxu0 0.0
      %555 = vmatpush1.msra.mxu0 0.0
      %556 = vmatprep.subr.mxu0 0.0
      %557 = vmatpush1.msra.mxu0 0.0
      %558 = vmatprep.subr.mxu0 0.0
      %559 = vmatpush1.msra.mxu0 0.0
      %560 = vmatprep.mubr.f32.mxu0 0.0
      %561 = vmatmul.mubr.f32.gmra.mrb[0].mxu0 %v494
      %v562 = vpop.f32.mrb[0].mxu0
      %v563 = vadd.f32 %v490, %v562
      %v564 = vpop.f32.mrb[0].mxu0
      %565 = vdwg.mxu0
      %s566 = scalar_lea.vmem %s3, 64
      %v567 = vld [vmem:[%s566] sm:$0xff]
      %v568 = vld [vmem:[%s566 + $0x8] sm:$0xff]
      %v569 = vld [vmem:[%s566 + $0x10] sm:$0xff]
      %v570 = vld [vmem:[%s566 + $0x18] sm:$0xff]
      %v572 = vsel %vm223, %v408, 0
      %574 = vmatprep.subr.mxu0 0.0
      %575 = vmatpush1.msra.mxu0 %v567
      %576 = vmatprep.subr.mxu0 0.0
      %577 = vmatpush1.msra.mxu0 %v568
      %578 = vmatprep.subr.mxu0 0.0
      %579 = vmatpush1.msra.mxu0 %v569
      %580 = vmatprep.subr.mxu0 0.0
      %581 = vmatpush1.msra.mxu0 %v570
      %582 = vmatprep.subr.mxu0 0.0
      %583 = vmatpush1.msra.mxu0 0.0
      %584 = vmatprep.subr.mxu0 0.0
      %585 = vmatpush1.msra.mxu0 0.0
      %586 = vmatprep.subr.mxu0 0.0
      %587 = vmatpush1.msra.mxu0 0.0
      %588 = vmatprep.subr.mxu0 0.0
      %589 = vmatpush1.msra.mxu0 0.0
      %590 = vmatprep.subr.mxu0 0.0
      %591 = vmatpush1.msra.mxu0 0.0
      %592 = vmatprep.subr.mxu0 0.0
      %593 = vmatpush1.msra.mxu0 0.0
      %594 = vmatprep.subr.mxu0 0.0
      %595 = vmatpush1.msra.mxu0 0.0
      %596 = vmatprep.subr.mxu0 0.0
      %597 = vmatpush1.msra.mxu0 0.0
      %598 = vmatprep.subr.mxu0 0.0
      %599 = vmatpush1.msra.mxu0 0.0
      %600 = vmatprep.subr.mxu0 0.0
      %601 = vmatpush1.msra.mxu0 0.0
      %602 = vmatprep.subr.mxu0 0.0
      %603 = vmatpush1.msra.mxu0 0.0
      %604 = vmatprep.subr.mxu0 0.0
      %605 = vmatpush1.msra.mxu0 0.0
      %606 = vmatprep.subr.mxu0 0.0
      %607 = vmatpush1.msra.mxu0 0.0
      %608 = vmatprep.subr.mxu0 0.0
      %609 = vmatpush1.msra.mxu0 0.0
      %610 = vmatprep.subr.mxu0 0.0
      %611 = vmatpush1.msra.mxu0 0.0
      %612 = vmatprep.subr.mxu0 0.0
      %613 = vmatpush1.msra.mxu0 0.0
      %614 = vmatprep.subr.mxu0 0.0
      %615 = vmatpush1.msra.mxu0 0.0
      %616 = vmatprep.subr.mxu0 0.0
      %617 = vmatpush1.msra.mxu0 0.0
      %618 = vmatprep.subr.mxu0 0.0
      %619 = vmatpush1.msra.mxu0 0.0
      %620 = vmatprep.subr.mxu0 0.0
      %621 = vmatpush1.msra.mxu0 0.0
      %622 = vmatprep.subr.mxu0 0.0
      %623 = vmatpush1.msra.mxu0 0.0
      %624 = vmatprep.subr.mxu0 0.0
      %625 = vmatpush1.msra.mxu0 0.0
      %626 = vmatprep.subr.mxu0 0.0
      %627 = vmatpush1.msra.mxu0 0.0
      %628 = vmatprep.subr.mxu0 0.0
      %629 = vmatpush1.msra.mxu0 0.0
      %630 = vmatprep.subr.mxu0 0.0
      %631 = vmatpush1.msra.mxu0 0.0
      %632 = vmatprep.subr.mxu0 0.0
      %633 = vmatpush1.msra.mxu0 0.0
      %634 = vmatprep.subr.mxu0 0.0
      %635 = vmatpush1.msra.mxu0 0.0
      %636 = vmatprep.subr.mxu0 0.0
      %637 = vmatpush1.msra.mxu0 0.0
      %638 = vmatprep.mubr.f32.mxu0 0.0
      %639 = vmatmul.mubr.f32.gmra.mrb[0].mxu0 %v572
      %v640 = vpop.f32.mrb[0].mxu0
      %v641 = vadd.f32 0.0, %v640
      %v642 = vpop.f32.mrb[0].mxu0
      %643 = vdwg.mxu0
      %v644 = vadd.f32 %v563, %v641
      %v645 = vld [vmem:[%s4] sm:$0x1]
      %v647 = vlaneseq
      %v648 = vshrl.u32 %v647, 7
      %v649 = vsub.s32 0, %v648
      %v650 = vrot.slane %v645, %v649
      %v652 = vadd.f32 %v644, %v650
      %vm653 = vcmask 785408
      %654 = vst.msk [vmem:[%s219] sm:$0xff] %vm653, %v652
      %p655 = scmp.lt.s32.totalorder %s16, 1
      %s656 = scalar_select %p655, %s16, 1
      %s657 = smul.addr %s656, 8
      %s658 = scalar_lea.vmem %s5, %s657
      // Predicated region
      $region41: #{_encoder_forward.19} parent=39 // pred_check
        %p659 = pneg %p144
      $region42: #{_encoder_forward.19} parent=39 // pred_check_branch
        %661 = sbr.rel (%p659) target = $region44
      $region43: #{_encoder_forward.19} parent=39 // pred_region
        _
      $region44: #{_encoder_forward.19} parent=39 // pred_fallthru
        _
    $region40: #{_encoder_forward.19} parent=5 // pred_fallthru
      _
    %p662 = scmp.le.s32.totalorder 2, %s11
    // Predicated region
    $region45: #{_encoder_forward.19} parent=5 // pred_check
      %p663 = pneg %p662
    $region46: #{_encoder_forward.19} parent=5 // pred_check_branch
      %665 = sbr.rel (%p663) target = $region48
    $region47: #{_encoder_forward.19} parent=5 // pred_region
      %s666 = ssub.s32 %s11, 2
      // Predicated region
      $region49: #{_encoder_forward.19} parent=47 // pred_check
        %p667 = pneg %p150
      $region50: #{_encoder_forward.19} parent=47 // pred_check_branch
        %669 = sbr.rel (%p667) target = $region52
      $region51: #{_encoder_forward.19} parent=47 // pred_region
        %p670 = scmp.lt.s32.totalorder %s17, 1
        %s671 = scalar_select %p670, %s17, 1
        %s672 = smul.addr %s671, 8
        %s673 = scalar_lea.vmem %s5, %s672
      $region52: #{_encoder_forward.19} parent=47 // pred_fallthru
        _
    $region48: #{_encoder_forward.19} parent=5 // pred_fallthru
      _
  $region6: #{_encoder_forward.19} parent=0 // loop_footer
    %s15 = sadd.s32 1, %s11
  $region7: #{_encoder_forward.19} parent=0 // loop_footer_branch
    %10 = sbr.rel target = $region3
  $region8: #{_encoder_forward.19} parent=0 // loop_exit
    _

// kernel: _encoder_forward.20
$region0: #{_encoder_forward.20}
  #allocation0 [shape = 'u32[]', space=smem, size = 0x4, offset = 0x4, fixed_abs, tag = 'smem constant byte address 0x4 - core index']
  #allocation1 [shape = 'u32[144,128]{1,0:T(1,128)}', space=vmem, size = 0x12000, scoped, tag = 'internal scratch']
  %s0 = inlined_call_operand.vmem [shape: f32[2,8,32], index: 0, kind: input, shape index: {}]
  %s1 = inlined_call_operand.vmem [shape: f32[2,8,32], index: 1, kind: input, shape index: {}]
  %s2 = inlined_call_operand.vmem [shape: f32[2,8,32], index: 2, kind: input, shape index: {}]
  %s3 = inlined_call_operand.vmem [shape: f32[2,8,32], index: 3, kind: output, shape index: {}]
  %s4 = sld [smem:[#allocation0]]
  $region45: #{_encoder_forward.20} parent=0
    _
  %s6 = ssub.s32 1, %s4
  %s7 = scalar_select 0, %s6, %s4
  loop: start=0, step=1, limit=4
  $region2: #{_encoder_forward.20} parent=0 // loop_pre_header
    _
  $region3: #{_encoder_forward.20} parent=0 // loop_header
    %s9 = sphi 0, %s13
    %p10 = scmp.ge.s32.totalorder %s9, 4
    %s19 = sphi 0, %s21
    %s22 = sphi 0, %s19
    %s23 = sphi 0, %s22
    %s39 = sphi 0, %s23
    %s45 = sphi 0, %s47
    %s48 = sphi 0, %s45
    %s49 = sphi 0, %s48
    %s65 = sphi 0, %s49
    %s71 = sphi 0, %s73
    %s74 = sphi 0, %s71
    %s75 = sphi 0, %s74
    %s91 = sphi 0, %s75
    %s97 = sphi 0, %s99
    %s100 = sphi 0, %s97
    %s101 = sphi 0, %s100
    %s117 = sphi 0, %s101
  $region4: #{_encoder_forward.20} parent=0 // loop_header_branch
    %12 = sbr.rel (%p10) target = $region8
  $region5: #{_encoder_forward.20} parent=0 // loop_body
    %s14 = ssub.s32 %s9, 1
    %s15 = ssub.s32 %s9, 2
    %s16 = sadd.s32 %s9, 1
    %s17 = ssub.s32 %s9, %s16
    %p18 = scmp.eq.s32.totalorder %s17, 0
    %s20 = sadd.s32 %s19, 1
    %s21 = scalar_select %p18, %s19, %s20
    %p24 = pneg %p18
    %p25 = scmp.eq.s32.totalorder %s9, 1
    %p26 = por %p24, %p25
    %p27 = scmp.ne.s32.totalorder %s19, %s22
    %p28 = scmp.eq.s32.totalorder %s9, 0
    %p29 = por %p27, %p28
    %p30 = scmp.ne.s32.totalorder %s19, %s22
    %p31 = scmp.eq.s32.totalorder %s14, 1
    %p32 = por %p30, %p31
    %p33 = scmp.ne.s32.totalorder %s22, %s23
    %p34 = scmp.eq.s32.totalorder %s14, 0
    %p35 = por %p33, %p34
    %p36 = scmp.ne.s32.totalorder %s22, %s23
    %p37 = scmp.eq.s32.totalorder %s15, 1
    %p38 = por %p36, %p37
    %p40 = scmp.ne.s32.totalorder %s23, %s39
    %p41 = scmp.eq.s32.totalorder %s15, 0
    %p42 = por %p40, %p41
    %s43 = ssub.s32 %s9, %s16
    %p44 = scmp.eq.s32.totalorder %s43, 0
    %s46 = sadd.s32 %s45, 1
    %s47 = scalar_select %p44, %s45, %s46
    %p50 = pneg %p44
    %p51 = scmp.eq.s32.totalorder %s9, 1
    %p52 = por %p50, %p51
    %p53 = scmp.ne.s32.totalorder %s45, %s48
    %p54 = scmp.eq.s32.totalorder %s9, 0
    %p55 = por %p53, %p54
    %p56 = scmp.ne.s32.totalorder %s45, %s48
    %p57 = scmp.eq.s32.totalorder %s14, 1
    %p58 = por %p56, %p57
    %p59 = scmp.ne.s32.totalorder %s48, %s49
    %p60 = scmp.eq.s32.totalorder %s14, 0
    %p61 = por %p59, %p60
    %p62 = scmp.ne.s32.totalorder %s48, %s49
    %p63 = scmp.eq.s32.totalorder %s15, 1
    %p64 = por %p62, %p63
    %p66 = scmp.ne.s32.totalorder %s49, %s65
    %p67 = scmp.eq.s32.totalorder %s15, 0
    %p68 = por %p66, %p67
    %s69 = ssub.s32 %s9, %s16
    %p70 = scmp.eq.s32.totalorder %s69, 0
    %s72 = sadd.s32 %s71, 1
    %s73 = scalar_select %p70, %s71, %s72
    %p76 = pneg %p70
    %p77 = scmp.eq.s32.totalorder %s9, 1
    %p78 = por %p76, %p77
    %p79 = scmp.ne.s32.totalorder %s71, %s74
    %p80 = scmp.eq.s32.totalorder %s9, 0
    %p81 = por %p79, %p80
    %p82 = scmp.ne.s32.totalorder %s71, %s74
    %p83 = scmp.eq.s32.totalorder %s14, 1
    %p84 = por %p82, %p83
    %p85 = scmp.ne.s32.totalorder %s74, %s75
    %p86 = scmp.eq.s32.totalorder %s14, 0
    %p87 = por %p85, %p86
    %p88 = scmp.ne.s32.totalorder %s74, %s75
    %p89 = scmp.eq.s32.totalorder %s15, 1
    %p90 = por %p88, %p89
    %p92 = scmp.ne.s32.totalorder %s75, %s91
    %p93 = scmp.eq.s32.totalorder %s15, 0
    %p94 = por %p92, %p93
    %s95 = ssub.s32 %s9, %s16
    %p96 = scmp.eq.s32.totalorder %s95, 0
    %s98 = sadd.s32 %s97, 1
    %s99 = scalar_select %p96, %s97, %s98
    %p102 = pneg %p96
    %p103 = scmp.eq.s32.totalorder %s9, 1
    %p104 = por %p102, %p103
    %p105 = scmp.ne.s32.totalorder %s97, %s100
    %p106 = scmp.eq.s32.totalorder %s9, 0
    %p107 = por %p105, %p106
    %p108 = scmp.ne.s32.totalorder %s97, %s100
    %p109 = scmp.eq.s32.totalorder %s14, 1
    %p110 = por %p108, %p109
    %p111 = scmp.ne.s32.totalorder %s100, %s101
    %p112 = scmp.eq.s32.totalorder %s14, 0
    %p113 = por %p111, %p112
    %p114 = scmp.ne.s32.totalorder %s100, %s101
    %p115 = scmp.eq.s32.totalorder %s15, 1
    %p116 = por %p114, %p115
    %p118 = scmp.ne.s32.totalorder %s101, %s117
    %p119 = scmp.eq.s32.totalorder %s15, 0
    %p120 = por %p118, %p119
    %p121 = scmp.le.s32.totalorder 1, %s9
    %p122 = scmp.lt.s32.totalorder %s9, 3
    %p123 = pnand %p121, %p122
    %p124 = pneg %p123
    // Predicated region
    $region9: #{_encoder_forward.20} parent=5 // pred_check
      _
    $region10: #{_encoder_forward.20} parent=5 // pred_check_branch
      %126 = sbr.rel (%p123) target = $region12
    $region11: #{_encoder_forward.20} parent=5 // pred_region
      %s127 = ssub.s32 %s9, 1
    $region12: #{_encoder_forward.20} parent=5 // pred_fallthru
      _
    %p128 = scmp.lt.s32.totalorder %s9, 2
    // Predicated region
    $region13: #{_encoder_forward.20} parent=5 // pred_check
      %p129 = pneg %p128
    $region14: #{_encoder_forward.20} parent=5 // pred_check_branch
      %131 = sbr.rel (%p129) target = $region16
    $region15: #{_encoder_forward.20} parent=5 // pred_region
      // Predicated region
      $region17: #{_encoder_forward.20} parent=15 // pred_check
        %p132 = pneg %p29
      $region18: #{_encoder_forward.20} parent=15 // pred_check_branch
        %134 = sbr.rel (%p132) target = $region20
      $region19: #{_encoder_forward.20} parent=15 // pred_region
        %p135 = scmp.lt.s32.totalorder %s9, 1
        %s136 = scalar_select %p135, %s9, 1
        %s137 = smul.addr %s136, 8
        %s138 = scalar_lea.vmem %s0, %s137
      $region20: #{_encoder_forward.20} parent=15 // pred_fallthru
        _
      // Predicated region
      $region21: #{_encoder_forward.20} parent=15 // pred_check
        %p139 = pneg %p55
      $region22: #{_encoder_forward.20} parent=15 // pred_check_branch
        %141 = sbr.rel (%p139) target = $region24
      $region23: #{_encoder_forward.20} parent=15 // pred_region
        %p142 = scmp.lt.s32.totalorder %s9, 1
        %s143 = scalar_select %p142, %s9, 1
        %s144 = smul.addr %s143, 8
        %s145 = scalar_lea.vmem %s1, %s144
      $region24: #{_encoder_forward.20} parent=15 // pred_fallthru
        _
      // Predicated region
      $region25: #{_encoder_forward.20} parent=15 // pred_check
        %p146 = pneg %p81
      $region26: #{_encoder_forward.20} parent=15 // pred_check_branch
        %148 = sbr.rel (%p146) target = $region28
      $region27: #{_encoder_forward.20} parent=15 // pred_region
        %p149 = scmp.lt.s32.totalorder %s9, 1
        %s150 = scalar_select %p149, %s9, 1
        %s151 = smul.addr %s150, 8
        %s152 = scalar_lea.vmem %s2, %s151
      $region28: #{_encoder_forward.20} parent=15 // pred_fallthru
        _
    $region16: #{_encoder_forward.20} parent=5 // pred_fallthru
      _
    %p153 = scmp.le.s32.totalorder 1, %s9
    %p154 = scmp.lt.s32.totalorder %s9, 3
    %p155 = pnand %p153, %p154
    %p156 = pneg %p155
    // Predicated region
    $region29: #{_encoder_forward.20} parent=5 // pred_check
      _
    $region30: #{_encoder_forward.20} parent=5 // pred_check_branch
      %158 = sbr.rel (%p155) target = $region32
    $region31: #{_encoder_forward.20} parent=5 // pred_region
      %s159 = ssub.s32 %s9, 1
      %p160 = scmp.lt.s32.totalorder %s14, 1
      %s161 = scalar_select %p160, %s14, 1
      %s162 = smul.addr %s161, 8
      %s163 = scalar_lea.vmem %s0, %s162
      %p164 = pneg %p35
      %p165 = pneg %p32
      %p166 = scmp.lt.s32.totalorder %s14, 1
      %s167 = scalar_select %p166, %s14, 1
      %s168 = smul.addr %s167, 8
      %s169 = scalar_lea.vmem %s1, %s168
      %p170 = pneg %p61
      %p171 = pneg %p58
      %p172 = scmp.lt.s32.totalorder %s14, 1
      %s173 = scalar_select %p172, %s14, 1
      %s174 = smul.addr %s173, 8
      %s175 = scalar_lea.vmem %s2, %s174
      %p176 = pneg %p87
      %p177 = pneg %p84
      %p178 = pneg %p113
      %p179 = pneg %p110
      %p180 = scmp.lt.s32.totalorder %s14, 1
      %s181 = scalar_select %p180, %s14, 1
      %s182 = smul.addr %s181, 8
      %s183 = scalar_lea.vmem %s3, %s182
      %p184 = scmp.lt.s32.totalorder %s14, 1
      %s185 = scalar_select %p184, %s14, 1
      %s186 = smul.addr %s185, 8
      %s187 = scalar_lea.vmem %s0, %s186
      %p188 = scmp.lt.s32.totalorder %s14, 1
      %s189 = scalar_select %p188, %s14, 1
      %s190 = smul.addr %s189, 8
      %s191 = scalar_lea.vmem %s1, %s190
      %p192 = scmp.lt.s32.totalorder %s14, 1
      %s193 = scalar_select %p192, %s14, 1
      %s194 = smul.addr %s193, 8
      %s195 = scalar_lea.vmem %s2, %s194
      %p196 = scmp.lt.s32.totalorder %s14, 1
      %s197 = scalar_select %p196, %s14, 1
      %s198 = smul.addr %s197, 8
      %s199 = scalar_lea.vmem %s3, %s198
      %v200 = vld [vmem:[%s187] sm:$0xff]
      %v201 = vld [vmem:[%s191] sm:$0xff]
      %v202 = vld [vmem:[%s195] sm:$0xff]
      %vm203 = vcmask 64512
      %v205 = vsel %vm203, %v200, 0
      %v208 = vsel %vm203, %v201, 0
      %210 = vmatprep.subr.mxu0 0.0
      %211 = vmatpush1.xpose.msra.mxu0 %v208
      %212 = vmatprep.subr.mxu0 0.0
      %213 = vmatpush1.xpose.msra.mxu0 0.0
      %214 = vmatprep.subr.mxu0 0.0
      %215 = vmatpush1.xpose.msra.mxu0 0.0
      %216 = vmatprep.subr.mxu0 0.0
      %217 = vmatpush1.xpose.msra.mxu0 0.0
      %218 = vmatprep.subr.mxu0 0.0
      %219 = vmatpush1.xpose.msra.mxu0 0.0
      %220 = vmatprep.subr.mxu0 0.0
      %221 = vmatpush1.xpose.msra.mxu0 0.0
      %222 = vmatprep.subr.mxu0 0.0
      %223 = vmatpush1.xpose.msra.mxu0 0.0
      %224 = vmatprep.subr.mxu0 0.0
      %225 = vmatpush1.xpose.msra.mxu0 0.0
      %226 = vmatprep.subr.mxu0 0.0
      %227 = vmatpush1.xpose.msra.mxu0 0.0
      %228 = vmatprep.subr.mxu0 0.0
      %229 = vmatpush1.xpose.msra.mxu0 0.0
      %230 = vmatprep.subr.mxu0 0.0
      %231 = vmatpush1.xpose.msra.mxu0 0.0
      %232 = vmatprep.subr.mxu0 0.0
      %233 = vmatpush1.xpose.msra.mxu0 0.0
      %234 = vmatprep.subr.mxu0 0.0
      %235 = vmatpush1.xpose.msra.mxu0 0.0
      %236 = vmatprep.subr.mxu0 0.0
      %237 = vmatpush1.xpose.msra.mxu0 0.0
      %238 = vmatprep.subr.mxu0 0.0
      %239 = vmatpush1.xpose.msra.mxu0 0.0
      %240 = vmatprep.subr.mxu0 0.0
      %241 = vmatpush1.xpose.msra.mxu0 0.0
      %242 = vmatprep.subr.mxu0 0.0
      %243 = vmatpush1.xpose.msra.mxu0 0.0
      %244 = vmatprep.subr.mxu0 0.0
      %245 = vmatpush1.xpose.msra.mxu0 0.0
      %246 = vmatprep.subr.mxu0 0.0
      %247 = vmatpush1.xpose.msra.mxu0 0.0
      %248 = vmatprep.subr.mxu0 0.0
      %249 = vmatpush1.xpose.msra.mxu0 0.0
      %250 = vmatprep.subr.mxu0 0.0
      %251 = vmatpush1.xpose.msra.mxu0 0.0
      %252 = vmatprep.subr.mxu0 0.0
      %253 = vmatpush1.xpose.msra.mxu0 0.0
      %254 = vmatprep.subr.mxu0 0.0
      %255 = vmatpush1.xpose.msra.mxu0 0.0
      %256 = vmatprep.subr.mxu0 0.0
      %257 = vmatpush1.xpose.msra.mxu0 0.0
      %258 = vmatprep.subr.mxu0 0.0
      %259 = vmatpush1.xpose.msra.mxu0 0.0
      %260 = vmatprep.subr.mxu0 0.0
      %261 = vmatpush1.xpose.msra.mxu0 0.0
      %262 = vmatprep.subr.mxu0 0.0
      %263 = vmatpush1.xpose.msra.mxu0 0.0
      %264 = vmatprep.subr.mxu0 0.0
      %265 = vmatpush1.xpose.msra.mxu0 0.0
      %266 = vmatprep.subr.mxu0 0.0
      %267 = vmatpush1.xpose.msra.mxu0 0.0
      %268 = vmatprep.subr.mxu0 0.0
      %269 = vmatpush1.xpose.msra.mxu0 0.0
      %270 = vmatprep.subr.mxu0 0.0
      %271 = vmatpush1.xpose.msra.mxu0 0.0
      %272 = vmatprep.subr.mxu0 0.0
      %273 = vmatpush1.xpose.msra.mxu0 0.0
      %274 = vmatprep.mubr.f32.mxu0 0.0
      %275 = vmatmul.mubr.f32.gmra.mrb[0].mxu0 %v205
      %v276 = vpop.f32.mrb[0].mxu0
      %v277 = vadd.f32 0.0, %v276
      %v278 = vpop.f32.mrb[0].mxu0
      %279 = vdwg.mxu0
      %v280 = vmul.f32 %v277, 0.125
      %v281 = vsel %vm203, %v280, -inf
      %282 = vmax.xlane.f32.xlu0 %v281
      %v283 = vpop.xlane.xlu0 %282
      %v284 = vsub.f32 %v280, %v283
      %v285 = vmul.f32 %v284, 1.442695
      %v286 = vpow.pop %v285
      %v287 = vsel %vm203, %v286, 0.0
      %288 = vadd.xlane.f32.xlu0 %v287
      %v289 = vpop.xlane.xlu0 %288
      %v290 = vrcp.pop %v289
      %v291 = vmul.f32 %v286, %v290
      %v293 = vsel %vm203, %v291, 0
      %295 = vmatprep.subr.mxu0 0.0
      %296 = vmatpush1.msra.mxu0 %v202
      %297 = vmatprep.subr.mxu0 0.0
      %298 = vmatpush1.msra.mxu0 0.0
      %299 = vmatprep.subr.mxu0 0.0
      %300 = vmatpush1.msra.mxu0 0.0
      %301 = vmatprep.subr.mxu0 0.0
      %302 = vmatpush1.msra.mxu0 0.0
      %303 = vmatprep.subr.mxu0 0.0
      %304 = vmatpush1.msra.mxu0 0.0
      %305 = vmatprep.subr.mxu0 0.0
      %306 = vmatpush1.msra.mxu0 0.0
      %307 = vmatprep.subr.mxu0 0.0
      %308 = vmatpush1.msra.mxu0 0.0
      %309 = vmatprep.subr.mxu0 0.0
      %310 = vmatpush1.msra.mxu0 0.0
      %311 = vmatprep.subr.mxu0 0.0
      %312 = vmatpush1.msra.mxu0 0.0
      %313 = vmatprep.subr.mxu0 0.0
      %314 = vmatpush1.msra.mxu0 0.0
      %315 = vmatprep.subr.mxu0 0.0
      %316 = vmatpush1.msra.mxu0 0.0
      %317 = vmatprep.subr.mxu0 0.0
      %318 = vmatpush1.msra.mxu0 0.0
      %319 = vmatprep.subr.mxu0 0.0
      %320 = vmatpush1.msra.mxu0 0.0
      %321 = vmatprep.subr.mxu0 0.0
      %322 = vmatpush1.msra.mxu0 0.0
      %323 = vmatprep.subr.mxu0 0.0
      %324 = vmatpush1.msra.mxu0 0.0
      %325 = vmatprep.subr.mxu0 0.0
      %326 = vmatpush1.msra.mxu0 0.0
      %327 = vmatprep.subr.mxu0 0.0
      %328 = vmatpush1.msra.mxu0 0.0
      %329 = vmatprep.subr.mxu0 0.0
      %330 = vmatpush1.msra.mxu0 0.0
      %331 = vmatprep.subr.mxu0 0.0
      %332 = vmatpush1.msra.mxu0 0.0
      %333 = vmatprep.subr.mxu0 0.0
      %334 = vmatpush1.msra.mxu0 0.0
      %335 = vmatprep.subr.mxu0 0.0
      %336 = vmatpush1.msra.mxu0 0.0
      %337 = vmatprep.subr.mxu0 0.0
      %338 = vmatpush1.msra.mxu0 0.0
      %339 = vmatprep.subr.mxu0 0.0
      %340 = vmatpush1.msra.mxu0 0.0
      %341 = vmatprep.subr.mxu0 0.0
      %342 = vmatpush1.msra.mxu0 0.0
      %343 = vmatprep.subr.mxu0 0.0
      %344 = vmatpush1.msra.mxu0 0.0
      %345 = vmatprep.subr.mxu0 0.0
      %346 = vmatpush1.msra.mxu0 0.0
      %347 = vmatprep.subr.mxu0 0.0
      %348 = vmatpush1.msra.mxu0 0.0
      %349 = vmatprep.subr.mxu0 0.0
      %350 = vmatpush1.msra.mxu0 0.0
      %351 = vmatprep.subr.mxu0 0.0
      %352 = vmatpush1.msra.mxu0 0.0
      %353 = vmatprep.subr.mxu0 0.0
      %354 = vmatpush1.msra.mxu0 0.0
      %355 = vmatprep.subr.mxu0 0.0
      %356 = vmatpush1.msra.mxu0 0.0
      %357 = vmatprep.subr.mxu0 0.0
      %358 = vmatpush1.msra.mxu0 0.0
      %359 = vmatprep.mubr.f32.mxu0 0.0
      %360 = vmatmul.mubr.f32.gmra.mrb[0].mxu0 %v293
      %v361 = vpop.f32.mrb[0].mxu0
      %v362 = vadd.f32 0.0, %v361
      %v363 = vpop.f32.mrb[0].mxu0
      %364 = vdwg.mxu0
      %365 = vst.msk [vmem:[%s199] sm:$0xff] %vm203, %v362
      %366 = vrot.lane.b32.xlu0 %v200, 120
      %v367 = vpop.permute.xlu0 %366
      %368 = vrot.lane.b32.xlu0 %v201, 120
      %v369 = vpop.permute.xlu0 %368
      %v370 = vsel %vm203, %v367, 0
      %v372 = vsel %vm203, %v369, 0
      %374 = vmatprep.subr.mxu0 0.0
      %375 = vmatpush1.xpose.msra.mxu0 %v372
      %376 = vmatprep.subr.mxu0 0.0
      %377 = vmatpush1.xpose.msra.mxu0 0.0
      %378 = vmatprep.subr.mxu0 0.0
      %379 = vmatpush1.xpose.msra.mxu0 0.0
      %380 = vmatprep.subr.mxu0 0.0
      %381 = vmatpush1.xpose.msra.mxu0 0.0
      %382 = vmatprep.subr.mxu0 0.0
      %383 = vmatpush1.xpose.msra.mxu0 0.0
      %384 = vmatprep.subr.mxu0 0.0
      %385 = vmatpush1.xpose.msra.mxu0 0.0
      %386 = vmatprep.subr.mxu0 0.0
      %387 = vmatpush1.xpose.msra.mxu0 0.0
      %388 = vmatprep.subr.mxu0 0.0
      %389 = vmatpush1.xpose.msra.mxu0 0.0
      %390 = vmatprep.subr.mxu0 0.0
      %391 = vmatpush1.xpose.msra.mxu0 0.0
      %392 = vmatprep.subr.mxu0 0.0
      %393 = vmatpush1.xpose.msra.mxu0 0.0
      %394 = vmatprep.subr.mxu0 0.0
      %395 = vmatpush1.xpose.msra.mxu0 0.0
      %396 = vmatprep.subr.mxu0 0.0
      %397 = vmatpush1.xpose.msra.mxu0 0.0
      %398 = vmatprep.subr.mxu0 0.0
      %399 = vmatpush1.xpose.msra.mxu0 0.0
      %400 = vmatprep.subr.mxu0 0.0
      %401 = vmatpush1.xpose.msra.mxu0 0.0
      %402 = vmatprep.subr.mxu0 0.0
      %403 = vmatpush1.xpose.msra.mxu0 0.0
      %404 = vmatprep.subr.mxu0 0.0
      %405 = vmatpush1.xpose.msra.mxu0 0.0
      %406 = vmatprep.subr.mxu0 0.0
      %407 = vmatpush1.xpose.msra.mxu0 0.0
      %408 = vmatprep.subr.mxu0 0.0
      %409 = vmatpush1.xpose.msra.mxu0 0.0
      %410 = vmatprep.subr.mxu0 0.0
      %411 = vmatpush1.xpose.msra.mxu0 0.0
      %412 = vmatprep.subr.mxu0 0.0
      %413 = vmatpush1.xpose.msra.mxu0 0.0
      %414 = vmatprep.subr.mxu0 0.0
      %415 = vmatpush1.xpose.msra.mxu0 0.0
      %416 = vmatprep.subr.mxu0 0.0
      %417 = vmatpush1.xpose.msra.mxu0 0.0
      %418 = vmatprep.subr.mxu0 0.0
      %419 = vmatpush1.xpose.msra.mxu0 0.0
      %420 = vmatprep.subr.mxu0 0.0
      %421 = vmatpush1.xpose.msra.mxu0 0.0
      %422 = vmatprep.subr.mxu0 0.0
      %423 = vmatpush1.xpose.msra.mxu0 0.0
      %424 = vmatprep.subr.mxu0 0.0
      %425 = vmatpush1.xpose.msra.mxu0 0.0
      %426 = vmatprep.subr.mxu0 0.0
      %427 = vmatpush1.xpose.msra.mxu0 0.0
      %428 = vmatprep.subr.mxu0 0.0
      %429 = vmatpush1.xpose.msra.mxu0 0.0
      %430 = vmatprep.subr.mxu0 0.0
      %431 = vmatpush1.xpose.msra.mxu0 0.0
      %432 = vmatprep.subr.mxu0 0.0
      %433 = vmatpush1.xpose.msra.mxu0 0.0
      %434 = vmatprep.subr.mxu0 0.0
      %435 = vmatpush1.xpose.msra.mxu0 0.0
      %436 = vmatprep.subr.mxu0 0.0
      %437 = vmatpush1.xpose.msra.mxu0 0.0
      %438 = vmatprep.mubr.f32.mxu0 0.0
      %439 = vmatmul.mubr.f32.gmra.mrb[0].mxu0 %v370
      %v440 = vpop.f32.mrb[0].mxu0
      %v441 = vadd.f32 0.0, %v440
      %v442 = vpop.f32.mrb[0].mxu0
      %443 = vdwg.mxu0
      %v444 = vmul.f32 %v441, 0.125
      %v445 = vsel %vm203, %v444, -inf
      %446 = vmax.xlane.f32.xlu0 %v445
      %v447 = vpop.xlane.xlu0 %446
      %v448 = vsub.f32 %v444, %v447
      %v449 = vmul.f32 %v448, 1.442695
      %v450 = vpow.pop %v449
      %v451 = vsel %vm203, %v450, 0.0
      %452 = vadd.xlane.f32.xlu0 %v451
      %v453 = vpop.xlane.xlu0 %452
      %v454 = vrcp.pop %v453
      %v455 = vmul.f32 %v450, %v454
      %457 = vrot.lane.b32.xlu0 %v202, 120
      %v458 = vpop.permute.xlu0 %457
      %v461 = vsel %vm203, %v455, 0
      %463 = vmatprep.subr.mxu0 0.0
      %464 = vmatpush1.msra.mxu0 %v458
      %465 = vmatprep.subr.mxu0 0.0
      %466 = vmatpush1.msra.mxu0 0.0
      %467 = vmatprep.subr.mxu0 0.0
      %468 = vmatpush1.msra.mxu0 0.0
      %469 = vmatprep.subr.mxu0 0.0
      %470 = vmatpush1.msra.mxu0 0.0
      %471 = vmatprep.subr.mxu0 0.0
      %472 = vmatpush1.msra.mxu0 0.0
      %473 = vmatprep.subr.mxu0 0.0
      %474 = vmatpush1.msra.mxu0 0.0
      %475 = vmatprep.subr.mxu0 0.0
      %476 = vmatpush1.msra.mxu0 0.0
      %477 = vmatprep.subr.mxu0 0.0
      %478 = vmatpush1.msra.mxu0 0.0
      %479 = vmatprep.subr.mxu0 0.0
      %480 = vmatpush1.msra.mxu0 0.0
      %481 = vmatprep.subr.mxu0 0.0
      %482 = vmatpush1.msra.mxu0 0.0
      %483 = vmatprep.subr.mxu0 0.0
      %484 = vmatpush1.msra.mxu0 0.0
      %485 = vmatprep.subr.mxu0 0.0
      %486 = vmatpush1.msra.mxu0 0.0
      %487 = vmatprep.subr.mxu0 0.0
      %488 = vmatpush1.msra.mxu0 0.0
      %489 = vmatprep.subr.mxu0 0.0
      %490 = vmatpush1.msra.mxu0 0.0
      %491 = vmatprep.subr.mxu0 0.0
      %492 = vmatpush1.msra.mxu0 0.0
      %493 = vmatprep.subr.mxu0 0.0
      %494 = vmatpush1.msra.mxu0 0.0
      %495 = vmatprep.subr.mxu0 0.0
      %496 = vmatpush1.msra.mxu0 0.0
      %497 = vmatprep.subr.mxu0 0.0
      %498 = vmatpush1.msra.mxu0 0.0
      %499 = vmatprep.subr.mxu0 0.0
      %500 = vmatpush1.msra.mxu0 0.0
      %501 = vmatprep.subr.mxu0 0.0
      %502 = vmatpush1.msra.mxu0 0.0
      %503 = vmatprep.subr.mxu0 0.0
      %504 = vmatpush1.msra.mxu0 0.0
      %505 = vmatprep.subr.mxu0 0.0
      %506 = vmatpush1.msra.mxu0 0.0
      %507 = vmatprep.subr.mxu0 0.0
      %508 = vmatpush1.msra.mxu0 0.0
      %509 = vmatprep.subr.mxu0 0.0
      %510 = vmatpush1.msra.mxu0 0.0
      %511 = vmatprep.subr.mxu0 0.0
      %512 = vmatpush1.msra.mxu0 0.0
      %513 = vmatprep.subr.mxu0 0.0
      %514 = vmatpush1.msra.mxu0 0.0
      %515 = vmatprep.subr.mxu0 0.0
      %516 = vmatpush1.msra.mxu0 0.0
      %517 = vmatprep.subr.mxu0 0.0
      %518 = vmatpush1.msra.mxu0 0.0
      %519 = vmatprep.subr.mxu0 0.0
      %520 = vmatpush1.msra.mxu0 0.0
      %521 = vmatprep.subr.mxu0 0.0
      %522 = vmatpush1.msra.mxu0 0.0
      %523 = vmatprep.subr.mxu0 0.0
      %524 = vmatpush1.msra.mxu0 0.0
      %525 = vmatprep.subr.mxu0 0.0
      %526 = vmatpush1.msra.mxu0 0.0
      %527 = vmatprep.mubr.f32.mxu0 0.0
      %528 = vmatmul.mubr.f32.gmra.mrb[0].mxu0 %v461
      %v529 = vpop.f32.mrb[0].mxu0
      %v530 = vadd.f32 0.0, %v529
      %v531 = vpop.f32.mrb[0].mxu0
      %532 = vdwg.mxu0
      %534 = vrot.lane.b32.xlu0 %v530, 8
      %v535 = vpop.permute.xlu0 %534
      %vm537 = vcmask 130112
      %538 = vst.msk [vmem:[%s199] sm:$0xff] %vm537, %v535
      %539 = vrot.lane.b32.xlu0 %v200, 112
      %v540 = vpop.permute.xlu0 %539
      %541 = vrot.lane.b32.xlu0 %v201, 112
      %v542 = vpop.permute.xlu0 %541
      %v543 = vsel %vm203, %v540, 0
      %v545 = vsel %vm203, %v542, 0
      %547 = vmatprep.subr.mxu0 0.0
      %548 = vmatpush1.xpose.msra.mxu0 %v545
      %549 = vmatprep.subr.mxu0 0.0
      %550 = vmatpush1.xpose.msra.mxu0 0.0
      %551 = vmatprep.subr.mxu0 0.0
      %552 = vmatpush1.xpose.msra.mxu0 0.0
      %553 = vmatprep.subr.mxu0 0.0
      %554 = vmatpush1.xpose.msra.mxu0 0.0
      %555 = vmatprep.subr.mxu0 0.0
      %556 = vmatpush1.xpose.msra.mxu0 0.0
      %557 = vmatprep.subr.mxu0 0.0
      %558 = vmatpush1.xpose.msra.mxu0 0.0
      %559 = vmatprep.subr.mxu0 0.0
      %560 = vmatpush1.xpose.msra.mxu0 0.0
      %561 = vmatprep.subr.mxu0 0.0
      %562 = vmatpush1.xpose.msra.mxu0 0.0
      %563 = vmatprep.subr.mxu0 0.0
      %564 = vmatpush1.xpose.msra.mxu0 0.0
      %565 = vmatprep.subr.mxu0 0.0
      %566 = vmatpush1.xpose.msra.mxu0 0.0
      %567 = vmatprep.subr.mxu0 0.0
      %568 = vmatpush1.xpose.msra.mxu0 0.0
      %569 = vmatprep.subr.mxu0 0.0
      %570 = vmatpush1.xpose.msra.mxu0 0.0
      %571 = vmatprep.subr.mxu0 0.0
      %572 = vmatpush1.xpose.msra.mxu0 0.0
      %573 = vmatprep.subr.mxu0 0.0
      %574 = vmatpush1.xpose.msra.mxu0 0.0
      %575 = vmatprep.subr.mxu0 0.0
      %576 = vmatpush1.xpose.msra.mxu0 0.0
      %577 = vmatprep.subr.mxu0 0.0
      %578 = vmatpush1.xpose.msra.mxu0 0.0
      %579 = vmatprep.subr.mxu0 0.0
      %580 = vmatpush1.xpose.msra.mxu0 0.0
      %581 = vmatprep.subr.mxu0 0.0
      %582 = vmatpush1.xpose.msra.mxu0 0.0
      %583 = vmatprep.subr.mxu0 0.0
      %584 = vmatpush1.xpose.msra.mxu0 0.0
      %585 = vmatprep.subr.mxu0 0.0
      %586 = vmatpush1.xpose.msra.mxu0 0.0
      %587 = vmatprep.subr.mxu0 0.0
      %588 = vmatpush1.xpose.msra.mxu0 0.0
      %589 = vmatprep.subr.mxu0 0.0
      %590 = vmatpush1.xpose.msra.mxu0 0.0
      %591 = vmatprep.subr.mxu0 0.0
      %592 = vmatpush1.xpose.msra.mxu0 0.0
      %593 = vmatprep.subr.mxu0 0.0
      %594 = vmatpush1.xpose.msra.mxu0 0.0
      %595 = vmatprep.subr.mxu0 0.0
      %596 = vmatpush1.xpose.msra.mxu0 0.0
      %597 = vmatprep.subr.mxu0 0.0
      %598 = vmatpush1.xpose.msra.mxu0 0.0
      %599 = vmatprep.subr.mxu0 0.0
      %600 = vmatpush1.xpose.msra.mxu0 0.0
      %601 = vmatprep.subr.mxu0 0.0
      %602 = vmatpush1.xpose.msra.mxu0 0.0
      %603 = vmatprep.subr.mxu0 0.0
      %604 = vmatpush1.xpose.msra.mxu0 0.0
      %605 = vmatprep.subr.mxu0 0.0
      %606 = vmatpush1.xpose.msra.mxu0 0.0
      %607 = vmatprep.subr.mxu0 0.0
      %608 = vmatpush1.xpose.msra.mxu0 0.0
      %609 = vmatprep.subr.mxu0 0.0
      %610 = vmatpush1.xpose.msra.mxu0 0.0
      %611 = vmatprep.mubr.f32.mxu0 0.0
      %612 = vmatmul.mubr.f32.gmra.mrb[0].mxu0 %v543
      %v613 = vpop.f32.mrb[0].mxu0
      %v614 = vadd.f32 0.0, %v613
      %v615 = vpop.f32.mrb[0].mxu0
      %616 = vdwg.mxu0
      %v617 = vmul.f32 %v614, 0.125
      %v618 = vsel %vm203, %v617, -inf
      %619 = vmax.xlane.f32.xlu0 %v618
      %v620 = vpop.xlane.xlu0 %619
      %v621 = vsub.f32 %v617, %v620
      %v622 = vmul.f32 %v621, 1.442695
      %v623 = vpow.pop %v622
      %v624 = vsel %vm203, %v623, 0.0
      %625 = vadd.xlane.f32.xlu0 %v624
      %v626 = vpop.xlane.xlu0 %625
      %v627 = vrcp.pop %v626
      %v628 = vmul.f32 %v623, %v627
      %629 = vrot.lane.b32.xlu0 %v202, 112
      %v630 = vpop.permute.xlu0 %629
      %v633 = vsel %vm203, %v628, 0
      %635 = vmatprep.subr.mxu0 0.0
      %636 = vmatpush1.msra.mxu0 %v630
      %637 = vmatprep.subr.mxu0 0.0
      %638 = vmatpush1.msra.mxu0 0.0
      %639 = vmatprep.subr.mxu0 0.0
      %640 = vmatpush1.msra.mxu0 0.0
      %641 = vmatprep.subr.mxu0 0.0
      %642 = vmatpush1.msra.mxu0 0.0
      %643 = vmatprep.subr.mxu0 0.0
      %644 = vmatpush1.msra.mxu0 0.0
      %645 = vmatprep.subr.mxu0 0.0
      %646 = vmatpush1.msra.mxu0 0.0
      %647 = vmatprep.subr.mxu0 0.0
      %648 = vmatpush1.msra.mxu0 0.0
      %649 = vmatprep.subr.mxu0 0.0
      %650 = vmatpush1.msra.mxu0 0.0
      %651 = vmatprep.subr.mxu0 0.0
      %652 = vmatpush1.msra.mxu0 0.0
      %653 = vmatprep.subr.mxu0 0.0
      %654 = vmatpush1.msra.mxu0 0.0
      %655 = vmatprep.subr.mxu0 0.0
      %656 = vmatpush1.msra.mxu0 0.0
      %657 = vmatprep.subr.mxu0 0.0
      %658 = vmatpush1.msra.mxu0 0.0
      %659 = vmatprep.subr.mxu0 0.0
      %660 = vmatpush1.msra.mxu0 0.0
      %661 = vmatprep.subr.mxu0 0.0
      %662 = vmatpush1.msra.mxu0 0.0
      %663 = vmatprep.subr.mxu0 0.0
      %664 = vmatpush1.msra.mxu0 0.0
      %665 = vmatprep.subr.mxu0 0.0
      %666 = vmatpush1.msra.mxu0 0.0
      %667 = vmatprep.subr.mxu0 0.0
      %668 = vmatpush1.msra.mxu0 0.0
      %669 = vmatprep.subr.mxu0 0.0
      %670 = vmatpush1.msra.mxu0 0.0
      %671 = vmatprep.subr.mxu0 0.0
      %672 = vmatpush1.msra.mxu0 0.0
      %673 = vmatprep.subr.mxu0 0.0
      %674 = vmatpush1.msra.mxu0 0.0
      %675 = vmatprep.subr.mxu0 0.0
      %676 = vmatpush1.msra.mxu0 0.0
      %677 = vmatprep.subr.mxu0 0.0
      %678 = vmatpush1.msra.mxu0 0.0
      %679 = vmatprep.subr.mxu0 0.0
      %680 = vmatpush1.msra.mxu0 0.0
      %681 = vmatprep.subr.mxu0 0.0
      %682 = vmatpush1.msra.mxu0 0.0
      %683 = vmatprep.subr.mxu0 0.0
      %684 = vmatpush1.msra.mxu0 0.0
      %685 = vmatprep.subr.mxu0 0.0
      %686 = vmatpush1.msra.mxu0 0.0
      %687 = vmatprep.subr.mxu0 0.0
      %688 = vmatpush1.msra.mxu0 0.0
      %689 = vmatprep.subr.mxu0 0.0
      %690 = vmatpush1.msra.mxu0 0.0
      %691 = vmatprep.subr.mxu0 0.0
      %692 = vmatpush1.msra.mxu0 0.0
      %693 = vmatprep.subr.mxu0 0.0
      %694 = vmatpush1.msra.mxu0 0.0
      %695 = vmatprep.subr.mxu0 0.0
      %696 = vmatpush1.msra.mxu0 0.0
      %697 = vmatprep.subr.mxu0 0.0
      %698 = vmatpush1.msra.mxu0 0.0
      %699 = vmatprep.mubr.f32.mxu0 0.0
      %700 = vmatmul.mubr.f32.gmra.mrb[0].mxu0 %v633
      %v701 = vpop.f32.mrb[0].mxu0
      %v702 = vadd.f32 0.0, %v701
      %v703 = vpop.f32.mrb[0].mxu0
      %704 = vdwg.mxu0
      %706 = vrot.lane.b32.xlu0 %v702, 16
      %v707 = vpop.permute.xlu0 %706
      %vm709 = vcmask 195712
      %710 = vst.msk [vmem:[%s199] sm:$0xff] %vm709, %v707
      %711 = vrot.lane.b32.xlu0 %v200, 104
      %v712 = vpop.permute.xlu0 %711
      %713 = vrot.lane.b32.xlu0 %v201, 104
      %v714 = vpop.permute.xlu0 %713
      %v715 = vsel %vm203, %v712, 0
      %v717 = vsel %vm203, %v714, 0
      %719 = vmatprep.subr.mxu0 0.0
      %720 = vmatpush1.xpose.msra.mxu0 %v717
      %721 = vmatprep.subr.mxu0 0.0
      %722 = vmatpush1.xpose.msra.mxu0 0.0
      %723 = vmatprep.subr.mxu0 0.0
      %724 = vmatpush1.xpose.msra.mxu0 0.0
      %725 = vmatprep.subr.mxu0 0.0
      %726 = vmatpush1.xpose.msra.mxu0 0.0
      %727 = vmatprep.subr.mxu0 0.0
      %728 = vmatpush1.xpose.msra.mxu0 0.0
      %729 = vmatprep.subr.mxu0 0.0
      %730 = vmatpush1.xpose.msra.mxu0 0.0
      %731 = vmatprep.subr.mxu0 0.0
      %732 = vmatpush1.xpose.msra.mxu0 0.0
      %733 = vmatprep.subr.mxu0 0.0
      %734 = vmatpush1.xpose.msra.mxu0 0.0
      %735 = vmatprep.subr.mxu0 0.0
      %736 = vmatpush1.xpose.msra.mxu0 0.0
      %737 = vmatprep.subr.mxu0 0.0
      %738 = vmatpush1.xpose.msra.mxu0 0.0
      %739 = vmatprep.subr.mxu0 0.0
      %740 = vmatpush1.xpose.msra.mxu0 0.0
      %741 = vmatprep.subr.mxu0 0.0
      %742 = vmatpush1.xpose.msra.mxu0 0.0
      %743 = vmatprep.subr.mxu0 0.0
      %744 = vmatpush1.xpose.msra.mxu0 0.0
      %745 = vmatprep.subr.mxu0 0.0
      %746 = vmatpush1.xpose.msra.mxu0 0.0
      %747 = vmatprep.subr.mxu0 0.0
      %748 = vmatpush1.xpose.msra.mxu0 0.0
      %749 = vmatprep.subr.mxu0 0.0
      %750 = vmatpush1.xpose.msra.mxu0 0.0
      %751 = vmatprep.subr.mxu0 0.0
      %752 = vmatpush1.xpose.msra.mxu0 0.0
      %753 = vmatprep.subr.mxu0 0.0
      %754 = vmatpush1.xpose.msra.mxu0 0.0
      %755 = vmatprep.subr.mxu0 0.0
      %756 = vmatpush1.xpose.msra.mxu0 0.0
      %757 = vmatprep.subr.mxu0 0.0
      %758 = vmatpush1.xpose.msra.mxu0 0.0
      %759 = vmatprep.subr.mxu0 0.0
      %760 = vmatpush1.xpose.msra.mxu0 0.0
      %761 = vmatprep.subr.mxu0 0.0
      %762 = vmatpush1.xpose.msra.mxu0 0.0
      %763 = vmatprep.subr.mxu0 0.0
      %764 = vmatpush1.xpose.msra.mxu0 0.0
      %765 = vmatprep.subr.mxu0 0.0
      %766 = vmatpush1.xpose.msra.mxu0 0.0
      %767 = vmatprep.subr.mxu0 0.0
      %768 = vmatpush1.xpose.msra.mxu0 0.0
      %769 = vmatprep.subr.mxu0 0.0
      %770 = vmatpush1.xpose.msra.mxu0 0.0
      %771 = vmatprep.subr.mxu0 0.0
      %772 = vmatpush1.xpose.msra.mxu0 0.0
      %773 = vmatprep.subr.mxu0 0.0
      %774 = vmatpush1.xpose.msra.mxu0 0.0
      %775 = vmatprep.subr.mxu0 0.0
      %776 = vmatpush1.xpose.msra.mxu0 0.0
      %777 = vmatprep.subr.mxu0 0.0
      %778 = vmatpush1.xpose.msra.mxu0 0.0
      %779 = vmatprep.subr.mxu0 0.0
      %780 = vmatpush1.xpose.msra.mxu0 0.0
      %781 = vmatprep.subr.mxu0 0.0
      %782 = vmatpush1.xpose.msra.mxu0 0.0
      %783 = vmatprep.mubr.f32.mxu0 0.0
      %784 = vmatmul.mubr.f32.gmra.mrb[0].mxu0 %v715
      %v785 = vpop.f32.mrb[0].mxu0
      %v786 = vadd.f32 0.0, %v785
      %v787 = vpop.f32.mrb[0].mxu0
      %788 = vdwg.mxu0
      %v789 = vmul.f32 %v786, 0.125
      %v790 = vsel %vm203, %v789, -inf
      %791 = vmax.xlane.f32.xlu0 %v790
      %v792 = vpop.xlane.xlu0 %791
      %v793 = vsub.f32 %v789, %v792
      %v794 = vmul.f32 %v793, 1.442695
      %v795 = vpow.pop %v794
      %v796 = vsel %vm203, %v795, 0.0
      %797 = vadd.xlane.f32.xlu0 %v796
      %v798 = vpop.xlane.xlu0 %797
      %v799 = vrcp.pop %v798
      %v800 = vmul.f32 %v795, %v799
      %801 = vrot.lane.b32.xlu0 %v202, 104
      %v802 = vpop.permute.xlu0 %801
      %v805 = vsel %vm203, %v800, 0
      %807 = vmatprep.subr.mxu0 0.0
      %808 = vmatpush1.msra.mxu0 %v802
      %809 = vmatprep.subr.mxu0 0.0
      %810 = vmatpush1.msra.mxu0 0.0
      %811 = vmatprep.subr.mxu0 0.0
      %812 = vmatpush1.msra.mxu0 0.0
      %813 = vmatprep.subr.mxu0 0.0
      %814 = vmatpush1.msra.mxu0 0.0
      %815 = vmatprep.subr.mxu0 0.0
      %816 = vmatpush1.msra.mxu0 0.0
      %817 = vmatprep.subr.mxu0 0.0
      %818 = vmatpush1.msra.mxu0 0.0
      %819 = vmatprep.subr.mxu0 0.0
      %820 = vmatpush1.msra.mxu0 0.0
      %821 = vmatprep.subr.mxu0 0.0
      %822 = vmatpush1.msra.mxu0 0.0
      %823 = vmatprep.subr.mxu0 0.0
      %824 = vmatpush1.msra.mxu0 0.0
      %825 = vmatprep.subr.mxu0 0.0
      %826 = vmatpush1.msra.mxu0 0.0
      %827 = vmatprep.subr.mxu0 0.0
      %828 = vmatpush1.msra.mxu0 0.0
      %829 = vmatprep.subr.mxu0 0.0
      %830 = vmatpush1.msra.mxu0 0.0
      %831 = vmatprep.subr.mxu0 0.0
      %832 = vmatpush1.msra.mxu0 0.0
      %833 = vmatprep.subr.mxu0 0.0
      %834 = vmatpush1.msra.mxu0 0.0
      %835 = vmatprep.subr.mxu0 0.0
      %836 = vmatpush1.msra.mxu0 0.0
      %837 = vmatprep.subr.mxu0 0.0
      %838 = vmatpush1.msra.mxu0 0.0
      %839 = vmatprep.subr.mxu0 0.0
      %840 = vmatpush1.msra.mxu0 0.0
      %841 = vmatprep.subr.mxu0 0.0
      %842 = vmatpush1.msra.mxu0 0.0
      %843 = vmatprep.subr.mxu0 0.0
      %844 = vmatpush1.msra.mxu0 0.0
      %845 = vmatprep.subr.mxu0 0.0
      %846 = vmatpush1.msra.mxu0 0.0
      %847 = vmatprep.subr.mxu0 0.0
      %848 = vmatpush1.msra.mxu0 0.0
      %849 = vmatprep.subr.mxu0 0.0
      %850 = vmatpush1.msra.mxu0 0.0
      %851 = vmatprep.subr.mxu0 0.0
      %852 = vmatpush1.msra.mxu0 0.0
      %853 = vmatprep.subr.mxu0 0.0
      %854 = vmatpush1.msra.mxu0 0.0
      %855 = vmatprep.subr.mxu0 0.0
      %856 = vmatpush1.msra.mxu0 0.0
      %857 = vmatprep.subr.mxu0 0.0
      %858 = vmatpush1.msra.mxu0 0.0
      %859 = vmatprep.subr.mxu0 0.0
      %860 = vmatpush1.msra.mxu0 0.0
      %861 = vmatprep.subr.mxu0 0.0
      %862 = vmatpush1.msra.mxu0 0.0
      %863 = vmatprep.subr.mxu0 0.0
      %864 = vmatpush1.msra.mxu0 0.0
      %865 = vmatprep.subr.mxu0 0.0
      %866 = vmatpush1.msra.mxu0 0.0
      %867 = vmatprep.subr.mxu0 0.0
      %868 = vmatpush1.msra.mxu0 0.0
      %869 = vmatprep.subr.mxu0 0.0
      %870 = vmatpush1.msra.mxu0 0.0
      %871 = vmatprep.mubr.f32.mxu0 0.0
      %872 = vmatmul.mubr.f32.gmra.mrb[0].mxu0 %v805
      %v873 = vpop.f32.mrb[0].mxu0
      %v874 = vadd.f32 0.0, %v873
      %v875 = vpop.f32.mrb[0].mxu0
      %876 = vdwg.mxu0
      %878 = vrot.lane.b32.xlu0 %v874, 24
      %v879 = vpop.permute.xlu0 %878
      %vm881 = vcmask 261312
      %882 = vst.msk [vmem:[%s199] sm:$0xff] %vm881, %v879
      %p883 = scmp.lt.s32.totalorder %s14, 1
      %s884 = scalar_select %p883, %s14, 1
      %s885 = smul.addr %s884, 8
      %s886 = scalar_lea.vmem %s3, %s885
      // Predicated region
      $region33: #{_encoder_forward.20} parent=31 // pred_check
        %p887 = pneg %p110
      $region34: #{_encoder_forward.20} parent=31 // pred_check_branch
        %889 = sbr.rel (%p887) target = $region36
      $region35: #{_encoder_forward.20} parent=31 // pred_region
        _
      $region36: #{_encoder_forward.20} parent=31 // pred_fallthru
        _
    $region32: #{_encoder_forward.20} parent=5 // pred_fallthru
      _
    %p890 = scmp.le.s32.totalorder 2, %s9
    // Predicated region
    $region37: #{_encoder_forward.20} parent=5 // pred_check
      %p891 = pneg %p890
    $region38: #{_encoder_forward.20} parent=5 // pred_check_branch
      %893 = sbr.rel (%p891) target = $region40
    $region39: #{_encoder_forward.20} parent=5 // pred_region
      %s894 = ssub.s32 %s9, 2
      // Predicated region
      $region41: #{_encoder_forward.20} parent=39 // pred_check
        %p895 = pneg %p116
      $region42: #{_encoder_forward.20} parent=39 // pred_check_branch
        %897 = sbr.rel (%p895) target = $region44
      $region43: #{_encoder_forward.20} parent=39 // pred_region
        %p898 = scmp.lt.s32.totalorder %s15, 1
        %s899 = scalar_select %p898, %s15, 1
        %s900 = smul.addr %s899, 8
        %s901 = scalar_lea.vmem %s3, %s900
      $region44: #{_encoder_forward.20} parent=39 // pred_fallthru
        _
    $region40: #{_encoder_forward.20} parent=5 // pred_fallthru
      _
  $region6: #{_encoder_forward.20} parent=0 // loop_footer
    %s13 = sadd.s32 1, %s9
  $region7: #{_encoder_forward.20} parent=0 // loop_footer_branch
    %8 = sbr.rel target = $region3
  $region8: #{_encoder_forward.20} parent=0 // loop_exit
    _

// kernel: _encoder_forward.37
$region0: #{_encoder_forward.37}
  #allocation0 [shape = 'u32[]', space=smem, size = 0x4, offset = 0x4, fixed_abs, tag = 'smem constant byte address 0x4 - core index']
  #allocation1 [shape = 'u32[144,128]{1,0:T(1,128)}', space=vmem, size = 0x12000, scoped, tag = 'internal scratch']
  #allocation2 [shape = 'f32[1,1]{1,0:T(1,128)S(1)}', space=vmem, size = 0x200, scoped, tag = 'scoped memory for _encoder_forward.37']
  %s0 = inlined_call_operand.vmem [shape: f32[2,8,32], index: 0, kind: input, shape index: {}]
  %s1 = inlined_call_operand.vmem [shape: f32[3,32,32], index: 1, kind: input, shape index: {}]
  %s2 = inlined_call_operand.vmem [shape: f32[1,32], index: 2, kind: input, shape index: {}]
  %s3 = inlined_call_operand.vmem [shape: f32[1,32], index: 3, kind: input, shape index: {}]
  %s4 = inlined_call_operand.vmem [shape: f32[1,32], index: 4, kind: input, shape index: {}]
  %s5 = inlined_call_operand.vmem [shape: f32[3,32,32], index: 5, kind: input, shape index: {}]
  %s6 = inlined_call_operand.vmem [shape: f32[1,32], index: 6, kind: input, shape index: {}]
  %s7 = inlined_call_operand.vmem [shape: f32[1,32], index: 7, kind: input, shape index: {}]
  %s8 = inlined_call_operand.vmem [shape: f32[1,32], index: 8, kind: input, shape index: {}]
  %s9 = inlined_call_operand.vmem [shape: f32[1,32], index: 9, kind: input, shape index: {}]
  %s10 = inlined_call_operand.<no memory space> [shape: f32[1,1], index: 10, kind: input, shape index: {}]
  %s11 = inlined_call_operand.vmem [shape: f32[2,8,1], index: 11, kind: output, shape index: {}]
  %s12 = sld [smem:[#allocation0]]
  $region77: #{_encoder_forward.37} parent=0
    _
  %s14 = ssub.s32 1, %s12
  %s15 = scalar_select 0, %s14, %s12
  %v16 = vstv %s10
  %17 = vst [vmem:[#allocation2] sm:$0x1] %v16
  loop: start=0, step=1, limit=4
  $region2: #{_encoder_forward.37} parent=0 // loop_pre_header
    _
  $region3: #{_encoder_forward.37} parent=0 // loop_header
    %s19 = sphi 0, %s23
    %p20 = scmp.ge.s32.totalorder %s19, 4
    %s29 = sphi 0, %s31
    %s32 = sphi 0, %s29
    %s33 = sphi 0, %s32
    %s49 = sphi 0, %s33
    %s53 = sphi 0, %s53
    %s55 = sphi 0, %s53
    %s56 = sphi 0, %s55
    %s70 = sphi 0, %s56
    %s74 = sphi 0, %s74
    %s76 = sphi 0, %s74
    %s77 = sphi 0, %s76
    %s91 = sphi 0, %s77
    %s95 = sphi 0, %s95
    %s97 = sphi 0, %s95
    %s98 = sphi 0, %s97
    %s112 = sphi 0, %s98
    %s116 = sphi 0, %s116
    %s118 = sphi 0, %s116
    %s119 = sphi 0, %s118
    %s133 = sphi 0, %s119
    %s137 = sphi 0, %s137
    %s139 = sphi 0, %s137
    %s140 = sphi 0, %s139
    %s154 = sphi 0, %s140
    %s158 = sphi 0, %s158
    %s160 = sphi 0, %s158
    %s161 = sphi 0, %s160
    %s175 = sphi 0, %s161
    %s179 = sphi 0, %s179
    %s181 = sphi 0, %s179
    %s182 = sphi 0, %s181
    %s196 = sphi 0, %s182
    %s200 = sphi 0, %s200
    %s202 = sphi 0, %s200
    %s203 = sphi 0, %s202
    %s217 = sphi 0, %s203
    %s221 = sphi 0, %s221
    %s223 = sphi 0, %s221
    %s224 = sphi 0, %s223
    %s238 = sphi 0, %s224
    %s242 = sphi 0, %s242
    %s244 = sphi 0, %s242
    %s245 = sphi 0, %s244
    %s259 = sphi 0, %s245
    %s265 = sphi 0, %s267
    %s268 = sphi 0, %s265
    %s269 = sphi 0, %s268
    %s285 = sphi 0, %s269
  $region4: #{_encoder_forward.37} parent=0 // loop_header_branch
    %22 = sbr.rel (%p20) target = $region8
  $region5: #{_encoder_forward.37} parent=0 // loop_body
    %s24 = ssub.s32 %s19, 1
    %s25 = ssub.s32 %s19, 2
    %s26 = sadd.s32 %s19, 1
    %s27 = ssub.s32 %s19, %s26
    %p28 = scmp.eq.s32.totalorder %s27, 0
    %s30 = sadd.s32 %s29, 1
    %s31 = scalar_select %p28, %s29, %s30
    %p34 = pneg %p28
    %p35 = scmp.eq.s32.totalorder %s19, 1
    %p36 = por %p34, %p35
    %p37 = scmp.ne.s32.totalorder %s29, %s32
    %p38 = scmp.eq.s32.totalorder %s19, 0
    %p39 = por %p37, %p38
    %p40 = scmp.ne.s32.totalorder %s29, %s32
    %p41 = scmp.eq.s32.totalorder %s24, 1
    %p42 = por %p40, %p41
    %p43 = scmp.ne.s32.totalorder %s32, %s33
    %p44 = scmp.eq.s32.totalorder %s24, 0
    %p45 = por %p43, %p44
    %p46 = scmp.ne.s32.totalorder %s32, %s33
    %p47 = scmp.eq.s32.totalorder %s25, 1
    %p48 = por %p46, %p47
    %p50 = scmp.ne.s32.totalorder %s33, %s49
    %p51 = scmp.eq.s32.totalorder %s25, 0
    %p52 = por %p50, %p51
    %s54 = sadd.s32 %s53, 1
    %p57 = scmp.eq.s32.totalorder %s19, 1
    %p58 = scmp.ne.s32.totalorder %s53, %s55
    %p59 = scmp.eq.s32.totalorder %s19, 0
    %p60 = por %p58, %p59
    %p61 = scmp.ne.s32.totalorder %s53, %s55
    %p62 = scmp.eq.s32.totalorder %s24, 1
    %p63 = por %p61, %p62
    %p64 = scmp.ne.s32.totalorder %s55, %s56
    %p65 = scmp.eq.s32.totalorder %s24, 0
    %p66 = por %p64, %p65
    %p67 = scmp.ne.s32.totalorder %s55, %s56
    %p68 = scmp.eq.s32.totalorder %s25, 1
    %p69 = por %p67, %p68
    %p71 = scmp.ne.s32.totalorder %s56, %s70
    %p72 = scmp.eq.s32.totalorder %s25, 0
    %p73 = por %p71, %p72
    %s75 = sadd.s32 %s74, 1
    %p78 = scmp.eq.s32.totalorder %s19, 1
    %p79 = scmp.ne.s32.totalorder %s74, %s76
    %p80 = scmp.eq.s32.totalorder %s19, 0
    %p81 = por %p79, %p80
    %p82 = scmp.ne.s32.totalorder %s74, %s76
    %p83 = scmp.eq.s32.totalorder %s24, 1
    %p84 = por %p82, %p83
    %p85 = scmp.ne.s32.totalorder %s76, %s77
    %p86 = scmp.eq.s32.totalorder %s24, 0
    %p87 = por %p85, %p86
    %p88 = scmp.ne.s32.totalorder %s76, %s77
    %p89 = scmp.eq.s32.totalorder %s25, 1
    %p90 = por %p88, %p89
    %p92 = scmp.ne.s32.totalorder %s77, %s91
    %p93 = scmp.eq.s32.totalorder %s25, 0
    %p94 = por %p92, %p93
    %s96 = sadd.s32 %s95, 1
    %p99 = scmp.eq.s32.totalorder %s19, 1
    %p100 = scmp.ne.s32.totalorder %s95, %s97
    %p101 = scmp.eq.s32.totalorder %s19, 0
    %p102 = por %p100, %p101
    %p103 = scmp.ne.s32.totalorder %s95, %s97
    %p104 = scmp.eq.s32.totalorder %s24, 1
    %p105 = por %p103, %p104
    %p106 = scmp.ne.s32.totalorder %s97, %s98
    %p107 = scmp.eq.s32.totalorder %s24, 0
    %p108 = por %p106, %p107
    %p109 = scmp.ne.s32.totalorder %s97, %s98
    %p110 = scmp.eq.s32.totalorder %s25, 1
    %p111 = por %p109, %p110
    %p113 = scmp.ne.s32.totalorder %s98, %s112
    %p114 = scmp.eq.s32.totalorder %s25, 0
    %p115 = por %p113, %p114
    %s117 = sadd.s32 %s116, 1
    %p120 = scmp.eq.s32.totalorder %s19, 1
    %p121 = scmp.ne.s32.totalorder %s116, %s118
    %p122 = scmp.eq.s32.totalorder %s19, 0
    %p123 = por %p121, %p122
    %p124 = scmp.ne.s32.totalorder %s116, %s118
    %p125 = scmp.eq.s32.totalorder %s24, 1
    %p126 = por %p124, %p125
    %p127 = scmp.ne.s32.totalorder %s118, %s119
    %p128 = scmp.eq.s32.totalorder %s24, 0
    %p129 = por %p127, %p128
    %p130 = scmp.ne.s32.totalorder %s118, %s119
    %p131 = scmp.eq.s32.totalorder %s25, 1
    %p132 = por %p130, %p131
    %p134 = scmp.ne.s32.totalorder %s119, %s133
    %p135 = scmp.eq.s32.totalorder %s25, 0
    %p136 = por %p134, %p135
    %s138 = sadd.s32 %s137, 1
    %p141 = scmp.eq.s32.totalorder %s19, 1
    %p142 = scmp.ne.s32.totalorder %s137, %s139
    %p143 = scmp.eq.s32.totalorder %s19, 0
    %p144 = por %p142, %p143
    %p145 = scmp.ne.s32.totalorder %s137, %s139
    %p146 = scmp.eq.s32.totalorder %s24, 1
    %p147 = por %p145, %p146
    %p148 = scmp.ne.s32.totalorder %s139, %s140
    %p149 = scmp.eq.s32.totalorder %s24, 0
    %p150 = por %p148, %p149
    %p151 = scmp.ne.s32.totalorder %s139, %s140
    %p152 = scmp.eq.s32.totalorder %s25, 1
    %p153 = por %p151, %p152
    %p155 = scmp.ne.s32.totalorder %s140, %s154
    %p156 = scmp.eq.s32.totalorder %s25, 0
    %p157 = por %p155, %p156
    %s159 = sadd.s32 %s158, 1
    %p162 = scmp.eq.s32.totalorder %s19, 1
    %p163 = scmp.ne.s32.totalorder %s158, %s160
    %p164 = scmp.eq.s32.totalorder %s19, 0
    %p165 = por %p163, %p164
    %p166 = scmp.ne.s32.totalorder %s158, %s160
    %p167 = scmp.eq.s32.totalorder %s24, 1
    %p168 = por %p166, %p167
    %p169 = scmp.ne.s32.totalorder %s160, %s161
    %p170 = scmp.eq.s32.totalorder %s24, 0
    %p171 = por %p169, %p170
    %p172 = scmp.ne.s32.totalorder %s160, %s161
    %p173 = scmp.eq.s32.totalorder %s25, 1
    %p174 = por %p172, %p173
    %p176 = scmp.ne.s32.totalorder %s161, %s175
    %p177 = scmp.eq.s32.totalorder %s25, 0
    %p178 = por %p176, %p177
    %s180 = sadd.s32 %s179, 1
    %p183 = scmp.eq.s32.totalorder %s19, 1
    %p184 = scmp.ne.s32.totalorder %s179, %s181
    %p185 = scmp.eq.s32.totalorder %s19, 0
    %p186 = por %p184, %p185
    %p187 = scmp.ne.s32.totalorder %s179, %s181
    %p188 = scmp.eq.s32.totalorder %s24, 1
    %p189 = por %p187, %p188
    %p190 = scmp.ne.s32.totalorder %s181, %s182
    %p191 = scmp.eq.s32.totalorder %s24, 0
    %p192 = por %p190, %p191
    %p193 = scmp.ne.s32.totalorder %s181, %s182
    %p194 = scmp.eq.s32.totalorder %s25, 1
    %p195 = por %p193, %p194
    %p197 = scmp.ne.s32.totalorder %s182, %s196
    %p198 = scmp.eq.s32.totalorder %s25, 0
    %p199 = por %p197, %p198
    %s201 = sadd.s32 %s200, 1
    %p204 = scmp.eq.s32.totalorder %s19, 1
    %p205 = scmp.ne.s32.totalorder %s200, %s202
    %p206 = scmp.eq.s32.totalorder %s19, 0
    %p207 = por %p205, %p206
    %p208 = scmp.ne.s32.totalorder %s200, %s202
    %p209 = scmp.eq.s32.totalorder %s24, 1
    %p210 = por %p208, %p209
    %p211 = scmp.ne.s32.totalorder %s202, %s203
    %p212 = scmp.eq.s32.totalorder %s24, 0
    %p213 = por %p211, %p212
    %p214 = scmp.ne.s32.totalorder %s202, %s203
    %p215 = scmp.eq.s32.totalorder %s25, 1
    %p216 = por %p214, %p215
    %p218 = scmp.ne.s32.totalorder %s203, %s217
    %p219 = scmp.eq.s32.totalorder %s25, 0
    %p220 = por %p218, %p219
    %s222 = sadd.s32 %s221, 1
    %p225 = scmp.eq.s32.totalorder %s19, 1
    %p226 = scmp.ne.s32.totalorder %s221, %s223
    %p227 = scmp.eq.s32.totalorder %s19, 0
    %p228 = por %p226, %p227
    %p229 = scmp.ne.s32.totalorder %s221, %s223
    %p230 = scmp.eq.s32.totalorder %s24, 1
    %p231 = por %p229, %p230
    %p232 = scmp.ne.s32.totalorder %s223, %s224
    %p233 = scmp.eq.s32.totalorder %s24, 0
    %p234 = por %p232, %p233
    %p235 = scmp.ne.s32.totalorder %s223, %s224
    %p236 = scmp.eq.s32.totalorder %s25, 1
    %p237 = por %p235, %p236
    %p239 = scmp.ne.s32.totalorder %s224, %s238
    %p240 = scmp.eq.s32.totalorder %s25, 0
    %p241 = por %p239, %p240
    %s243 = sadd.s32 %s242, 1
    %p246 = scmp.eq.s32.totalorder %s19, 1
    %p247 = scmp.ne.s32.totalorder %s242, %s244
    %p248 = scmp.eq.s32.totalorder %s19, 0
    %p249 = por %p247, %p248
    %p250 = scmp.ne.s32.totalorder %s242, %s244
    %p251 = scmp.eq.s32.totalorder %s24, 1
    %p252 = por %p250, %p251
    %p253 = scmp.ne.s32.totalorder %s244, %s245
    %p254 = scmp.eq.s32.totalorder %s24, 0
    %p255 = por %p253, %p254
    %p256 = scmp.ne.s32.totalorder %s244, %s245
    %p257 = scmp.eq.s32.totalorder %s25, 1
    %p258 = por %p256, %p257
    %p260 = scmp.ne.s32.totalorder %s245, %s259
    %p261 = scmp.eq.s32.totalorder %s25, 0
    %p262 = por %p260, %p261
    %s263 = ssub.s32 %s19, %s26
    %p264 = scmp.eq.s32.totalorder %s263, 0
    %s266 = sadd.s32 %s265, 1
    %s267 = scalar_select %p264, %s265, %s266
    %p270 = pneg %p264
    %p271 = scmp.eq.s32.totalorder %s19, 1
    %p272 = por %p270, %p271
    %p273 = scmp.ne.s32.totalorder %s265, %s268
    %p274 = scmp.eq.s32.totalorder %s19, 0
    %p275 = por %p273, %p274
    %p276 = scmp.ne.s32.totalorder %s265, %s268
    %p277 = scmp.eq.s32.totalorder %s24, 1
    %p278 = por %p276, %p277
    %p279 = scmp.ne.s32.totalorder %s268, %s269
    %p280 = scmp.eq.s32.totalorder %s24, 0
    %p281 = por %p279, %p280
    %p282 = scmp.ne.s32.totalorder %s268, %s269
    %p283 = scmp.eq.s32.totalorder %s25, 1
    %p284 = por %p282, %p283
    %p286 = scmp.ne.s32.totalorder %s269, %s285
    %p287 = scmp.eq.s32.totalorder %s25, 0
    %p288 = por %p286, %p287
    %p289 = scmp.le.s32.totalorder 1, %s19
    %p290 = scmp.lt.s32.totalorder %s19, 3
    %p291 = pnand %p289, %p290
    %p292 = pneg %p291
    // Predicated region
    $region9: #{_encoder_forward.37} parent=5 // pred_check
      _
    $region10: #{_encoder_forward.37} parent=5 // pred_check_branch
      %294 = sbr.rel (%p291) target = $region12
    $region11: #{_encoder_forward.37} parent=5 // pred_region
      %s295 = ssub.s32 %s19, 1
      // Predicated region
      $region13: #{_encoder_forward.37} parent=11 // pred_check
        %p296 = pneg %p66
      $region14: #{_encoder_forward.37} parent=11 // pred_check_branch
        %298 = sbr.rel (%p296) target = $region16
      $region15: #{_encoder_forward.37} parent=11 // pred_region
        _
      $region16: #{_encoder_forward.37} parent=11 // pred_fallthru
        _
      // Predicated region
      $region17: #{_encoder_forward.37} parent=11 // pred_check
        %p299 = pneg %p87
      $region18: #{_encoder_forward.37} parent=11 // pred_check_branch
        %301 = sbr.rel (%p299) target = $region20
      $region19: #{_encoder_forward.37} parent=11 // pred_region
        _
      $region20: #{_encoder_forward.37} parent=11 // pred_fallthru
        _
      // Predicated region
      $region21: #{_encoder_forward.37} parent=11 // pred_check
        %p302 = pneg %p108
      $region22: #{_encoder_forward.37} parent=11 // pred_check_branch
        %304 = sbr.rel (%p302) target = $region24
      $region23: #{_encoder_forward.37} parent=11 // pred_region
        _
      $region24: #{_encoder_forward.37} parent=11 // pred_fallthru
        _
      // Predicated region
      $region25: #{_encoder_forward.37} parent=11 // pred_check
        %p305 = pneg %p129
      $region26: #{_encoder_forward.37} parent=11 // pred_check_branch
        %307 = sbr.rel (%p305) target = $region28
      $region27: #{_encoder_forward.37} parent=11 // pred_region
        _
      $region28: #{_encoder_forward.37} parent=11 // pred_fallthru
        _
      // Predicated region
      $region29: #{_encoder_forward.37} parent=11 // pred_check
        %p308 = pneg %p150
      $region30: #{_encoder_forward.37} parent=11 // pred_check_branch
        %310 = sbr.rel (%p308) target = $region32
      $region31: #{_encoder_forward.37} parent=11 // pred_region
        _
      $region32: #{_encoder_forward.37} parent=11 // pred_fallthru
        _
      // Predicated region
      $region33: #{_encoder_forward.37} parent=11 // pred_check
        %p311 = pneg %p171
      $region34: #{_encoder_forward.37} parent=11 // pred_check_branch
        %313 = sbr.rel (%p311) target = $region36
      $region35: #{_encoder_forward.37} parent=11 // pred_region
        _
      $region36: #{_encoder_forward.37} parent=11 // pred_fallthru
        _
      // Predicated region
      $region37: #{_encoder_forward.37} parent=11 // pred_check
        %p314 = pneg %p192
      $region38: #{_encoder_forward.37} parent=11 // pred_check_branch
        %316 = sbr.rel (%p314) target = $region40
      $region39: #{_encoder_forward.37} parent=11 // pred_region
        _
      $region40: #{_encoder_forward.37} parent=11 // pred_fallthru
        _
      // Predicated region
      $region41: #{_encoder_forward.37} parent=11 // pred_check
        %p317 = pneg %p213
      $region42: #{_encoder_forward.37} parent=11 // pred_check_branch
        %319 = sbr.rel (%p317) target = $region44
      $region43: #{_encoder_forward.37} parent=11 // pred_region
        _
      $region44: #{_encoder_forward.37} parent=11 // pred_fallthru
        _
      // Predicated region
      $region45: #{_encoder_forward.37} parent=11 // pred_check
        %p320 = pneg %p234
      $region46: #{_encoder_forward.37} parent=11 // pred_check_branch
        %322 = sbr.rel (%p320) target = $region48
      $region47: #{_encoder_forward.37} parent=11 // pred_region
        _
      $region48: #{_encoder_forward.37} parent=11 // pred_fallthru
        _
      // Predicated region
      $region49: #{_encoder_forward.37} parent=11 // pred_check
        %p323 = pneg %p255
      $region50: #{_encoder_forward.37} parent=11 // pred_check_branch
        %325 = sbr.rel (%p323) target = $region52
      $region51: #{_encoder_forward.37} parent=11 // pred_region
        _
      $region52: #{_encoder_forward.37} parent=11 // pred_fallthru
        _
    $region12: #{_encoder_forward.37} parent=5 // pred_fallthru
      _
    %p326 = scmp.lt.s32.totalorder %s19, 2
    // Predicated region
    $region53: #{_encoder_forward.37} parent=5 // pred_check
      %p327 = pneg %p326
    $region54: #{_encoder_forward.37} parent=5 // pred_check_branch
      %329 = sbr.rel (%p327) target = $region56
    $region55: #{_encoder_forward.37} parent=5 // pred_region
      // Predicated region
      $region57: #{_encoder_forward.37} parent=55 // pred_check
        %p330 = pneg %p39
      $region58: #{_encoder_forward.37} parent=55 // pred_check_branch
        %332 = sbr.rel (%p330) target = $region60
      $region59: #{_encoder_forward.37} parent=55 // pred_region
        %p333 = scmp.lt.s32.totalorder %s19, 1
        %s334 = scalar_select %p333, %s19, 1
        %s335 = smul.addr %s334, 8
        %s336 = scalar_lea.vmem %s0, %s335
      $region60: #{_encoder_forward.37} parent=55 // pred_fallthru
        _
    $region56: #{_encoder_forward.37} parent=5 // pred_fallthru
      _
    %p337 = scmp.le.s32.totalorder 1, %s19
    %p338 = scmp.lt.s32.totalorder %s19, 3
    %p339 = pnand %p337, %p338
    %p340 = pneg %p339
    // Predicated region
    $region61: #{_encoder_forward.37} parent=5 // pred_check
      _
    $region62: #{_encoder_forward.37} parent=5 // pred_check_branch
      %342 = sbr.rel (%p339) target = $region64
    $region63: #{_encoder_forward.37} parent=5 // pred_region
      %s343 = ssub.s32 %s19, 1
      %p344 = scmp.lt.s32.totalorder %s24, 1
      %s345 = scalar_select %p344, %s24, 1
      %s346 = smul.addr %s345, 8
      %s347 = scalar_lea.vmem %s0, %s346
      %p348 = pneg %p45
      %p349 = pneg %p42
      %p350 = pneg %p66
      %p351 = pneg %p63
      %p352 = pneg %p87
      %p353 = pneg %p84
      %p354 = pneg %p108
      %p355 = pneg %p105
      %p356 = pneg %p129
      %p357 = pneg %p126
      %p358 = pneg %p150
      %p359 = pneg %p147
      %p360 = pneg %p171
      %p361 = pneg %p168
      %p362 = pneg %p192
      %p363 = pneg %p189
      %p364 = pneg %p213
      %p365 = pneg %p210
      %p366 = pneg %p234
      %p367 = pneg %p231
      %p368 = pneg %p255
      %p369 = pneg %p252
      %p370 = pneg %p281
      %p371 = pneg %p278
      %p372 = scmp.lt.s32.totalorder %s24, 1
      %s373 = scalar_select %p372, %s24, 1
      %s374 = smul.addr %s373, 8
      %s375 = scalar_lea.vmem %s11, %s374
      %p376 = scmp.lt.s32.totalorder %s24, 1
      %s377 = scalar_select %p376, %s24, 1
      %s378 = smul.addr %s377, 8
      %s379 = scalar_lea.vmem %s0, %s378
      %p380 = scmp.lt.s32.totalorder %s24, 1
      %s381 = scalar_select %p380, %s24, 1
      %s382 = smul.addr %s381, 8
      %s383 = scalar_lea.vmem %s11, %s382
      %v384 = vld [vmem:[%s379] sm:$0xff]
      %v385 = vlaneseq
      %v386 = vshrl.u32 %v385, 7
      %v387 = vlaneseq
      %v388 = vand.u32 %v387, 127
      %v389 = vsub.s32 %v386, 1
      %vm390 = vcmp.eq.s32.totalorder %v388, %v389
      %v391 = vsel %vm390, 1, 0
      %v392 = vcvt.s32.f32 %v391
      %v393 = vadd.s32 %v386, 1
      %vm394 = vcmp.eq.s32.totalorder %v388, %v393
      %v395 = vsel %vm394, 1, 0
      %v396 = vcvt.s32.f32 %v395
      %vm397 = vcmask 64512
      %v399 = vsel %vm397, %v392, 0
      %401 = vmatprep.subr.mxu0 0.0
      %402 = vmatpush1.msra.mxu0 %v384
      %403 = vmatprep.subr.mxu0 0.0
      %404 = vmatpush1.msra.mxu0 0.0
      %405 = vmatprep.subr.mxu0 0.0
      %406 = vmatpush1.msra.mxu0 0.0
      %407 = vmatprep.subr.mxu0 0.0
      %408 = vmatpush1.msra.mxu0 0.0
      %409 = vmatprep.subr.mxu0 0.0
      %410 = vmatpush1.msra.mxu0 0.0
      %411 = vmatprep.subr.mxu0 0.0
      %412 = vmatpush1.msra.mxu0 0.0
      %413 = vmatprep.subr.mxu0 0.0
      %414 = vmatpush1.msra.mxu0 0.0
      %415 = vmatprep.subr.mxu0 0.0
      %416 = vmatpush1.msra.mxu0 0.0
      %417 = vmatprep.subr.mxu0 0.0
      %418 = vmatpush1.msra.mxu0 0.0
      %419 = vmatprep.subr.mxu0 0.0
      %420 = vmatpush1.msra.mxu0 0.0
      %421 = vmatprep.subr.mxu0 0.0
      %422 = vmatpush1.msra.mxu0 0.0
      %423 = vmatprep.subr.mxu0 0.0
      %424 = vmatpush1.msra.mxu0 0.0
      %425 = vmatprep.subr.mxu0 0.0
      %426 = vmatpush1.msra.mxu0 0.0
      %427 = vmatprep.subr.mxu0 0.0
      %428 = vmatpush1.msra.mxu0 0.0
      %429 = vmatprep.subr.mxu0 0.0
      %430 = vmatpush1.msra.mxu0 0.0
      %431 = vmatprep.subr.mxu0 0.0
      %432 = vmatpush1.msra.mxu0 0.0
      %433 = vmatprep.subr.mxu0 0.0
      %434 = vmatpush1.msra.mxu0 0.0
      %435 = vmatprep.subr.mxu0 0.0
      %436 = vmatpush1.msra.mxu0 0.0
      %437 = vmatprep.subr.mxu0 0.0
      %438 = vmatpush1.msra.mxu0 0.0
      %439 = vmatprep.subr.mxu0 0.0
      %440 = vmatpush1.msra.mxu0 0.0
      %441 = vmatprep.subr.mxu0 0.0
      %442 = vmatpush1.msra.mxu0 0.0
      %443 = vmatprep.subr.mxu0 0.0
      %444 = vmatpush1.msra.mxu0 0.0
      %445 = vmatprep.subr.mxu0 0.0
      %446 = vmatpush1.msra.mxu0 0.0
      %447 = vmatprep.subr.mxu0 0.0
      %448 = vmatpush1.msra.mxu0 0.0
      %449 = vmatprep.subr.mxu0 0.0
      %450 = vmatpush1.msra.mxu0 0.0
      %451 = vmatprep.subr.mxu0 0.0
      %452 = vmatpush1.msra.mxu0 0.0
      %453 = vmatprep.subr.mxu0 0.0
      %454 = vmatpush1.msra.mxu0 0.0
      %455 = vmatprep.subr.mxu0 0.0
      %456 = vmatpush1.msra.mxu0 0.0
      %457 = vmatprep.subr.mxu0 0.0
      %458 = vmatpush1.msra.mxu0 0.0
      %459 = vmatprep.subr.mxu0 0.0
      %460 = vmatpush1.msra.mxu0 0.0
      %461 = vmatprep.subr.mxu0 0.0
      %462 = vmatpush1.msra.mxu0 0.0
      %463 = vmatprep.subr.mxu0 0.0
      %464 = vmatpush1.msra.mxu0 0.0
      %465 = vmatprep.mubr.f32.mxu0 0.0
      %466 = vmatmul.mubr.f32.gmra.mrb[0].mxu0 %v399
      %v467 = vpop.f32.mrb[0].mxu0
      %v468 = vadd.f32 0.0, %v467
      %v469 = vpop.f32.mrb[0].mxu0
      %470 = vdwg.mxu0
      %v472 = vsel %vm397, %v396, 0
      %474 = vmatprep.subr.mxu0 0.0
      %475 = vmatpush1.msra.mxu0 %v384
      %476 = vmatprep.subr.mxu0 0.0
      %477 = vmatpush1.msra.mxu0 0.0
      %478 = vmatprep.subr.mxu0 0.0
      %479 = vmatpush1.msra.mxu0 0.0
      %480 = vmatprep.subr.mxu0 0.0
      %481 = vmatpush1.msra.mxu0 0.0
      %482 = vmatprep.subr.mxu0 0.0
      %483 = vmatpush1.msra.mxu0 0.0
      %484 = vmatprep.subr.mxu0 0.0
      %485 = vmatpush1.msra.mxu0 0.0
      %486 = vmatprep.subr.mxu0 0.0
      %487 = vmatpush1.msra.mxu0 0.0
      %488 = vmatprep.subr.mxu0 0.0
      %489 = vmatpush1.msra.mxu0 0.0
      %490 = vmatprep.subr.mxu0 0.0
      %491 = vmatpush1.msra.mxu0 0.0
      %492 = vmatprep.subr.mxu0 0.0
      %493 = vmatpush1.msra.mxu0 0.0
      %494 = vmatprep.subr.mxu0 0.0
      %495 = vmatpush1.msra.mxu0 0.0
      %496 = vmatprep.subr.mxu0 0.0
      %497 = vmatpush1.msra.mxu0 0.0
      %498 = vmatprep.subr.mxu0 0.0
      %499 = vmatpush1.msra.mxu0 0.0
      %500 = vmatprep.subr.mxu0 0.0
      %501 = vmatpush1.msra.mxu0 0.0
      %502 = vmatprep.subr.mxu0 0.0
      %503 = vmatpush1.msra.mxu0 0.0
      %504 = vmatprep.subr.mxu0 0.0
      %505 = vmatpush1.msra.mxu0 0.0
      %506 = vmatprep.subr.mxu0 0.0
      %507 = vmatpush1.msra.mxu0 0.0
      %508 = vmatprep.subr.mxu0 0.0
      %509 = vmatpush1.msra.mxu0 0.0
      %510 = vmatprep.subr.mxu0 0.0
      %511 = vmatpush1.msra.mxu0 0.0
      %512 = vmatprep.subr.mxu0 0.0
      %513 = vmatpush1.msra.mxu0 0.0
      %514 = vmatprep.subr.mxu0 0.0
      %515 = vmatpush1.msra.mxu0 0.0
      %516 = vmatprep.subr.mxu0 0.0
      %517 = vmatpush1.msra.mxu0 0.0
      %518 = vmatprep.subr.mxu0 0.0
      %519 = vmatpush1.msra.mxu0 0.0
      %520 = vmatprep.subr.mxu0 0.0
      %521 = vmatpush1.msra.mxu0 0.0
      %522 = vmatprep.subr.mxu0 0.0
      %523 = vmatpush1.msra.mxu0 0.0
      %524 = vmatprep.subr.mxu0 0.0
      %525 = vmatpush1.msra.mxu0 0.0
      %526 = vmatprep.subr.mxu0 0.0
      %527 = vmatpush1.msra.mxu0 0.0
      %528 = vmatprep.subr.mxu0 0.0
      %529 = vmatpush1.msra.mxu0 0.0
      %530 = vmatprep.subr.mxu0 0.0
      %531 = vmatpush1.msra.mxu0 0.0
      %532 = vmatprep.subr.mxu0 0.0
      %533 = vmatpush1.msra.mxu0 0.0
      %534 = vmatprep.subr.mxu0 0.0
      %535 = vmatpush1.msra.mxu0 0.0
      %536 = vmatprep.subr.mxu0 0.0
      %537 = vmatpush1.msra.mxu0 0.0
      %538 = vmatprep.mubr.f32.mxu0 0.0
      %539 = vmatmul.mubr.f32.gmra.mrb[0].mxu0 %v472
      %v540 = vpop.f32.mrb[0].mxu0
      %v541 = vadd.f32 0.0, %v540
      %v542 = vpop.f32.mrb[0].mxu0
      %543 = vdwg.mxu0
      %v544 = vld [vmem:[%s1] sm:$0xff]
      %v545 = vld [vmem:[%s1 + $0x8] sm:$0xff]
      %v546 = vld [vmem:[%s1 + $0x10] sm:$0xff]
      %v547 = vld [vmem:[%s1 + $0x18] sm:$0xff]
      %s548 = scalar_lea.vmem %s1, 32
      %v549 = vld [vmem:[%s548] sm:$0xff]
      %v550 = vld [vmem:[%s548 + $0x8] sm:$0xff]
      %v551 = vld [vmem:[%s548 + $0x10] sm:$0xff]
      %v552 = vld [vmem:[%s548 + $0x18] sm:$0xff]
      %vm553 = vcmask 261120
      %v555 = vsel %vm553, %v384, 0
      %557 = vmatprep.subr.mxu0 0.0
      %558 = vmatpush1.msra.mxu0 %v549
      %559 = vmatprep.subr.mxu0 0.0
      %560 = vmatpush1.msra.mxu0 %v550
      %561 = vmatprep.subr.mxu0 0.0
      %562 = vmatpush1.msra.mxu0 %v551
      %563 = vmatprep.subr.mxu0 0.0
      %564 = vmatpush1.msra.mxu0 %v552
      %565 = vmatprep.subr.mxu0 0.0
      %566 = vmatpush1.msra.mxu0 0.0
      %567 = vmatprep.subr.mxu0 0.0
      %568 = vmatpush1.msra.mxu0 0.0
      %569 = vmatprep.subr.mxu0 0.0
      %570 = vmatpush1.msra.mxu0 0.0
      %571 = vmatprep.subr.mxu0 0.0
      %572 = vmatpush1.msra.mxu0 0.0
      %573 = vmatprep.subr.mxu0 0.0
      %574 = vmatpush1.msra.mxu0 0.0
      %575 = vmatprep.subr.mxu0 0.0
      %576 = vmatpush1.msra.mxu0 0.0
      %577 = vmatprep.subr.mxu0 0.0
      %578 = vmatpush1.msra.mxu0 0.0
      %579 = vmatprep.subr.mxu0 0.0
      %580 = vmatpush1.msra.mxu0 0.0
      %581 = vmatprep.subr.mxu0 0.0
      %582 = vmatpush1.msra.mxu0 0.0
      %583 = vmatprep.subr.mxu0 0.0
      %584 = vmatpush1.msra.mxu0 0.0
      %585 = vmatprep.subr.mxu0 0.0
      %586 = vmatpush1.msra.mxu0 0.0
      %587 = vmatprep.subr.mxu0 0.0
      %588 = vmatpush1.msra.mxu0 0.0
      %589 = vmatprep.subr.mxu0 0.0
      %590 = vmatpush1.msra.mxu0 0.0
      %591 = vmatprep.subr.mxu0 0.0
      %592 = vmatpush1.msra.mxu0 0.0
      %593 = vmatprep.subr.mxu0 0.0
      %594 = vmatpush1.msra.mxu0 0.0
      %595 = vmatprep.subr.mxu0 0.0
      %596 = vmatpush1.msra.mxu0 0.0
      %597 = vmatprep.subr.mxu0 0.0
      %598 = vmatpush1.msra.mxu0 0.0
      %599 = vmatprep.subr.mxu0 0.0
      %600 = vmatpush1.msra.mxu0 0.0
      %601 = vmatprep.subr.mxu0 0.0
      %602 = vmatpush1.msra.mxu0 0.0
      %603 = vmatprep.subr.mxu0 0.0
      %604 = vmatpush1.msra.mxu0 0.0
      %605 = vmatprep.subr.mxu0 0.0
      %606 = vmatpush1.msra.mxu0 0.0
      %607 = vmatprep.subr.mxu0 0.0
      %608 = vmatpush1.msra.mxu0 0.0
      %609 = vmatprep.subr.mxu0 0.0
      %610 = vmatpush1.msra.mxu0 0.0
      %611 = vmatprep.subr.mxu0 0.0
      %612 = vmatpush1.msra.mxu0 0.0
      %613 = vmatprep.subr.mxu0 0.0
      %614 = vmatpush1.msra.mxu0 0.0
      %615 = vmatprep.subr.mxu0 0.0
      %616 = vmatpush1.msra.mxu0 0.0
      %617 = vmatprep.subr.mxu0 0.0
      %618 = vmatpush1.msra.mxu0 0.0
      %619 = vmatprep.subr.mxu0 0.0
      %620 = vmatpush1.msra.mxu0 0.0
      %621 = vmatprep.mubr.f32.mxu0 0.0
      %622 = vmatmul.mubr.f32.gmra.mrb[0].mxu0 %v555
      %v623 = vpop.f32.mrb[0].mxu0
      %v624 = vadd.f32 0.0, %v623
      %v625 = vpop.f32.mrb[0].mxu0
      %626 = vdwg.mxu0
      %v628 = vsel %vm553, %v468, 0
      %630 = vmatprep.subr.mxu0 0.0
      %631 = vmatpush1.msra.mxu0 %v544
      %632 = vmatprep.subr.mxu0 0.0
      %633 = vmatpush1.msra.mxu0 %v545
      %634 = vmatprep.subr.mxu0 0.0
      %635 = vmatpush1.msra.mxu0 %v546
      %636 = vmatprep.subr.mxu0 0.0
      %637 = vmatpush1.msra.mxu0 %v547
      %638 = vmatprep.subr.mxu0 0.0
      %639 = vmatpush1.msra.mxu0 0.0
      %640 = vmatprep.subr.mxu0 0.0
      %641 = vmatpush1.msra.mxu0 0.0
      %642 = vmatprep.subr.mxu0 0.0
      %643 = vmatpush1.msra.mxu0 0.0
      %644 = vmatprep.subr.mxu0 0.0
      %645 = vmatpush1.msra.mxu0 0.0
      %646 = vmatprep.subr.mxu0 0.0
      %647 = vmatpush1.msra.mxu0 0.0
      %648 = vmatprep.subr.mxu0 0.0
      %649 = vmatpush1.msra.mxu0 0.0
      %650 = vmatprep.subr.mxu0 0.0
      %651 = vmatpush1.msra.mxu0 0.0
      %652 = vmatprep.subr.mxu0 0.0
      %653 = vmatpush1.msra.mxu0 0.0
      %654 = vmatprep.subr.mxu0 0.0
      %655 = vmatpush1.msra.mxu0 0.0
      %656 = vmatprep.subr.mxu0 0.0
      %657 = vmatpush1.msra.mxu0 0.0
      %658 = vmatprep.subr.mxu0 0.0
      %659 = vmatpush1.msra.mxu0 0.0
      %660 = vmatprep.subr.mxu0 0.0
      %661 = vmatpush1.msra.mxu0 0.0
      %662 = vmatprep.subr.mxu0 0.0
      %663 = vmatpush1.msra.mxu0 0.0
      %664 = vmatprep.subr.mxu0 0.0
      %665 = vmatpush1.msra.mxu0 0.0
      %666 = vmatprep.subr.mxu0 0.0
      %667 = vmatpush1.msra.mxu0 0.0
      %668 = vmatprep.subr.mxu0 0.0
      %669 = vmatpush1.msra.mxu0 0.0
      %670 = vmatprep.subr.mxu0 0.0
      %671 = vmatpush1.msra.mxu0 0.0
      %672 = vmatprep.subr.mxu0 0.0
      %673 = vmatpush1.msra.mxu0 0.0
      %674 = vmatprep.subr.mxu0 0.0
      %675 = vmatpush1.msra.mxu0 0.0
      %676 = vmatprep.subr.mxu0 0.0
      %677 = vmatpush1.msra.mxu0 0.0
      %678 = vmatprep.subr.mxu0 0.0
      %679 = vmatpush1.msra.mxu0 0.0
      %680 = vmatprep.subr.mxu0 0.0
      %681 = vmatpush1.msra.mxu0 0.0
      %682 = vmatprep.subr.mxu0 0.0
      %683 = vmatpush1.msra.mxu0 0.0
      %684 = vmatprep.subr.mxu0 0.0
      %685 = vmatpush1.msra.mxu0 0.0
      %686 = vmatprep.subr.mxu0 0.0
      %687 = vmatpush1.msra.mxu0 0.0
      %688 = vmatprep.subr.mxu0 0.0
      %689 = vmatpush1.msra.mxu0 0.0
      %690 = vmatprep.subr.mxu0 0.0
      %691 = vmatpush1.msra.mxu0 0.0
      %692 = vmatprep.subr.mxu0 0.0
      %693 = vmatpush1.msra.mxu0 0.0
      %694 = vmatprep.mubr.f32.mxu0 0.0
      %695 = vmatmul.mubr.f32.gmra.mrb[0].mxu0 %v628
      %v696 = vpop.f32.mrb[0].mxu0
      %v697 = vadd.f32 %v624, %v696
      %v698 = vpop.f32.mrb[0].mxu0
      %699 = vdwg.mxu0
      %s700 = scalar_lea.vmem %s1, 64
      %v701 = vld [vmem:[%s700] sm:$0xff]
      %v702 = vld [vmem:[%s700 + $0x8] sm:$0xff]
      %v703 = vld [vmem:[%s700 + $0x10] sm:$0xff]
      %v704 = vld [vmem:[%s700 + $0x18] sm:$0xff]
      %v706 = vsel %vm553, %v541, 0
      %708 = vmatprep.subr.mxu0 0.0
      %709 = vmatpush1.msra.mxu0 %v701
      %710 = vmatprep.subr.mxu0 0.0
      %711 = vmatpush1.msra.mxu0 %v702
      %712 = vmatprep.subr.mxu0 0.0
      %713 = vmatpush1.msra.mxu0 %v703
      %714 = vmatprep.subr.mxu0 0.0
      %715 = vmatpush1.msra.mxu0 %v704
      %716 = vmatprep.subr.mxu0 0.0
      %717 = vmatpush1.msra.mxu0 0.0
      %718 = vmatprep.subr.mxu0 0.0
      %719 = vmatpush1.msra.mxu0 0.0
      %720 = vmatprep.subr.mxu0 0.0
      %721 = vmatpush1.msra.mxu0 0.0
      %722 = vmatprep.subr.mxu0 0.0
      %723 = vmatpush1.msra.mxu0 0.0
      %724 = vmatprep.subr.mxu0 0.0
      %725 = vmatpush1.msra.mxu0 0.0
      %726 = vmatprep.subr.mxu0 0.0
      %727 = vmatpush1.msra.mxu0 0.0
      %728 = vmatprep.subr.mxu0 0.0
      %729 = vmatpush1.msra.mxu0 0.0
      %730 = vmatprep.subr.mxu0 0.0
      %731 = vmatpush1.msra.mxu0 0.0
      %732 = vmatprep.subr.mxu0 0.0
      %733 = vmatpush1.msra.mxu0 0.0
      %734 = vmatprep.subr.mxu0 0.0
      %735 = vmatpush1.msra.mxu0 0.0
      %736 = vmatprep.subr.mxu0 0.0
      %737 = vmatpush1.msra.mxu0 0.0
      %738 = vmatprep.subr.mxu0 0.0
      %739 = vmatpush1.msra.mxu0 0.0
      %740 = vmatprep.subr.mxu0 0.0
      %741 = vmatpush1.msra.mxu0 0.0
      %742 = vmatprep.subr.mxu0 0.0
      %743 = vmatpush1.msra.mxu0 0.0
      %744 = vmatprep.subr.mxu0 0.0
      %745 = vmatpush1.msra.mxu0 0.0
      %746 = vmatprep.subr.mxu0 0.0
      %747 = vmatpush1.msra.mxu0 0.0
      %748 = vmatprep.subr.mxu0 0.0
      %749 = vmatpush1.msra.mxu0 0.0
      %750 = vmatprep.subr.mxu0 0.0
      %751 = vmatpush1.msra.mxu0 0.0
      %752 = vmatprep.subr.mxu0 0.0
      %753 = vmatpush1.msra.mxu0 0.0
      %754 = vmatprep.subr.mxu0 0.0
      %755 = vmatpush1.msra.mxu0 0.0
      %756 = vmatprep.subr.mxu0 0.0
      %757 = vmatpush1.msra.mxu0 0.0
      %758 = vmatprep.subr.mxu0 0.0
      %759 = vmatpush1.msra.mxu0 0.0
      %760 = vmatprep.subr.mxu0 0.0
      %761 = vmatpush1.msra.mxu0 0.0
      %762 = vmatprep.subr.mxu0 0.0
      %763 = vmatpush1.msra.mxu0 0.0
      %764 = vmatprep.subr.mxu0 0.0
      %765 = vmatpush1.msra.mxu0 0.0
      %766 = vmatprep.subr.mxu0 0.0
      %767 = vmatpush1.msra.mxu0 0.0
      %768 = vmatprep.subr.mxu0 0.0
      %769 = vmatpush1.msra.mxu0 0.0
      %770 = vmatprep.subr.mxu0 0.0
      %771 = vmatpush1.msra.mxu0 0.0
      %772 = vmatprep.mubr.f32.mxu0 0.0
      %773 = vmatmul.mubr.f32.gmra.mrb[0].mxu0 %v706
      %v774 = vpop.f32.mrb[0].mxu0
      %v775 = vadd.f32 0.0, %v774
      %v776 = vpop.f32.mrb[0].mxu0
      %777 = vdwg.mxu0
      %v778 = vadd.f32 %v697, %v775
      %v779 = vld [vmem:[%s2] sm:$0x1]
      %v781 = vlaneseq
      %v782 = vshrl.u32 %v781, 7
      %v783 = vsub.s32 0, %v782
      %v784 = vrot.slane %v779, %v783
      %v786 = vadd.f32 %v778, %v784
      %v787 = vld [vmem:[%s3] sm:$0x1]
      %v788 = vld [vmem:[%s4] sm:$0x1]
      %v789 = vsel %vm553, %v786, 0.0
      %790 = vadd.xlane.f32.xlu0 %v789
      %v791 = vpop.xlane.xlu0 %790
      %v792 = vrcp.pop 32.0
      %v793 = vmul.f32 %v791, %v792
      %v794 = vsub.f32 %v786, %v793
      %v795 = vmul.f32 %v794, %v794
      %v796 = vsel %vm553, %v795, 0.0
      %797 = vadd.xlane.f32.xlu0 %v796
      %v798 = vpop.xlane.xlu0 %797
      %v799 = vmul.f32 %v798, %v792
      %v800 = vadd.f32 %v799, 1e-05
      %v801 = vrsqrt.pop %v800
      %v802 = vmul.f32 %v794, %v801
      %v804 = vlaneseq
      %v805 = vshrl.u32 %v804, 7
      %v806 = vsub.s32 0, %v805
      %v807 = vrot.slane %v787, %v806
      %v809 = vmul.f32 %v802, %v807
      %v811 = vlaneseq
      %v812 = vshrl.u32 %v811, 7
      %v813 = vsub.s32 0, %v812
      %v814 = vrot.slane %v788, %v813
      %v816 = vadd.f32 %v809, %v814
      %v817 = vmax.f32 %v816, 0.0
      %818 = vmatprep.subr.mxu0 0.0
      %819 = vmatpush1.msra.mxu0 %v817
      %820 = vmatprep.subr.mxu0 0.0
      %821 = vmatpush1.msra.mxu0 0.0
      %822 = vmatprep.subr.mxu0 0.0
      %823 = vmatpush1.msra.mxu0 0.0
      %824 = vmatprep.subr.mxu0 0.0
      %825 = vmatpush1.msra.mxu0 0.0
      %826 = vmatprep.subr.mxu0 0.0
      %827 = vmatpush1.msra.mxu0 0.0
      %828 = vmatprep.subr.mxu0 0.0
      %829 = vmatpush1.msra.mxu0 0.0
      %830 = vmatprep.subr.mxu0 0.0
      %831 = vmatpush1.msra.mxu0 0.0
      %832 = vmatprep.subr.mxu0 0.0
      %833 = vmatpush1.msra.mxu0 0.0
      %834 = vmatprep.subr.mxu0 0.0
      %835 = vmatpush1.msra.mxu0 0.0
      %836 = vmatprep.subr.mxu0 0.0
      %837 = vmatpush1.msra.mxu0 0.0
      %838 = vmatprep.subr.mxu0 0.0
      %839 = vmatpush1.msra.mxu0 0.0
      %840 = vmatprep.subr.mxu0 0.0
      %841 = vmatpush1.msra.mxu0 0.0
      %842 = vmatprep.subr.mxu0 0.0
      %843 = vmatpush1.msra.mxu0 0.0
      %844 = vmatprep.subr.mxu0 0.0
      %845 = vmatpush1.msra.mxu0 0.0
      %846 = vmatprep.subr.mxu0 0.0
      %847 = vmatpush1.msra.mxu0 0.0
      %848 = vmatprep.subr.mxu0 0.0
      %849 = vmatpush1.msra.mxu0 0.0
      %850 = vmatprep.subr.mxu0 0.0
      %851 = vmatpush1.msra.mxu0 0.0
      %852 = vmatprep.subr.mxu0 0.0
      %853 = vmatpush1.msra.mxu0 0.0
      %854 = vmatprep.subr.mxu0 0.0
      %855 = vmatpush1.msra.mxu0 0.0
      %856 = vmatprep.subr.mxu0 0.0
      %857 = vmatpush1.msra.mxu0 0.0
      %858 = vmatprep.subr.mxu0 0.0
      %859 = vmatpush1.msra.mxu0 0.0
      %860 = vmatprep.subr.mxu0 0.0
      %861 = vmatpush1.msra.mxu0 0.0
      %862 = vmatprep.subr.mxu0 0.0
      %863 = vmatpush1.msra.mxu0 0.0
      %864 = vmatprep.subr.mxu0 0.0
      %865 = vmatpush1.msra.mxu0 0.0
      %866 = vmatprep.subr.mxu0 0.0
      %867 = vmatpush1.msra.mxu0 0.0
      %868 = vmatprep.subr.mxu0 0.0
      %869 = vmatpush1.msra.mxu0 0.0
      %870 = vmatprep.subr.mxu0 0.0
      %871 = vmatpush1.msra.mxu0 0.0
      %872 = vmatprep.subr.mxu0 0.0
      %873 = vmatpush1.msra.mxu0 0.0
      %874 = vmatprep.subr.mxu0 0.0
      %875 = vmatpush1.msra.mxu0 0.0
      %876 = vmatprep.subr.mxu0 0.0
      %877 = vmatpush1.msra.mxu0 0.0
      %878 = vmatprep.subr.mxu0 0.0
      %879 = vmatpush1.msra.mxu0 0.0
      %880 = vmatprep.subr.mxu0 0.0
      %881 = vmatpush1.msra.mxu0 0.0
      %882 = vmatprep.mubr.f32.mxu0 0.0
      %883 = vmatmul.mubr.f32.gmra.mrb[0].mxu0 %v399
      %v884 = vpop.f32.mrb[0].mxu0
      %v885 = vadd.f32 0.0, %v884
      %v886 = vpop.f32.mrb[0].mxu0
      %887 = vdwg.mxu0
      %888 = vmatprep.subr.mxu0 0.0
      %889 = vmatpush1.msra.mxu0 %v817
      %890 = vmatprep.subr.mxu0 0.0
      %891 = vmatpush1.msra.mxu0 0.0
      %892 = vmatprep.subr.mxu0 0.0
      %893 = vmatpush1.msra.mxu0 0.0
      %894 = vmatprep.subr.mxu0 0.0
      %895 = vmatpush1.msra.mxu0 0.0
      %896 = vmatprep.subr.mxu0 0.0
      %897 = vmatpush1.msra.mxu0 0.0
      %898 = vmatprep.subr.mxu0 0.0
      %899 = vmatpush1.msra.mxu0 0.0
      %900 = vmatprep.subr.mxu0 0.0
      %901 = vmatpush1.msra.mxu0 0.0
      %902 = vmatprep.subr.mxu0 0.0
      %903 = vmatpush1.msra.mxu0 0.0
      %904 = vmatprep.subr.mxu0 0.0
      %905 = vmatpush1.msra.mxu0 0.0
      %906 = vmatprep.subr.mxu0 0.0
      %907 = vmatpush1.msra.mxu0 0.0
      %908 = vmatprep.subr.mxu0 0.0
      %909 = vmatpush1.msra.mxu0 0.0
      %910 = vmatprep.subr.mxu0 0.0
      %911 = vmatpush1.msra.mxu0 0.0
      %912 = vmatprep.subr.mxu0 0.0
      %913 = vmatpush1.msra.mxu0 0.0
      %914 = vmatprep.subr.mxu0 0.0
      %915 = vmatpush1.msra.mxu0 0.0
      %916 = vmatprep.subr.mxu0 0.0
      %917 = vmatpush1.msra.mxu0 0.0
      %918 = vmatprep.subr.mxu0 0.0
      %919 = vmatpush1.msra.mxu0 0.0
      %920 = vmatprep.subr.mxu0 0.0
      %921 = vmatpush1.msra.mxu0 0.0
      %922 = vmatprep.subr.mxu0 0.0
      %923 = vmatpush1.msra.mxu0 0.0
      %924 = vmatprep.subr.mxu0 0.0
      %925 = vmatpush1.msra.mxu0 0.0
      %926 = vmatprep.subr.mxu0 0.0
      %927 = vmatpush1.msra.mxu0 0.0
      %928 = vmatprep.subr.mxu0 0.0
      %929 = vmatpush1.msra.mxu0 0.0
      %930 = vmatprep.subr.mxu0 0.0
      %931 = vmatpush1.msra.mxu0 0.0
      %932 = vmatprep.subr.mxu0 0.0
      %933 = vmatpush1.msra.mxu0 0.0
      %934 = vmatprep.subr.mxu0 0.0
      %935 = vmatpush1.msra.mxu0 0.0
      %936 = vmatprep.subr.mxu0 0.0
      %937 = vmatpush1.msra.mxu0 0.0
      %938 = vmatprep.subr.mxu0 0.0
      %939 = vmatpush1.msra.mxu0 0.0
      %940 = vmatprep.subr.mxu0 0.0
      %941 = vmatpush1.msra.mxu0 0.0
      %942 = vmatprep.subr.mxu0 0.0
      %943 = vmatpush1.msra.mxu0 0.0
      %944 = vmatprep.subr.mxu0 0.0
      %945 = vmatpush1.msra.mxu0 0.0
      %946 = vmatprep.subr.mxu0 0.0
      %947 = vmatpush1.msra.mxu0 0.0
      %948 = vmatprep.subr.mxu0 0.0
      %949 = vmatpush1.msra.mxu0 0.0
      %950 = vmatprep.subr.mxu0 0.0
      %951 = vmatpush1.msra.mxu0 0.0
      %952 = vmatprep.mubr.f32.mxu0 0.0
      %953 = vmatmul.mubr.f32.gmra.mrb[0].mxu0 %v472
      %v954 = vpop.f32.mrb[0].mxu0
      %v955 = vadd.f32 0.0, %v954
      %v956 = vpop.f32.mrb[0].mxu0
      %957 = vdwg.mxu0
      %v958 = vld [vmem:[%s5] sm:$0xff]
      %v959 = vld [vmem:[%s5 + $0x8] sm:$0xff]
      %v960 = vld [vmem:[%s5 + $0x10] sm:$0xff]
      %v961 = vld [vmem:[%s5 + $0x18] sm:$0xff]
      %s962 = scalar_lea.vmem %s5, 32
      %v963 = vld [vmem:[%s962] sm:$0xff]
      %v964 = vld [vmem:[%s962 + $0x8] sm:$0xff]
      %v965 = vld [vmem:[%s962 + $0x10] sm:$0xff]
      %v966 = vld [vmem:[%s962 + $0x18] sm:$0xff]
      %v968 = vsel %vm553, %v817, 0
      %970 = vmatprep.subr.mxu0 0.0
      %971 = vmatpush1.msra.mxu0 %v963
      %972 = vmatprep.subr.mxu0 0.0
      %973 = vmatpush1.msra.mxu0 %v964
      %974 = vmatprep.subr.mxu0 0.0
      %975 = vmatpush1.msra.mxu0 %v965
      %976 = vmatprep.subr.mxu0 0.0
      %977 = vmatpush1.msra.mxu0 %v966
      %978 = vmatprep.subr.mxu0 0.0
      %979 = vmatpush1.msra.mxu0 0.0
      %980 = vmatprep.subr.mxu0 0.0
      %981 = vmatpush1.msra.mxu0 0.0
      %982 = vmatprep.subr.mxu0 0.0
      %983 = vmatpush1.msra.mxu0 0.0
      %984 = vmatprep.subr.mxu0 0.0
      %985 = vmatpush1.msra.mxu0 0.0
      %986 = vmatprep.subr.mxu0 0.0
      %987 = vmatpush1.msra.mxu0 0.0
      %988 = vmatprep.subr.mxu0 0.0
      %989 = vmatpush1.msra.mxu0 0.0
      %990 = vmatprep.subr.mxu0 0.0
      %991 = vmatpush1.msra.mxu0 0.0
      %992 = vmatprep.subr.mxu0 0.0
      %993 = vmatpush1.msra.mxu0 0.0
      %994 = vmatprep.subr.mxu0 0.0
      %995 = vmatpush1.msra.mxu0 0.0
      %996 = vmatprep.subr.mxu0 0.0
      %997 = vmatpush1.msra.mxu0 0.0
      %998 = vmatprep.subr.mxu0 0.0
      %999 = vmatpush1.msra.mxu0 0.0
      %1000 = vmatprep.subr.mxu0 0.0
      %1001 = vmatpush1.msra.mxu0 0.0
      %1002 = vmatprep.subr.mxu0 0.0
      %1003 = vmatpush1.msra.mxu0 0.0
      %1004 = vmatprep.subr.mxu0 0.0
      %1005 = vmatpush1.msra.mxu0 0.0
      %1006 = vmatprep.subr.mxu0 0.0
      %1007 = vmatpush1.msra.mxu0 0.0
      %1008 = vmatprep.subr.mxu0 0.0
      %1009 = vmatpush1.msra.mxu0 0.0
      %1010 = vmatprep.subr.mxu0 0.0
      %1011 = vmatpush1.msra.mxu0 0.0
      %1012 = vmatprep.subr.mxu0 0.0
      %1013 = vmatpush1.msra.mxu0 0.0
      %1014 = vmatprep.subr.mxu0 0.0
      %1015 = vmatpush1.msra.mxu0 0.0
      %1016 = vmatprep.subr.mxu0 0.0
      %1017 = vmatpush1.msra.mxu0 0.0
      %1018 = vmatprep.subr.mxu0 0.0
      %1019 = vmatpush1.msra.mxu0 0.0
      %1020 = vmatprep.subr.mxu0 0.0
      %1021 = vmatpush1.msra.mxu0 0.0
      %1022 = vmatprep.subr.mxu0 0.0
      %1023 = vmatpush1.msra.mxu0 0.0
      %1024 = vmatprep.subr.mxu0 0.0
      %1025 = vmatpush1.msra.mxu0 0.0
      %1026 = vmatprep.subr.mxu0 0.0
      %1027 = vmatpush1.msra.mxu0 0.0
      %1028 = vmatprep.subr.mxu0 0.0
      %1029 = vmatpush1.msra.mxu0 0.0
      %1030 = vmatprep.subr.mxu0 0.0
      %1031 = vmatpush1.msra.mxu0 0.0
      %1032 = vmatprep.subr.mxu0 0.0
      %1033 = vmatpush1.msra.mxu0 0.0
      %1034 = vmatprep.mubr.f32.mxu0 0.0
      %1035 = vmatmul.mubr.f32.gmra.mrb[0].mxu0 %v968
      %v1036 = vpop.f32.mrb[0].mxu0
      %v1037 = vadd.f32 0.0, %v1036
      %v1038 = vpop.f32.mrb[0].mxu0
      %1039 = vdwg.mxu0
      %v1041 = vsel %vm553, %v885, 0
      %1043 = vmatprep.subr.mxu0 0.0
      %1044 = vmatpush1.msra.mxu0 %v958
      %1045 = vmatprep.subr.mxu0 0.0
      %1046 = vmatpush1.msra.mxu0 %v959
      %1047 = vmatprep.subr.mxu0 0.0
      %1048 = vmatpush1.msra.mxu0 %v960
      %1049 = vmatprep.subr.mxu0 0.0
      %1050 = vmatpush1.msra.mxu0 %v961
      %1051 = vmatprep.subr.mxu0 0.0
      %1052 = vmatpush1.msra.mxu0 0.0
      %1053 = vmatprep.subr.mxu0 0.0
      %1054 = vmatpush1.msra.mxu0 0.0
      %1055 = vmatprep.subr.mxu0 0.0
      %1056 = vmatpush1.msra.mxu0 0.0
      %1057 = vmatprep.subr.mxu0 0.0
      %1058 = vmatpush1.msra.mxu0 0.0
      %1059 = vmatprep.subr.mxu0 0.0
      %1060 = vmatpush1.msra.mxu0 0.0
      %1061 = vmatprep.subr.mxu0 0.0
      %1062 = vmatpush1.msra.mxu0 0.0
      %1063 = vmatprep.subr.mxu0 0.0
      %1064 = vmatpush1.msra.mxu0 0.0
      %1065 = vmatprep.subr.mxu0 0.0
      %1066 = vmatpush1.msra.mxu0 0.0
      %1067 = vmatprep.subr.mxu0 0.0
      %1068 = vmatpush1.msra.mxu0 0.0
      %1069 = vmatprep.subr.mxu0 0.0
      %1070 = vmatpush1.msra.mxu0 0.0
      %1071 = vmatprep.subr.mxu0 0.0
      %1072 = vmatpush1.msra.mxu0 0.0
      %1073 = vmatprep.subr.mxu0 0.0
      %1074 = vmatpush1.msra.mxu0 0.0
      %1075 = vmatprep.subr.mxu0 0.0
      %1076 = vmatpush1.msra.mxu0 0.0
      %1077 = vmatprep.subr.mxu0 0.0
      %1078 = vmatpush1.msra.mxu0 0.0
      %1079 = vmatprep.subr.mxu0 0.0
      %1080 = vmatpush1.msra.mxu0 0.0
      %1081 = vmatprep.subr.mxu0 0.0
      %1082 = vmatpush1.msra.mxu0 0.0
      %1083 = vmatprep.subr.mxu0 0.0
      %1084 = vmatpush1.msra.mxu0 0.0
      %1085 = vmatprep.subr.mxu0 0.0
      %1086 = vmatpush1.msra.mxu0 0.0
      %1087 = vmatprep.subr.mxu0 0.0
      %1088 = vmatpush1.msra.mxu0 0.0
      %1089 = vmatprep.subr.mxu0 0.0
      %1090 = vmatpush1.msra.mxu0 0.0
      %1091 = vmatprep.subr.mxu0 0.0
      %1092 = vmatpush1.msra.mxu0 0.0
      %1093 = vmatprep.subr.mxu0 0.0
      %1094 = vmatpush1.msra.mxu0 0.0
      %1095 = vmatprep.subr.mxu0 0.0
      %1096 = vmatpush1.msra.mxu0 0.0
      %1097 = vmatprep.subr.mxu0 0.0
      %1098 = vmatpush1.msra.mxu0 0.0
      %1099 = vmatprep.subr.mxu0 0.0
      %1100 = vmatpush1.msra.mxu0 0.0
      %1101 = vmatprep.subr.mxu0 0.0
      %1102 = vmatpush1.msra.mxu0 0.0
      %1103 = vmatprep.subr.mxu0 0.0
      %1104 = vmatpush1.msra.mxu0 0.0
      %1105 = vmatprep.subr.mxu0 0.0
      %1106 = vmatpush1.msra.mxu0 0.0
      %1107 = vmatprep.mubr.f32.mxu0 0.0
      %1108 = vmatmul.mubr.f32.gmra.mrb[0].mxu0 %v1041
      %v1109 = vpop.f32.mrb[0].mxu0
      %v1110 = vadd.f32 %v1037, %v1109
      %v1111 = vpop.f32.mrb[0].mxu0
      %1112 = vdwg.mxu0
      %s1113 = scalar_lea.vmem %s5, 64
      %v1114 = vld [vmem:[%s1113] sm:$0xff]
      %v1115 = vld [vmem:[%s1113 + $0x8] sm:$0xff]
      %v1116 = vld [vmem:[%s1113 + $0x10] sm:$0xff]
      %v1117 = vld [vmem:[%s1113 + $0x18] sm:$0xff]
      %v1119 = vsel %vm553, %v955, 0
      %1121 = vmatprep.subr.mxu0 0.0
      %1122 = vmatpush1.msra.mxu0 %v1114
      %1123 = vmatprep.subr.mxu0 0.0
      %1124 = vmatpush1.msra.mxu0 %v1115
      %1125 = vmatprep.subr.mxu0 0.0
      %1126 = vmatpush1.msra.mxu0 %v1116
      %1127 = vmatprep.subr.mxu0 0.0
      %1128 = vmatpush1.msra.mxu0 %v1117
      %1129 = vmatprep.subr.mxu0 0.0
      %1130 = vmatpush1.msra.mxu0 0.0
      %1131 = vmatprep.subr.mxu0 0.0
      %1132 = vmatpush1.msra.mxu0 0.0
      %1133 = vmatprep.subr.mxu0 0.0
      %1134 = vmatpush1.msra.mxu0 0.0
      %1135 = vmatprep.subr.mxu0 0.0
      %1136 = vmatpush1.msra.mxu0 0.0
      %1137 = vmatprep.subr.mxu0 0.0
      %1138 = vmatpush1.msra.mxu0 0.0
      %1139 = vmatprep.subr.mxu0 0.0
      %1140 = vmatpush1.msra.mxu0 0.0
      %1141 = vmatprep.subr.mxu0 0.0
      %1142 = vmatpush1.msra.mxu0 0.0
      %1143 = vmatprep.subr.mxu0 0.0
      %1144 = vmatpush1.msra.mxu0 0.0
      %1145 = vmatprep.subr.mxu0 0.0
      %1146 = vmatpush1.msra.mxu0 0.0
      %1147 = vmatprep.subr.mxu0 0.0
      %1148 = vmatpush1.msra.mxu0 0.0
      %1149 = vmatprep.subr.mxu0 0.0
      %1150 = vmatpush1.msra.mxu0 0.0
      %1151 = vmatprep.subr.mxu0 0.0
      %1152 = vmatpush1.msra.mxu0 0.0
      %1153 = vmatprep.subr.mxu0 0.0
      %1154 = vmatpush1.msra.mxu0 0.0
      %1155 = vmatprep.subr.mxu0 0.0
      %1156 = vmatpush1.msra.mxu0 0.0
      %1157 = vmatprep.subr.mxu0 0.0
      %1158 = vmatpush1.msra.mxu0 0.0
      %1159 = vmatprep.subr.mxu0 0.0
      %1160 = vmatpush1.msra.mxu0 0.0
      %1161 = vmatprep.subr.mxu0 0.0
      %1162 = vmatpush1.msra.mxu0 0.0
      %1163 = vmatprep.subr.mxu0 0.0
      %1164 = vmatpush1.msra.mxu0 0.0
      %1165 = vmatprep.subr.mxu0 0.0
      %1166 = vmatpush1.msra.mxu0 0.0
      %1167 = vmatprep.subr.mxu0 0.0
      %1168 = vmatpush1.msra.mxu0 0.0
      %1169 = vmatprep.subr.mxu0 0.0
      %1170 = vmatpush1.msra.mxu0 0.0
      %1171 = vmatprep.subr.mxu0 0.0
      %1172 = vmatpush1.msra.mxu0 0.0
      %1173 = vmatprep.subr.mxu0 0.0
      %1174 = vmatpush1.msra.mxu0 0.0
      %1175 = vmatprep.subr.mxu0 0.0
      %1176 = vmatpush1.msra.mxu0 0.0
      %1177 = vmatprep.subr.mxu0 0.0
      %1178 = vmatpush1.msra.mxu0 0.0
      %1179 = vmatprep.subr.mxu0 0.0
      %1180 = vmatpush1.msra.mxu0 0.0
      %1181 = vmatprep.subr.mxu0 0.0
      %1182 = vmatpush1.msra.mxu0 0.0
      %1183 = vmatprep.subr.mxu0 0.0
      %1184 = vmatpush1.msra.mxu0 0.0
      %1185 = vmatprep.mubr.f32.mxu0 0.0
      %1186 = vmatmul.mubr.f32.gmra.mrb[0].mxu0 %v1119
      %v1187 = vpop.f32.mrb[0].mxu0
      %v1188 = vadd.f32 0.0, %v1187
      %v1189 = vpop.f32.mrb[0].mxu0
      %1190 = vdwg.mxu0
      %v1191 = vadd.f32 %v1110, %v1188
      %v1192 = vld [vmem:[%s6] sm:$0x1]
      %v1194 = vlaneseq
      %v1195 = vshrl.u32 %v1194, 7
      %v1196 = vsub.s32 0, %v1195
      %v1197 = vrot.slane %v1192, %v1196
      %v1199 = vadd.f32 %v1191, %v1197
      %v1200 = vld [vmem:[%s7] sm:$0x1]
      %v1201 = vld [vmem:[%s8] sm:$0x1]
      %v1202 = vsel %vm553, %v1199, 0.0
      %1203 = vadd.xlane.f32.xlu0 %v1202
      %v1204 = vpop.xlane.xlu0 %1203
      %v1205 = vmul.f32 %v1204, %v792
      %v1206 = vsub.f32 %v1199, %v1205
      %v1207 = vmul.f32 %v1206, %v1206
      %v1208 = vsel %vm553, %v1207, 0.0
      %1209 = vadd.xlane.f32.xlu0 %v1208
      %v1210 = vpop.xlane.xlu0 %1209
      %v1211 = vmul.f32 %v1210, %v792
      %v1212 = vadd.f32 %v1211, 1e-05
      %v1213 = vrsqrt.pop %v1212
      %v1214 = vmul.f32 %v1206, %v1213
      %v1216 = vlaneseq
      %v1217 = vshrl.u32 %v1216, 7
      %v1218 = vsub.s32 0, %v1217
      %v1219 = vrot.slane %v1200, %v1218
      %v1221 = vmul.f32 %v1214, %v1219
      %v1223 = vlaneseq
      %v1224 = vshrl.u32 %v1223, 7
      %v1225 = vsub.s32 0, %v1224
      %v1226 = vrot.slane %v1201, %v1225
      %v1228 = vadd.f32 %v1221, %v1226
      %v1229 = vmax.f32 %v1228, 0.0
      %v1230 = vld [vmem:[%s9] sm:$0x1]
      %v1232 = vlaneseq
      %v1233 = vshrl.u32 %v1232, 7
      %v1234 = vsub.s32 0, %v1233
      %v1235 = vrot.slane %v1230, %v1234
      %v1237 = vmul.f32 %v1229, %v1235
      %v1238 = vsel %vm553, %v1237, 0.0
      %1239 = vadd.xlane.f32.xlu0 %v1238
      %v1240 = vpop.xlane.xlu0 %1239
      %v1241 = vld [vmem:[#allocation2] sm:$0x1]
      %v1243 = vlaneseq
      %v1244 = vshrl.u32 %v1243, 7
      %v1245 = vsub.s32 0, %v1244
      %v1246 = vrot.slane %v1241, %v1245
      %v1248 = vadd.f32 %v1240, %v1246
      %vm1249 = vcmask 7168
      %1250 = vst.msk [vmem:[%s383] sm:$0xff] %vm1249, %v1248
      %p1251 = scmp.lt.s32.totalorder %s24, 1
      %s1252 = scalar_select %p1251, %s24, 1
      %s1253 = smul.addr %s1252, 8
      %s1254 = scalar_lea.vmem %s11, %s1253
      // Predicated region
      $region65: #{_encoder_forward.37} parent=63 // pred_check
        %p1255 = pneg %p278
      $region66: #{_encoder_forward.37} parent=63 // pred_check_branch
        %1257 = sbr.rel (%p1255) target = $region68
      $region67: #{_encoder_forward.37} parent=63 // pred_region
        _
      $region68: #{_encoder_forward.37} parent=63 // pred_fallthru
        _
    $region64: #{_encoder_forward.37} parent=5 // pred_fallthru
      _
    %p1258 = scmp.le.s32.totalorder 2, %s19
    // Predicated region
    $region69: #{_encoder_forward.37} parent=5 // pred_check
      %p1259 = pneg %p1258
    $region70: #{_encoder_forward.37} parent=5 // pred_check_branch
      %1261 = sbr.rel (%p1259) target = $region72
    $region71: #{_encoder_forward.37} parent=5 // pred_region
      %s1262 = ssub.s32 %s19, 2
      // Predicated region
      $region73: #{_encoder_forward.37} parent=71 // pred_check
        %p1263 = pneg %p284
      $region74: #{_encoder_forward.37} parent=71 // pred_check_branch
        %1265 = sbr.rel (%p1263) target = $region76
      $region75: #{_encoder_forward.37} parent=71 // pred_region
        %p1266 = scmp.lt.s32.totalorder %s25, 1
        %s1267 = scalar_select %p1266, %s25, 1
        %s1268 = smul.addr %s1267, 8
        %s1269 = scalar_lea.vmem %s11, %s1268
      $region76: #{_encoder_forward.37} parent=71 // pred_fallthru
        _
    $region72: #{_encoder_forward.37} parent=5 // pred_fallthru
      _
  $region6: #{_encoder_forward.37} parent=0 // loop_footer
    %s23 = sadd.s32 1, %s19
  $region7: #{_encoder_forward.37} parent=0 // loop_footer_branch
    %18 = sbr.rel target = $region3
  $region8: #{_encoder_forward.37} parent=0 // loop_exit
    _

// kernel: _encoder_forward.21
$region0: #{_encoder_forward.21}
  #allocation0 [shape = 'u32[]', space=smem, size = 0x4, offset = 0x4, fixed_abs, tag = 'smem constant byte address 0x4 - core index']
  #allocation1 [shape = 'u32[144,128]{1,0:T(1,128)}', space=vmem, size = 0x12000, scoped, tag = 'internal scratch']
  %s0 = inlined_call_operand.vmem [shape: f32[2,8,32], index: 0, kind: input, shape index: {}]
  %s1 = inlined_call_operand.vmem [shape: f32[2,8,32], index: 1, kind: input, shape index: {}]
  %s2 = inlined_call_operand.vmem [shape: f32[3,32,32], index: 2, kind: input, shape index: {}]
  %s3 = inlined_call_operand.vmem [shape: f32[1,32], index: 3, kind: input, shape index: {}]
  %s4 = inlined_call_operand.vmem [shape: f32[1,32], index: 4, kind: input, shape index: {}]
  %s5 = inlined_call_operand.vmem [shape: f32[1,32], index: 5, kind: input, shape index: {}]
  %s6 = inlined_call_operand.vmem [shape: f32[3,32,64], index: 6, kind: input, shape index: {}]
  %s7 = inlined_call_operand.vmem [shape: f32[1,64], index: 7, kind: input, shape index: {}]
  %s8 = inlined_call_operand.vmem [shape: f32[3,64,32], index: 8, kind: input, shape index: {}]
  %s9 = inlined_call_operand.vmem [shape: f32[1,32], index: 9, kind: input, shape index: {}]
  %s10 = inlined_call_operand.vmem [shape: f32[2,8,32], index: 10, kind: output, shape index: {}]
  %s11 = sld [smem:[#allocation0]]
  $region73: #{_encoder_forward.21} parent=0
    _
  %s13 = ssub.s32 1, %s11
  %s14 = scalar_select 0, %s13, %s11
  loop: start=0, step=1, limit=4
  $region2: #{_encoder_forward.21} parent=0 // loop_pre_header
    _
  $region3: #{_encoder_forward.21} parent=0 // loop_header
    %s16 = sphi 0, %s20
    %p17 = scmp.ge.s32.totalorder %s16, 4
    %s26 = sphi 0, %s28
    %s29 = sphi 0, %s26
    %s30 = sphi 0, %s29
    %s46 = sphi 0, %s30
    %s52 = sphi 0, %s54
    %s55 = sphi 0, %s52
    %s56 = sphi 0, %s55
    %s72 = sphi 0, %s56
    %s76 = sphi 0, %s76
    %s78 = sphi 0, %s76
    %s79 = sphi 0, %s78
    %s93 = sphi 0, %s79
    %s97 = sphi 0, %s97
    %s99 = sphi 0, %s97
    %s100 = sphi 0, %s99
    %s114 = sphi 0, %s100
    %s118 = sphi 0, %s118
    %s120 = sphi 0, %s118
    %s121 = sphi 0, %s120
    %s135 = sphi 0, %s121
    %s139 = sphi 0, %s139
    %s141 = sphi 0, %s139
    %s142 = sphi 0, %s141
    %s156 = sphi 0, %s142
    %s160 = sphi 0, %s160
    %s162 = sphi 0, %s160
    %s163 = sphi 0, %s162
    %s177 = sphi 0, %s163
    %s181 = sphi 0, %s181
    %s183 = sphi 0, %s181
    %s184 = sphi 0, %s183
    %s198 = sphi 0, %s184
    %s202 = sphi 0, %s202
    %s204 = sphi 0, %s202
    %s205 = sphi 0, %s204
    %s219 = sphi 0, %s205
    %s223 = sphi 0, %s223
    %s225 = sphi 0, %s223
    %s226 = sphi 0, %s225
    %s240 = sphi 0, %s226
    %s246 = sphi 0, %s248
    %s249 = sphi 0, %s246
    %s250 = sphi 0, %s249
    %s266 = sphi 0, %s250
  $region4: #{_encoder_forward.21} parent=0 // loop_header_branch
    %19 = sbr.rel (%p17) target = $region8
  $region5: #{_encoder_forward.21} parent=0 // loop_body
    %s21 = ssub.s32 %s16, 1
    %s22 = ssub.s32 %s16, 2
    %s23 = sadd.s32 %s16, 1
    %s24 = ssub.s32 %s16, %s23
    %p25 = scmp.eq.s32.totalorder %s24, 0
    %s27 = sadd.s32 %s26, 1
    %s28 = scalar_select %p25, %s26, %s27
    %p31 = pneg %p25
    %p32 = scmp.eq.s32.totalorder %s16, 1
    %p33 = por %p31, %p32
    %p34 = scmp.ne.s32.totalorder %s26, %s29
    %p35 = scmp.eq.s32.totalorder %s16, 0
    %p36 = por %p34, %p35
    %p37 = scmp.ne.s32.totalorder %s26, %s29
    %p38 = scmp.eq.s32.totalorder %s21, 1
    %p39 = por %p37, %p38
    %p40 = scmp.ne.s32.totalorder %s29, %s30
    %p41 = scmp.eq.s32.totalorder %s21, 0
    %p42 = por %p40, %p41
    %p43 = scmp.ne.s32.totalorder %s29, %s30
    %p44 = scmp.eq.s32.totalorder %s22, 1
    %p45 = por %p43, %p44
    %p47 = scmp.ne.s32.totalorder %s30, %s46
    %p48 = scmp.eq.s32.totalorder %s22, 0
    %p49 = por %p47, %p48
    %s50 = ssub.s32 %s16, %s23
    %p51 = scmp.eq.s32.totalorder %s50, 0
    %s53 = sadd.s32 %s52, 1
    %s54 = scalar_select %p51, %s52, %s53
    %p57 = pneg %p51
    %p58 = scmp.eq.s32.totalorder %s16, 1
    %p59 = por %p57, %p58
    %p60 = scmp.ne.s32.totalorder %s52, %s55
    %p61 = scmp.eq.s32.totalorder %s16, 0
    %p62 = por %p60, %p61
    %p63 = scmp.ne.s32.totalorder %s52, %s55
    %p64 = scmp.eq.s32.totalorder %s21, 1
    %p65 = por %p63, %p64
    %p66 = scmp.ne.s32.totalorder %s55, %s56
    %p67 = scmp.eq.s32.totalorder %s21, 0
    %p68 = por %p66, %p67
    %p69 = scmp.ne.s32.totalorder %s55, %s56
    %p70 = scmp.eq.s32.totalorder %s22, 1
    %p71 = por %p69, %p70
    %p73 = scmp.ne.s32.totalorder %s56, %s72
    %p74 = scmp.eq.s32.totalorder %s22, 0
    %p75 = por %p73, %p74
    %s77 = sadd.s32 %s76, 1
    %p80 = scmp.eq.s32.totalorder %s16, 1
    %p81 = scmp.ne.s32.totalorder %s76, %s78
    %p82 = scmp.eq.s32.totalorder %s16, 0
    %p83 = por %p81, %p82
    %p84 = scmp.ne.s32.totalorder %s76, %s78
    %p85 = scmp.eq.s32.totalorder %s21, 1
    %p86 = por %p84, %p85
    %p87 = scmp.ne.s32.totalorder %s78, %s79
    %p88 = scmp.eq.s32.totalorder %s21, 0
    %p89 = por %p87, %p88
    %p90 = scmp.ne.s32.totalorder %s78, %s79
    %p91 = scmp.eq.s32.totalorder %s22, 1
    %p92 = por %p90, %p91
    %p94 = scmp.ne.s32.totalorder %s79, %s93
    %p95 = scmp.eq.s32.totalorder %s22, 0
    %p96 = por %p94, %p95
    %s98 = sadd.s32 %s97, 1
    %p101 = scmp.eq.s32.totalorder %s16, 1
    %p102 = scmp.ne.s32.totalorder %s97, %s99
    %p103 = scmp.eq.s32.totalorder %s16, 0
    %p104 = por %p102, %p103
    %p105 = scmp.ne.s32.totalorder %s97, %s99
    %p106 = scmp.eq.s32.totalorder %s21, 1
    %p107 = por %p105, %p106
    %p108 = scmp.ne.s32.totalorder %s99, %s100
    %p109 = scmp.eq.s32.totalorder %s21, 0
    %p110 = por %p108, %p109
    %p111 = scmp.ne.s32.totalorder %s99, %s100
    %p112 = scmp.eq.s32.totalorder %s22, 1
    %p113 = por %p111, %p112
    %p115 = scmp.ne.s32.totalorder %s100, %s114
    %p116 = scmp.eq.s32.totalorder %s22, 0
    %p117 = por %p115, %p116
    %s119 = sadd.s32 %s118, 1
    %p122 = scmp.eq.s32.totalorder %s16, 1
    %p123 = scmp.ne.s32.totalorder %s118, %s120
    %p124 = scmp.eq.s32.totalorder %s16, 0
    %p125 = por %p123, %p124
    %p126 = scmp.ne.s32.totalorder %s118, %s120
    %p127 = scmp.eq.s32.totalorder %s21, 1
    %p128 = por %p126, %p127
    %p129 = scmp.ne.s32.totalorder %s120, %s121
    %p130 = scmp.eq.s32.totalorder %s21, 0
    %p131 = por %p129, %p130
    %p132 = scmp.ne.s32.totalorder %s120, %s121
    %p133 = scmp.eq.s32.totalorder %s22, 1
    %p134 = por %p132, %p133
    %p136 = scmp.ne.s32.totalorder %s121, %s135
    %p137 = scmp.eq.s32.totalorder %s22, 0
    %p138 = por %p136, %p137
    %s140 = sadd.s32 %s139, 1
    %p143 = scmp.eq.s32.totalorder %s16, 1
    %p144 = scmp.ne.s32.totalorder %s139, %s141
    %p145 = scmp.eq.s32.totalorder %s16, 0
    %p146 = por %p144, %p145
    %p147 = scmp.ne.s32.totalorder %s139, %s141
    %p148 = scmp.eq.s32.totalorder %s21, 1
    %p149 = por %p147, %p148
    %p150 = scmp.ne.s32.totalorder %s141, %s142
    %p151 = scmp.eq.s32.totalorder %s21, 0
    %p152 = por %p150, %p151
    %p153 = scmp.ne.s32.totalorder %s141, %s142
    %p154 = scmp.eq.s32.totalorder %s22, 1
    %p155 = por %p153, %p154
    %p157 = scmp.ne.s32.totalorder %s142, %s156
    %p158 = scmp.eq.s32.totalorder %s22, 0
    %p159 = por %p157, %p158
    %s161 = sadd.s32 %s160, 1
    %p164 = scmp.eq.s32.totalorder %s16, 1
    %p165 = scmp.ne.s32.totalorder %s160, %s162
    %p166 = scmp.eq.s32.totalorder %s16, 0
    %p167 = por %p165, %p166
    %p168 = scmp.ne.s32.totalorder %s160, %s162
    %p169 = scmp.eq.s32.totalorder %s21, 1
    %p170 = por %p168, %p169
    %p171 = scmp.ne.s32.totalorder %s162, %s163
    %p172 = scmp.eq.s32.totalorder %s21, 0
    %p173 = por %p171, %p172
    %p174 = scmp.ne.s32.totalorder %s162, %s163
    %p175 = scmp.eq.s32.totalorder %s22, 1
    %p176 = por %p174, %p175
    %p178 = scmp.ne.s32.totalorder %s163, %s177
    %p179 = scmp.eq.s32.totalorder %s22, 0
    %p180 = por %p178, %p179
    %s182 = sadd.s32 %s181, 1
    %p185 = scmp.eq.s32.totalorder %s16, 1
    %p186 = scmp.ne.s32.totalorder %s181, %s183
    %p187 = scmp.eq.s32.totalorder %s16, 0
    %p188 = por %p186, %p187
    %p189 = scmp.ne.s32.totalorder %s181, %s183
    %p190 = scmp.eq.s32.totalorder %s21, 1
    %p191 = por %p189, %p190
    %p192 = scmp.ne.s32.totalorder %s183, %s184
    %p193 = scmp.eq.s32.totalorder %s21, 0
    %p194 = por %p192, %p193
    %p195 = scmp.ne.s32.totalorder %s183, %s184
    %p196 = scmp.eq.s32.totalorder %s22, 1
    %p197 = por %p195, %p196
    %p199 = scmp.ne.s32.totalorder %s184, %s198
    %p200 = scmp.eq.s32.totalorder %s22, 0
    %p201 = por %p199, %p200
    %s203 = sadd.s32 %s202, 1
    %p206 = scmp.eq.s32.totalorder %s16, 1
    %p207 = scmp.ne.s32.totalorder %s202, %s204
    %p208 = scmp.eq.s32.totalorder %s16, 0
    %p209 = por %p207, %p208
    %p210 = scmp.ne.s32.totalorder %s202, %s204
    %p211 = scmp.eq.s32.totalorder %s21, 1
    %p212 = por %p210, %p211
    %p213 = scmp.ne.s32.totalorder %s204, %s205
    %p214 = scmp.eq.s32.totalorder %s21, 0
    %p215 = por %p213, %p214
    %p216 = scmp.ne.s32.totalorder %s204, %s205
    %p217 = scmp.eq.s32.totalorder %s22, 1
    %p218 = por %p216, %p217
    %p220 = scmp.ne.s32.totalorder %s205, %s219
    %p221 = scmp.eq.s32.totalorder %s22, 0
    %p222 = por %p220, %p221
    %s224 = sadd.s32 %s223, 1
    %p227 = scmp.eq.s32.totalorder %s16, 1
    %p228 = scmp.ne.s32.totalorder %s223, %s225
    %p229 = scmp.eq.s32.totalorder %s16, 0
    %p230 = por %p228, %p229
    %p231 = scmp.ne.s32.totalorder %s223, %s225
    %p232 = scmp.eq.s32.totalorder %s21, 1
    %p233 = por %p231, %p232
    %p234 = scmp.ne.s32.totalorder %s225, %s226
    %p235 = scmp.eq.s32.totalorder %s21, 0
    %p236 = por %p234, %p235
    %p237 = scmp.ne.s32.totalorder %s225, %s226
    %p238 = scmp.eq.s32.totalorder %s22, 1
    %p239 = por %p237, %p238
    %p241 = scmp.ne.s32.totalorder %s226, %s240
    %p242 = scmp.eq.s32.totalorder %s22, 0
    %p243 = por %p241, %p242
    %s244 = ssub.s32 %s16, %s23
    %p245 = scmp.eq.s32.totalorder %s244, 0
    %s247 = sadd.s32 %s246, 1
    %s248 = scalar_select %p245, %s246, %s247
    %p251 = pneg %p245
    %p252 = scmp.eq.s32.totalorder %s16, 1
    %p253 = por %p251, %p252
    %p254 = scmp.ne.s32.totalorder %s246, %s249
    %p255 = scmp.eq.s32.totalorder %s16, 0
    %p256 = por %p254, %p255
    %p257 = scmp.ne.s32.totalorder %s246, %s249
    %p258 = scmp.eq.s32.totalorder %s21, 1
    %p259 = por %p257, %p258
    %p260 = scmp.ne.s32.totalorder %s249, %s250
    %p261 = scmp.eq.s32.totalorder %s21, 0
    %p262 = por %p260, %p261
    %p263 = scmp.ne.s32.totalorder %s249, %s250
    %p264 = scmp.eq.s32.totalorder %s22, 1
    %p265 = por %p263, %p264
    %p267 = scmp.ne.s32.totalorder %s250, %s266
    %p268 = scmp.eq.s32.totalorder %s22, 0
    %p269 = por %p267, %p268
    %p270 = scmp.le.s32.totalorder 1, %s16
    %p271 = scmp.lt.s32.totalorder %s16, 3
    %p272 = pnand %p270, %p271
    %p273 = pneg %p272
    // Predicated region
    $region9: #{_encoder_forward.21} parent=5 // pred_check
      _
    $region10: #{_encoder_forward.21} parent=5 // pred_check_branch
      %275 = sbr.rel (%p272) target = $region12
    $region11: #{_encoder_forward.21} parent=5 // pred_region
      %s276 = ssub.s32 %s16, 1
      // Predicated region
      $region13: #{_encoder_forward.21} parent=11 // pred_check
        %p277 = pneg %p89
      $region14: #{_encoder_forward.21} parent=11 // pred_check_branch
        %279 = sbr.rel (%p277) target = $region16
      $region15: #{_encoder_forward.21} parent=11 // pred_region
        _
      $region16: #{_encoder_forward.21} parent=11 // pred_fallthru
        _
      // Predicated region
      $region17: #{_encoder_forward.21} parent=11 // pred_check
        %p280 = pneg %p110
      $region18: #{_encoder_forward.21} parent=11 // pred_check_branch
        %282 = sbr.rel (%p280) target = $region20
      $region19: #{_encoder_forward.21} parent=11 // pred_region
        _
      $region20: #{_encoder_forward.21} parent=11 // pred_fallthru
        _
      // Predicated region
      $region21: #{_encoder_forward.21} parent=11 // pred_check
        %p283 = pneg %p131
      $region22: #{_encoder_forward.21} parent=11 // pred_check_branch
        %285 = sbr.rel (%p283) target = $region24
      $region23: #{_encoder_forward.21} parent=11 // pred_region
        _
      $region24: #{_encoder_forward.21} parent=11 // pred_fallthru
        _
      // Predicated region
      $region25: #{_encoder_forward.21} parent=11 // pred_check
        %p286 = pneg %p152
      $region26: #{_encoder_forward.21} parent=11 // pred_check_branch
        %288 = sbr.rel (%p286) target = $region28
      $region27: #{_encoder_forward.21} parent=11 // pred_region
        _
      $region28: #{_encoder_forward.21} parent=11 // pred_fallthru
        _
      // Predicated region
      $region29: #{_encoder_forward.21} parent=11 // pred_check
        %p289 = pneg %p173
      $region30: #{_encoder_forward.21} parent=11 // pred_check_branch
        %291 = sbr.rel (%p289) target = $region32
      $region31: #{_encoder_forward.21} parent=11 // pred_region
        _
      $region32: #{_encoder_forward.21} parent=11 // pred_fallthru
        _
      // Predicated region
      $region33: #{_encoder_forward.21} parent=11 // pred_check
        %p292 = pneg %p194
      $region34: #{_encoder_forward.21} parent=11 // pred_check_branch
        %294 = sbr.rel (%p292) target = $region36
      $region35: #{_encoder_forward.21} parent=11 // pred_region
        _
      $region36: #{_encoder_forward.21} parent=11 // pred_fallthru
        _
      // Predicated region
      $region37: #{_encoder_forward.21} parent=11 // pred_check
        %p295 = pneg %p215
      $region38: #{_encoder_forward.21} parent=11 // pred_check_branch
        %297 = sbr.rel (%p295) target = $region40
      $region39: #{_encoder_forward.21} parent=11 // pred_region
        _
      $region40: #{_encoder_forward.21} parent=11 // pred_fallthru
        _
      // Predicated region
      $region41: #{_encoder_forward.21} parent=11 // pred_check
        %p298 = pneg %p236
      $region42: #{_encoder_forward.21} parent=11 // pred_check_branch
        %300 = sbr.rel (%p298) target = $region44
      $region43: #{_encoder_forward.21} parent=11 // pred_region
        _
      $region44: #{_encoder_forward.21} parent=11 // pred_fallthru
        _
    $region12: #{_encoder_forward.21} parent=5 // pred_fallthru
      _
    %p301 = scmp.lt.s32.totalorder %s16, 2
    // Predicated region
    $region45: #{_encoder_forward.21} parent=5 // pred_check
      %p302 = pneg %p301
    $region46: #{_encoder_forward.21} parent=5 // pred_check_branch
      %304 = sbr.rel (%p302) target = $region48
    $region47: #{_encoder_forward.21} parent=5 // pred_region
      // Predicated region
      $region49: #{_encoder_forward.21} parent=47 // pred_check
        %p305 = pneg %p36
      $region50: #{_encoder_forward.21} parent=47 // pred_check_branch
        %307 = sbr.rel (%p305) target = $region52
      $region51: #{_encoder_forward.21} parent=47 // pred_region
        %p308 = scmp.lt.s32.totalorder %s16, 1
        %s309 = scalar_select %p308, %s16, 1
        %s310 = smul.addr %s309, 8
        %s311 = scalar_lea.vmem %s0, %s310
      $region52: #{_encoder_forward.21} parent=47 // pred_fallthru
        _
      // Predicated region
      $region53: #{_encoder_forward.21} parent=47 // pred_check
        %p312 = pneg %p62
      $region54: #{_encoder_forward.21} parent=47 // pred_check_branch
        %314 = sbr.rel (%p312) target = $region56
      $region55: #{_encoder_forward.21} parent=47 // pred_region
        %p315 = scmp.lt.s32.totalorder %s16, 1
        %s316 = scalar_select %p315, %s16, 1
        %s317 = smul.addr %s316, 8
        %s318 = scalar_lea.vmem %s1, %s317
      $region56: #{_encoder_forward.21} parent=47 // pred_fallthru
        _
    $region48: #{_encoder_forward.21} parent=5 // pred_fallthru
      _
    %p319 = scmp.le.s32.totalorder 1, %s16
    %p320 = scmp.lt.s32.totalorder %s16, 3
    %p321 = pnand %p319, %p320
    %p322 = pneg %p321
    // Predicated region
    $region57: #{_encoder_forward.21} parent=5 // pred_check
      _
    $region58: #{_encoder_forward.21} parent=5 // pred_check_branch
      %324 = sbr.rel (%p321) target = $region60
    $region59: #{_encoder_forward.21} parent=5 // pred_region
      %s325 = ssub.s32 %s16, 1
      %p326 = scmp.lt.s32.totalorder %s21, 1
      %s327 = scalar_select %p326, %s21, 1
      %s328 = smul.addr %s327, 8
      %s329 = scalar_lea.vmem %s0, %s328
      %p330 = pneg %p42
      %p331 = pneg %p39
      %p332 = scmp.lt.s32.totalorder %s21, 1
      %s333 = scalar_select %p332, %s21, 1
      %s334 = smul.addr %s333, 8
      %s335 = scalar_lea.vmem %s1, %s334
      %p336 = pneg %p68
      %p337 = pneg %p65
      %p338 = pneg %p89
      %p339 = pneg %p86
      %p340 = pneg %p110
      %p341 = pneg %p107
      %p342 = pneg %p131
      %p343 = pneg %p128
      %p344 = pneg %p152
      %p345 = pneg %p149
      %p346 = pneg %p173
      %p347 = pneg %p170
      %p348 = pneg %p194
      %p349 = pneg %p191
      %p350 = pneg %p215
      %p351 = pneg %p212
      %p352 = pneg %p236
      %p353 = pneg %p233
      %p354 = pneg %p262
      %p355 = pneg %p259
      %p356 = scmp.lt.s32.totalorder %s21, 1
      %s357 = scalar_select %p356, %s21, 1
      %s358 = smul.addr %s357, 8
      %s359 = scalar_lea.vmem %s10, %s358
      %p360 = scmp.lt.s32.totalorder %s21, 1
      %s361 = scalar_select %p360, %s21, 1
      %s362 = smul.addr %s361, 8
      %s363 = scalar_lea.vmem %s0, %s362
      %p364 = scmp.lt.s32.totalorder %s21, 1
      %s365 = scalar_select %p364, %s21, 1
      %s366 = smul.addr %s365, 8
      %s367 = scalar_lea.vmem %s1, %s366
      %p368 = scmp.lt.s32.totalorder %s21, 1
      %s369 = scalar_select %p368, %s21, 1
      %s370 = smul.addr %s369, 8
      %s371 = scalar_lea.vmem %s10, %s370
      %v372 = vld [vmem:[%s363] sm:$0xff]
      %v373 = vld [vmem:[%s367] sm:$0xff]
      %v374 = vlaneseq
      %v375 = vshrl.u32 %v374, 7
      %v376 = vlaneseq
      %v377 = vand.u32 %v376, 127
      %v378 = vsub.s32 %v375, 1
      %vm379 = vcmp.eq.s32.totalorder %v377, %v378
      %v380 = vsel %vm379, 1, 0
      %v381 = vcvt.s32.f32 %v380
      %v382 = vadd.s32 %v375, 1
      %vm383 = vcmp.eq.s32.totalorder %v377, %v382
      %v384 = vsel %vm383, 1, 0
      %v385 = vcvt.s32.f32 %v384
      %vm386 = vcmask 64512
      %v388 = vsel %vm386, %v381, 0
      %390 = vmatprep.subr.mxu0 0.0
      %391 = vmatpush1.msra.mxu0 %v372
      %392 = vmatprep.subr.mxu0 0.0
      %393 = vmatpush1.msra.mxu0 0.0
      %394 = vmatprep.subr.mxu0 0.0
      %395 = vmatpush1.msra.mxu0 0.0
      %396 = vmatprep.subr.mxu0 0.0
      %397 = vmatpush1.msra.mxu0 0.0
      %398 = vmatprep.subr.mxu0 0.0
      %399 = vmatpush1.msra.mxu0 0.0
      %400 = vmatprep.subr.mxu0 0.0
      %401 = vmatpush1.msra.mxu0 0.0
      %402 = vmatprep.subr.mxu0 0.0
      %403 = vmatpush1.msra.mxu0 0.0
      %404 = vmatprep.subr.mxu0 0.0
      %405 = vmatpush1.msra.mxu0 0.0
      %406 = vmatprep.subr.mxu0 0.0
      %407 = vmatpush1.msra.mxu0 0.0
      %408 = vmatprep.subr.mxu0 0.0
      %409 = vmatpush1.msra.mxu0 0.0
      %410 = vmatprep.subr.mxu0 0.0
      %411 = vmatpush1.msra.mxu0 0.0
      %412 = vmatprep.subr.mxu0 0.0
      %413 = vmatpush1.msra.mxu0 0.0
      %414 = vmatprep.subr.mxu0 0.0
      %415 = vmatpush1.msra.mxu0 0.0
      %416 = vmatprep.subr.mxu0 0.0
      %417 = vmatpush1.msra.mxu0 0.0
      %418 = vmatprep.subr.mxu0 0.0
      %419 = vmatpush1.msra.mxu0 0.0
      %420 = vmatprep.subr.mxu0 0.0
      %421 = vmatpush1.msra.mxu0 0.0
      %422 = vmatprep.subr.mxu0 0.0
      %423 = vmatpush1.msra.mxu0 0.0
      %424 = vmatprep.subr.mxu0 0.0
      %425 = vmatpush1.msra.mxu0 0.0
      %426 = vmatprep.subr.mxu0 0.0
      %427 = vmatpush1.msra.mxu0 0.0
      %428 = vmatprep.subr.mxu0 0.0
      %429 = vmatpush1.msra.mxu0 0.0
      %430 = vmatprep.subr.mxu0 0.0
      %431 = vmatpush1.msra.mxu0 0.0
      %432 = vmatprep.subr.mxu0 0.0
      %433 = vmatpush1.msra.mxu0 0.0
      %434 = vmatprep.subr.mxu0 0.0
      %435 = vmatpush1.msra.mxu0 0.0
      %436 = vmatprep.subr.mxu0 0.0
      %437 = vmatpush1.msra.mxu0 0.0
      %438 = vmatprep.subr.mxu0 0.0
      %439 = vmatpush1.msra.mxu0 0.0
      %440 = vmatprep.subr.mxu0 0.0
      %441 = vmatpush1.msra.mxu0 0.0
      %442 = vmatprep.subr.mxu0 0.0
      %443 = vmatpush1.msra.mxu0 0.0
      %444 = vmatprep.subr.mxu0 0.0
      %445 = vmatpush1.msra.mxu0 0.0
      %446 = vmatprep.subr.mxu0 0.0
      %447 = vmatpush1.msra.mxu0 0.0
      %448 = vmatprep.subr.mxu0 0.0
      %449 = vmatpush1.msra.mxu0 0.0
      %450 = vmatprep.subr.mxu0 0.0
      %451 = vmatpush1.msra.mxu0 0.0
      %452 = vmatprep.subr.mxu0 0.0
      %453 = vmatpush1.msra.mxu0 0.0
      %454 = vmatprep.mubr.f32.mxu0 0.0
      %455 = vmatmul.mubr.f32.gmra.mrb[0].mxu0 %v388
      %v456 = vpop.f32.mrb[0].mxu0
      %v457 = vadd.f32 0.0, %v456
      %v458 = vpop.f32.mrb[0].mxu0
      %459 = vdwg.mxu0
      %v461 = vsel %vm386, %v385, 0
      %463 = vmatprep.subr.mxu0 0.0
      %464 = vmatpush1.msra.mxu0 %v372
      %465 = vmatprep.subr.mxu0 0.0
      %466 = vmatpush1.msra.mxu0 0.0
      %467 = vmatprep.subr.mxu0 0.0
      %468 = vmatpush1.msra.mxu0 0.0
      %469 = vmatprep.subr.mxu0 0.0
      %470 = vmatpush1.msra.mxu0 0.0
      %471 = vmatprep.subr.mxu0 0.0
      %472 = vmatpush1.msra.mxu0 0.0
      %473 = vmatprep.subr.mxu0 0.0
      %474 = vmatpush1.msra.mxu0 0.0
      %475 = vmatprep.subr.mxu0 0.0
      %476 = vmatpush1.msra.mxu0 0.0
      %477 = vmatprep.subr.mxu0 0.0
      %478 = vmatpush1.msra.mxu0 0.0
      %479 = vmatprep.subr.mxu0 0.0
      %480 = vmatpush1.msra.mxu0 0.0
      %481 = vmatprep.subr.mxu0 0.0
      %482 = vmatpush1.msra.mxu0 0.0
      %483 = vmatprep.subr.mxu0 0.0
      %484 = vmatpush1.msra.mxu0 0.0
      %485 = vmatprep.subr.mxu0 0.0
      %486 = vmatpush1.msra.mxu0 0.0
      %487 = vmatprep.subr.mxu0 0.0
      %488 = vmatpush1.msra.mxu0 0.0
      %489 = vmatprep.subr.mxu0 0.0
      %490 = vmatpush1.msra.mxu0 0.0
      %491 = vmatprep.subr.mxu0 0.0
      %492 = vmatpush1.msra.mxu0 0.0
      %493 = vmatprep.subr.mxu0 0.0
      %494 = vmatpush1.msra.mxu0 0.0
      %495 = vmatprep.subr.mxu0 0.0
      %496 = vmatpush1.msra.mxu0 0.0
      %497 = vmatprep.subr.mxu0 0.0
      %498 = vmatpush1.msra.mxu0 0.0
      %499 = vmatprep.subr.mxu0 0.0
      %500 = vmatpush1.msra.mxu0 0.0
      %501 = vmatprep.subr.mxu0 0.0
      %502 = vmatpush1.msra.mxu0 0.0
      %503 = vmatprep.subr.mxu0 0.0
      %504 = vmatpush1.msra.mxu0 0.0
      %505 = vmatprep.subr.mxu0 0.0
      %506 = vmatpush1.msra.mxu0 0.0
      %507 = vmatprep.subr.mxu0 0.0
      %508 = vmatpush1.msra.mxu0 0.0
      %509 = vmatprep.subr.mxu0 0.0
      %510 = vmatpush1.msra.mxu0 0.0
      %511 = vmatprep.subr.mxu0 0.0
      %512 = vmatpush1.msra.mxu0 0.0
      %513 = vmatprep.subr.mxu0 0.0
      %514 = vmatpush1.msra.mxu0 0.0
      %515 = vmatprep.subr.mxu0 0.0
      %516 = vmatpush1.msra.mxu0 0.0
      %517 = vmatprep.subr.mxu0 0.0
      %518 = vmatpush1.msra.mxu0 0.0
      %519 = vmatprep.subr.mxu0 0.0
      %520 = vmatpush1.msra.mxu0 0.0
      %521 = vmatprep.subr.mxu0 0.0
      %522 = vmatpush1.msra.mxu0 0.0
      %523 = vmatprep.subr.mxu0 0.0
      %524 = vmatpush1.msra.mxu0 0.0
      %525 = vmatprep.subr.mxu0 0.0
      %526 = vmatpush1.msra.mxu0 0.0
      %527 = vmatprep.mubr.f32.mxu0 0.0
      %528 = vmatmul.mubr.f32.gmra.mrb[0].mxu0 %v461
      %v529 = vpop.f32.mrb[0].mxu0
      %v530 = vadd.f32 0.0, %v529
      %v531 = vpop.f32.mrb[0].mxu0
      %532 = vdwg.mxu0
      %v533 = vld [vmem:[%s2] sm:$0xff]
      %v534 = vld [vmem:[%s2 + $0x8] sm:$0xff]
      %v535 = vld [vmem:[%s2 + $0x10] sm:$0xff]
      %v536 = vld [vmem:[%s2 + $0x18] sm:$0xff]
      %s537 = scalar_lea.vmem %s2, 32
      %v538 = vld [vmem:[%s537] sm:$0xff]
      %v539 = vld [vmem:[%s537 + $0x8] sm:$0xff]
      %v540 = vld [vmem:[%s537 + $0x10] sm:$0xff]
      %v541 = vld [vmem:[%s537 + $0x18] sm:$0xff]
      %vm542 = vcmask 261120
      %v544 = vsel %vm542, %v372, 0
      %546 = vmatprep.subr.mxu0 0.0
      %547 = vmatpush1.msra.mxu0 %v538
      %548 = vmatprep.subr.mxu0 0.0
      %549 = vmatpush1.msra.mxu0 %v539
      %550 = vmatprep.subr.mxu0 0.0
      %551 = vmatpush1.msra.mxu0 %v540
      %552 = vmatprep.subr.mxu0 0.0
      %553 = vmatpush1.msra.mxu0 %v541
      %554 = vmatprep.subr.mxu0 0.0
      %555 = vmatpush1.msra.mxu0 0.0
      %556 = vmatprep.subr.mxu0 0.0
      %557 = vmatpush1.msra.mxu0 0.0
      %558 = vmatprep.subr.mxu0 0.0
      %559 = vmatpush1.msra.mxu0 0.0
      %560 = vmatprep.subr.mxu0 0.0
      %561 = vmatpush1.msra.mxu0 0.0
      %562 = vmatprep.subr.mxu0 0.0
      %563 = vmatpush1.msra.mxu0 0.0
      %564 = vmatprep.subr.mxu0 0.0
      %565 = vmatpush1.msra.mxu0 0.0
      %566 = vmatprep.subr.mxu0 0.0
      %567 = vmatpush1.msra.mxu0 0.0
      %568 = vmatprep.subr.mxu0 0.0
      %569 = vmatpush1.msra.mxu0 0.0
      %570 = vmatprep.subr.mxu0 0.0
      %571 = vmatpush1.msra.mxu0 0.0
      %572 = vmatprep.subr.mxu0 0.0
      %573 = vmatpush1.msra.mxu0 0.0
      %574 = vmatprep.subr.mxu0 0.0
      %575 = vmatpush1.msra.mxu0 0.0
      %576 = vmatprep.subr.mxu0 0.0
      %577 = vmatpush1.msra.mxu0 0.0
      %578 = vmatprep.subr.mxu0 0.0
      %579 = vmatpush1.msra.mxu0 0.0
      %580 = vmatprep.subr.mxu0 0.0
      %581 = vmatpush1.msra.mxu0 0.0
      %582 = vmatprep.subr.mxu0 0.0
      %583 = vmatpush1.msra.mxu0 0.0
      %584 = vmatprep.subr.mxu0 0.0
      %585 = vmatpush1.msra.mxu0 0.0
      %586 = vmatprep.subr.mxu0 0.0
      %587 = vmatpush1.msra.mxu0 0.0
      %588 = vmatprep.subr.mxu0 0.0
      %589 = vmatpush1.msra.mxu0 0.0
      %590 = vmatprep.subr.mxu0 0.0
      %591 = vmatpush1.msra.mxu0 0.0
      %592 = vmatprep.subr.mxu0 0.0
      %593 = vmatpush1.msra.mxu0 0.0
      %594 = vmatprep.subr.mxu0 0.0
      %595 = vmatpush1.msra.mxu0 0.0
      %596 = vmatprep.subr.mxu0 0.0
      %597 = vmatpush1.msra.mxu0 0.0
      %598 = vmatprep.subr.mxu0 0.0
      %599 = vmatpush1.msra.mxu0 0.0
      %600 = vmatprep.subr.mxu0 0.0
      %601 = vmatpush1.msra.mxu0 0.0
      %602 = vmatprep.subr.mxu0 0.0
      %603 = vmatpush1.msra.mxu0 0.0
      %604 = vmatprep.subr.mxu0 0.0
      %605 = vmatpush1.msra.mxu0 0.0
      %606 = vmatprep.subr.mxu0 0.0
      %607 = vmatpush1.msra.mxu0 0.0
      %608 = vmatprep.subr.mxu0 0.0
      %609 = vmatpush1.msra.mxu0 0.0
      %610 = vmatprep.mubr.f32.mxu0 0.0
      %611 = vmatmul.mubr.f32.gmra.mrb[0].mxu0 %v544
      %v612 = vpop.f32.mrb[0].mxu0
      %v613 = vadd.f32 0.0, %v612
      %v614 = vpop.f32.mrb[0].mxu0
      %615 = vdwg.mxu0
      %v617 = vsel %vm542, %v457, 0
      %619 = vmatprep.subr.mxu0 0.0
      %620 = vmatpush1.msra.mxu0 %v533
      %621 = vmatprep.subr.mxu0 0.0
      %622 = vmatpush1.msra.mxu0 %v534
      %623 = vmatprep.subr.mxu0 0.0
      %624 = vmatpush1.msra.mxu0 %v535
      %625 = vmatprep.subr.mxu0 0.0
      %626 = vmatpush1.msra.mxu0 %v536
      %627 = vmatprep.subr.mxu0 0.0
      %628 = vmatpush1.msra.mxu0 0.0
      %629 = vmatprep.subr.mxu0 0.0
      %630 = vmatpush1.msra.mxu0 0.0
      %631 = vmatprep.subr.mxu0 0.0
      %632 = vmatpush1.msra.mxu0 0.0
      %633 = vmatprep.subr.mxu0 0.0
      %634 = vmatpush1.msra.mxu0 0.0
      %635 = vmatprep.subr.mxu0 0.0
      %636 = vmatpush1.msra.mxu0 0.0
      %637 = vmatprep.subr.mxu0 0.0
      %638 = vmatpush1.msra.mxu0 0.0
      %639 = vmatprep.subr.mxu0 0.0
      %640 = vmatpush1.msra.mxu0 0.0
      %641 = vmatprep.subr.mxu0 0.0
      %642 = vmatpush1.msra.mxu0 0.0
      %643 = vmatprep.subr.mxu0 0.0
      %644 = vmatpush1.msra.mxu0 0.0
      %645 = vmatprep.subr.mxu0 0.0
      %646 = vmatpush1.msra.mxu0 0.0
      %647 = vmatprep.subr.mxu0 0.0
      %648 = vmatpush1.msra.mxu0 0.0
      %649 = vmatprep.subr.mxu0 0.0
      %650 = vmatpush1.msra.mxu0 0.0
      %651 = vmatprep.subr.mxu0 0.0
      %652 = vmatpush1.msra.mxu0 0.0
      %653 = vmatprep.subr.mxu0 0.0
      %654 = vmatpush1.msra.mxu0 0.0
      %655 = vmatprep.subr.mxu0 0.0
      %656 = vmatpush1.msra.mxu0 0.0
      %657 = vmatprep.subr.mxu0 0.0
      %658 = vmatpush1.msra.mxu0 0.0
      %659 = vmatprep.subr.mxu0 0.0
      %660 = vmatpush1.msra.mxu0 0.0
      %661 = vmatprep.subr.mxu0 0.0
      %662 = vmatpush1.msra.mxu0 0.0
      %663 = vmatprep.subr.mxu0 0.0
      %664 = vmatpush1.msra.mxu0 0.0
      %665 = vmatprep.subr.mxu0 0.0
      %666 = vmatpush1.msra.mxu0 0.0
      %667 = vmatprep.subr.mxu0 0.0
      %668 = vmatpush1.msra.mxu0 0.0
      %669 = vmatprep.subr.mxu0 0.0
      %670 = vmatpush1.msra.mxu0 0.0
      %671 = vmatprep.subr.mxu0 0.0
      %672 = vmatpush1.msra.mxu0 0.0
      %673 = vmatprep.subr.mxu0 0.0
      %674 = vmatpush1.msra.mxu0 0.0
      %675 = vmatprep.subr.mxu0 0.0
      %676 = vmatpush1.msra.mxu0 0.0
      %677 = vmatprep.subr.mxu0 0.0
      %678 = vmatpush1.msra.mxu0 0.0
      %679 = vmatprep.subr.mxu0 0.0
      %680 = vmatpush1.msra.mxu0 0.0
      %681 = vmatprep.subr.mxu0 0.0
      %682 = vmatpush1.msra.mxu0 0.0
      %683 = vmatprep.mubr.f32.mxu0 0.0
      %684 = vmatmul.mubr.f32.gmra.mrb[0].mxu0 %v617
      %v685 = vpop.f32.mrb[0].mxu0
      %v686 = vadd.f32 %v613, %v685
      %v687 = vpop.f32.mrb[0].mxu0
      %688 = vdwg.mxu0
      %s689 = scalar_lea.vmem %s2, 64
      %v690 = vld [vmem:[%s689] sm:$0xff]
      %v691 = vld [vmem:[%s689 + $0x8] sm:$0xff]
      %v692 = vld [vmem:[%s689 + $0x10] sm:$0xff]
      %v693 = vld [vmem:[%s689 + $0x18] sm:$0xff]
      %v695 = vsel %vm542, %v530, 0
      %697 = vmatprep.subr.mxu0 0.0
      %698 = vmatpush1.msra.mxu0 %v690
      %699 = vmatprep.subr.mxu0 0.0
      %700 = vmatpush1.msra.mxu0 %v691
      %701 = vmatprep.subr.mxu0 0.0
      %702 = vmatpush1.msra.mxu0 %v692
      %703 = vmatprep.subr.mxu0 0.0
      %704 = vmatpush1.msra.mxu0 %v693
      %705 = vmatprep.subr.mxu0 0.0
      %706 = vmatpush1.msra.mxu0 0.0
      %707 = vmatprep.subr.mxu0 0.0
      %708 = vmatpush1.msra.mxu0 0.0
      %709 = vmatprep.subr.mxu0 0.0
      %710 = vmatpush1.msra.mxu0 0.0
      %711 = vmatprep.subr.mxu0 0.0
      %712 = vmatpush1.msra.mxu0 0.0
      %713 = vmatprep.subr.mxu0 0.0
      %714 = vmatpush1.msra.mxu0 0.0
      %715 = vmatprep.subr.mxu0 0.0
      %716 = vmatpush1.msra.mxu0 0.0
      %717 = vmatprep.subr.mxu0 0.0
      %718 = vmatpush1.msra.mxu0 0.0
      %719 = vmatprep.subr.mxu0 0.0
      %720 = vmatpush1.msra.mxu0 0.0
      %721 = vmatprep.subr.mxu0 0.0
      %722 = vmatpush1.msra.mxu0 0.0
      %723 = vmatprep.subr.mxu0 0.0
      %724 = vmatpush1.msra.mxu0 0.0
      %725 = vmatprep.subr.mxu0 0.0
      %726 = vmatpush1.msra.mxu0 0.0
      %727 = vmatprep.subr.mxu0 0.0
      %728 = vmatpush1.msra.mxu0 0.0
      %729 = vmatprep.subr.mxu0 0.0
      %730 = vmatpush1.msra.mxu0 0.0
      %731 = vmatprep.subr.mxu0 0.0
      %732 = vmatpush1.msra.mxu0 0.0
      %733 = vmatprep.subr.mxu0 0.0
      %734 = vmatpush1.msra.mxu0 0.0
      %735 = vmatprep.subr.mxu0 0.0
      %736 = vmatpush1.msra.mxu0 0.0
      %737 = vmatprep.subr.mxu0 0.0
      %738 = vmatpush1.msra.mxu0 0.0
      %739 = vmatprep.subr.mxu0 0.0
      %740 = vmatpush1.msra.mxu0 0.0
      %741 = vmatprep.subr.mxu0 0.0
      %742 = vmatpush1.msra.mxu0 0.0
      %743 = vmatprep.subr.mxu0 0.0
      %744 = vmatpush1.msra.mxu0 0.0
      %745 = vmatprep.subr.mxu0 0.0
      %746 = vmatpush1.msra.mxu0 0.0
      %747 = vmatprep.subr.mxu0 0.0
      %748 = vmatpush1.msra.mxu0 0.0
      %749 = vmatprep.subr.mxu0 0.0
      %750 = vmatpush1.msra.mxu0 0.0
      %751 = vmatprep.subr.mxu0 0.0
      %752 = vmatpush1.msra.mxu0 0.0
      %753 = vmatprep.subr.mxu0 0.0
      %754 = vmatpush1.msra.mxu0 0.0
      %755 = vmatprep.subr.mxu0 0.0
      %756 = vmatpush1.msra.mxu0 0.0
      %757 = vmatprep.subr.mxu0 0.0
      %758 = vmatpush1.msra.mxu0 0.0
      %759 = vmatprep.subr.mxu0 0.0
      %760 = vmatpush1.msra.mxu0 0.0
      %761 = vmatprep.mubr.f32.mxu0 0.0
      %762 = vmatmul.mubr.f32.gmra.mrb[0].mxu0 %v695
      %v763 = vpop.f32.mrb[0].mxu0
      %v764 = vadd.f32 0.0, %v763
      %v765 = vpop.f32.mrb[0].mxu0
      %766 = vdwg.mxu0
      %v767 = vadd.f32 %v686, %v764
      %v768 = vld [vmem:[%s3] sm:$0x1]
      %v770 = vlaneseq
      %v771 = vshrl.u32 %v770, 7
      %v772 = vsub.s32 0, %v771
      %v773 = vrot.slane %v768, %v772
      %v775 = vadd.f32 %v767, %v773
      %v776 = vadd.f32 %v373, %v775
      %v777 = vld [vmem:[%s4] sm:$0x1]
      %v778 = vld [vmem:[%s5] sm:$0x1]
      %v779 = vsel %vm542, %v776, 0.0
      %780 = vadd.xlane.f32.xlu0 %v779
      %v781 = vpop.xlane.xlu0 %780
      %v782 = vrcp.pop 32.0
      %v783 = vmul.f32 %v781, %v782
      %v784 = vsub.f32 %v776, %v783
      %v785 = vmul.f32 %v784, %v784
      %v786 = vsel %vm542, %v785, 0.0
      %787 = vadd.xlane.f32.xlu0 %v786
      %v788 = vpop.xlane.xlu0 %787
      %v789 = vmul.f32 %v788, %v782
      %v790 = vadd.f32 %v789, 1e-05
      %v791 = vrsqrt.pop %v790
      %v792 = vmul.f32 %v784, %v791
      %v794 = vlaneseq
      %v795 = vshrl.u32 %v794, 7
      %v796 = vsub.s32 0, %v795
      %v797 = vrot.slane %v777, %v796
      %v799 = vmul.f32 %v792, %v797
      %v801 = vlaneseq
      %v802 = vshrl.u32 %v801, 7
      %v803 = vsub.s32 0, %v802
      %v804 = vrot.slane %v778, %v803
      %v806 = vadd.f32 %v799, %v804
      %807 = vmatprep.subr.mxu0 0.0
      %808 = vmatpush1.msra.mxu0 %v806
      %809 = vmatprep.subr.mxu0 0.0
      %810 = vmatpush1.msra.mxu0 0.0
      %811 = vmatprep.subr.mxu0 0.0
      %812 = vmatpush1.msra.mxu0 0.0
      %813 = vmatprep.subr.mxu0 0.0
      %814 = vmatpush1.msra.mxu0 0.0
      %815 = vmatprep.subr.mxu0 0.0
      %816 = vmatpush1.msra.mxu0 0.0
      %817 = vmatprep.subr.mxu0 0.0
      %818 = vmatpush1.msra.mxu0 0.0
      %819 = vmatprep.subr.mxu0 0.0
      %820 = vmatpush1.msra.mxu0 0.0
      %821 = vmatprep.subr.mxu0 0.0
      %822 = vmatpush1.msra.mxu0 0.0
      %823 = vmatprep.subr.mxu0 0.0
      %824 = vmatpush1.msra.mxu0 0.0
      %825 = vmatprep.subr.mxu0 0.0
      %826 = vmatpush1.msra.mxu0 0.0
      %827 = vmatprep.subr.mxu0 0.0
      %828 = vmatpush1.msra.mxu0 0.0
      %829 = vmatprep.subr.mxu0 0.0
      %830 = vmatpush1.msra.mxu0 0.0
      %831 = vmatprep.subr.mxu0 0.0
      %832 = vmatpush1.msra.mxu0 0.0
      %833 = vmatprep.subr.mxu0 0.0
      %834 = vmatpush1.msra.mxu0 0.0
      %835 = vmatprep.subr.mxu0 0.0
      %836 = vmatpush1.msra.mxu0 0.0
      %837 = vmatprep.subr.mxu0 0.0
      %838 = vmatpush1.msra.mxu0 0.0
      %839 = vmatprep.subr.mxu0 0.0
      %840 = vmatpush1.msra.mxu0 0.0
      %841 = vmatprep.subr.mxu0 0.0
      %842 = vmatpush1.msra.mxu0 0.0
      %843 = vmatprep.subr.mxu0 0.0
      %844 = vmatpush1.msra.mxu0 0.0
      %845 = vmatprep.subr.mxu0 0.0
      %846 = vmatpush1.msra.mxu0 0.0
      %847 = vmatprep.subr.mxu0 0.0
      %848 = vmatpush1.msra.mxu0 0.0
      %849 = vmatprep.subr.mxu0 0.0
      %850 = vmatpush1.msra.mxu0 0.0
      %851 = vmatprep.subr.mxu0 0.0
      %852 = vmatpush1.msra.mxu0 0.0
      %853 = vmatprep.subr.mxu0 0.0
      %854 = vmatpush1.msra.mxu0 0.0
      %855 = vmatprep.subr.mxu0 0.0
      %856 = vmatpush1.msra.mxu0 0.0
      %857 = vmatprep.subr.mxu0 0.0
      %858 = vmatpush1.msra.mxu0 0.0
      %859 = vmatprep.subr.mxu0 0.0
      %860 = vmatpush1.msra.mxu0 0.0
      %861 = vmatprep.subr.mxu0 0.0
      %862 = vmatpush1.msra.mxu0 0.0
      %863 = vmatprep.subr.mxu0 0.0
      %864 = vmatpush1.msra.mxu0 0.0
      %865 = vmatprep.subr.mxu0 0.0
      %866 = vmatpush1.msra.mxu0 0.0
      %867 = vmatprep.subr.mxu0 0.0
      %868 = vmatpush1.msra.mxu0 0.0
      %869 = vmatprep.subr.mxu0 0.0
      %870 = vmatpush1.msra.mxu0 0.0
      %871 = vmatprep.mubr.f32.mxu0 0.0
      %872 = vmatmul.mubr.f32.gmra.mrb[0].mxu0 %v388
      %v873 = vpop.f32.mrb[0].mxu0
      %v874 = vadd.f32 0.0, %v873
      %v875 = vpop.f32.mrb[0].mxu0
      %876 = vdwg.mxu0
      %877 = vmatprep.subr.mxu0 0.0
      %878 = vmatpush1.msra.mxu0 %v806
      %879 = vmatprep.subr.mxu0 0.0
      %880 = vmatpush1.msra.mxu0 0.0
      %881 = vmatprep.subr.mxu0 0.0
      %882 = vmatpush1.msra.mxu0 0.0
      %883 = vmatprep.subr.mxu0 0.0
      %884 = vmatpush1.msra.mxu0 0.0
      %885 = vmatprep.subr.mxu0 0.0
      %886 = vmatpush1.msra.mxu0 0.0
      %887 = vmatprep.subr.mxu0 0.0
      %888 = vmatpush1.msra.mxu0 0.0
      %889 = vmatprep.subr.mxu0 0.0
      %890 = vmatpush1.msra.mxu0 0.0
      %891 = vmatprep.subr.mxu0 0.0
      %892 = vmatpush1.msra.mxu0 0.0
      %893 = vmatprep.subr.mxu0 0.0
      %894 = vmatpush1.msra.mxu0 0.0
      %895 = vmatprep.subr.mxu0 0.0
      %896 = vmatpush1.msra.mxu0 0.0
      %897 = vmatprep.subr.mxu0 0.0
      %898 = vmatpush1.msra.mxu0 0.0
      %899 = vmatprep.subr.mxu0 0.0
      %900 = vmatpush1.msra.mxu0 0.0
      %901 = vmatprep.subr.mxu0 0.0
      %902 = vmatpush1.msra.mxu0 0.0
      %903 = vmatprep.subr.mxu0 0.0
      %904 = vmatpush1.msra.mxu0 0.0
      %905 = vmatprep.subr.mxu0 0.0
      %906 = vmatpush1.msra.mxu0 0.0
      %907 = vmatprep.subr.mxu0 0.0
      %908 = vmatpush1.msra.mxu0 0.0
      %909 = vmatprep.subr.mxu0 0.0
      %910 = vmatpush1.msra.mxu0 0.0
      %911 = vmatprep.subr.mxu0 0.0
      %912 = vmatpush1.msra.mxu0 0.0
      %913 = vmatprep.subr.mxu0 0.0
      %914 = vmatpush1.msra.mxu0 0.0
      %915 = vmatprep.subr.mxu0 0.0
      %916 = vmatpush1.msra.mxu0 0.0
      %917 = vmatprep.subr.mxu0 0.0
      %918 = vmatpush1.msra.mxu0 0.0
      %919 = vmatprep.subr.mxu0 0.0
      %920 = vmatpush1.msra.mxu0 0.0
      %921 = vmatprep.subr.mxu0 0.0
      %922 = vmatpush1.msra.mxu0 0.0
      %923 = vmatprep.subr.mxu0 0.0
      %924 = vmatpush1.msra.mxu0 0.0
      %925 = vmatprep.subr.mxu0 0.0
      %926 = vmatpush1.msra.mxu0 0.0
      %927 = vmatprep.subr.mxu0 0.0
      %928 = vmatpush1.msra.mxu0 0.0
      %929 = vmatprep.subr.mxu0 0.0
      %930 = vmatpush1.msra.mxu0 0.0
      %931 = vmatprep.subr.mxu0 0.0
      %932 = vmatpush1.msra.mxu0 0.0
      %933 = vmatprep.subr.mxu0 0.0
      %934 = vmatpush1.msra.mxu0 0.0
      %935 = vmatprep.subr.mxu0 0.0
      %936 = vmatpush1.msra.mxu0 0.0
      %937 = vmatprep.subr.mxu0 0.0
      %938 = vmatpush1.msra.mxu0 0.0
      %939 = vmatprep.subr.mxu0 0.0
      %940 = vmatpush1.msra.mxu0 0.0
      %941 = vmatprep.mubr.f32.mxu0 0.0
      %942 = vmatmul.mubr.f32.gmra.mrb[0].mxu0 %v461
      %v943 = vpop.f32.mrb[0].mxu0
      %v944 = vadd.f32 0.0, %v943
      %v945 = vpop.f32.mrb[0].mxu0
      %946 = vdwg.mxu0
      %v947 = vld [vmem:[%s6] sm:$0xff]
      %v948 = vld [vmem:[%s6 + $0x8] sm:$0xff]
      %v949 = vld [vmem:[%s6 + $0x10] sm:$0xff]
      %v950 = vld [vmem:[%s6 + $0x18] sm:$0xff]
      %s951 = scalar_lea.vmem %s6, 32
      %v952 = vld [vmem:[%s951] sm:$0xff]
      %v953 = vld [vmem:[%s951 + $0x8] sm:$0xff]
      %v954 = vld [vmem:[%s951 + $0x10] sm:$0xff]
      %v955 = vld [vmem:[%s951 + $0x18] sm:$0xff]
      %v957 = vsel %vm542, %v806, 0
      %959 = vmatprep.subr.mxu0 0.0
      %960 = vmatpush1.msra.mxu0 %v952
      %961 = vmatprep.subr.mxu0 0.0
      %962 = vmatpush1.msra.mxu0 %v953
      %963 = vmatprep.subr.mxu0 0.0
      %964 = vmatpush1.msra.mxu0 %v954
      %965 = vmatprep.subr.mxu0 0.0
      %966 = vmatpush1.msra.mxu0 %v955
      %967 = vmatprep.subr.mxu0 0.0
      %968 = vmatpush1.msra.mxu0 0.0
      %969 = vmatprep.subr.mxu0 0.0
      %970 = vmatpush1.msra.mxu0 0.0
      %971 = vmatprep.subr.mxu0 0.0
      %972 = vmatpush1.msra.mxu0 0.0
      %973 = vmatprep.subr.mxu0 0.0
      %974 = vmatpush1.msra.mxu0 0.0
      %975 = vmatprep.subr.mxu0 0.0
      %976 = vmatpush1.msra.mxu0 0.0
      %977 = vmatprep.subr.mxu0 0.0
      %978 = vmatpush1.msra.mxu0 0.0
      %979 = vmatprep.subr.mxu0 0.0
      %980 = vmatpush1.msra.mxu0 0.0
      %981 = vmatprep.subr.mxu0 0.0
      %982 = vmatpush1.msra.mxu0 0.0
      %983 = vmatprep.subr.mxu0 0.0
      %984 = vmatpush1.msra.mxu0 0.0
      %985 = vmatprep.subr.mxu0 0.0
      %986 = vmatpush1.msra.mxu0 0.0
      %987 = vmatprep.subr.mxu0 0.0
      %988 = vmatpush1.msra.mxu0 0.0
      %989 = vmatprep.subr.mxu0 0.0
      %990 = vmatpush1.msra.mxu0 0.0
      %991 = vmatprep.subr.mxu0 0.0
      %992 = vmatpush1.msra.mxu0 0.0
      %993 = vmatprep.subr.mxu0 0.0
      %994 = vmatpush1.msra.mxu0 0.0
      %995 = vmatprep.subr.mxu0 0.0
      %996 = vmatpush1.msra.mxu0 0.0
      %997 = vmatprep.subr.mxu0 0.0
      %998 = vmatpush1.msra.mxu0 0.0
      %999 = vmatprep.subr.mxu0 0.0
      %1000 = vmatpush1.msra.mxu0 0.0
      %1001 = vmatprep.subr.mxu0 0.0
      %1002 = vmatpush1.msra.mxu0 0.0
      %1003 = vmatprep.subr.mxu0 0.0
      %1004 = vmatpush1.msra.mxu0 0.0
      %1005 = vmatprep.subr.mxu0 0.0
      %1006 = vmatpush1.msra.mxu0 0.0
      %1007 = vmatprep.subr.mxu0 0.0
      %1008 = vmatpush1.msra.mxu0 0.0
      %1009 = vmatprep.subr.mxu0 0.0
      %1010 = vmatpush1.msra.mxu0 0.0
      %1011 = vmatprep.subr.mxu0 0.0
      %1012 = vmatpush1.msra.mxu0 0.0
      %1013 = vmatprep.subr.mxu0 0.0
      %1014 = vmatpush1.msra.mxu0 0.0
      %1015 = vmatprep.subr.mxu0 0.0
      %1016 = vmatpush1.msra.mxu0 0.0
      %1017 = vmatprep.subr.mxu0 0.0
      %1018 = vmatpush1.msra.mxu0 0.0
      %1019 = vmatprep.subr.mxu0 0.0
      %1020 = vmatpush1.msra.mxu0 0.0
      %1021 = vmatprep.subr.mxu0 0.0
      %1022 = vmatpush1.msra.mxu0 0.0
      %1023 = vmatprep.mubr.f32.mxu0 0.0
      %1024 = vmatmul.mubr.f32.gmra.mrb[0].mxu0 %v957
      %v1025 = vpop.f32.mrb[0].mxu0
      %v1026 = vadd.f32 0.0, %v1025
      %v1027 = vpop.f32.mrb[0].mxu0
      %1028 = vdwg.mxu0
      %v1030 = vsel %vm542, %v874, 0
      %1032 = vmatprep.subr.mxu0 0.0
      %1033 = vmatpush1.msra.mxu0 %v947
      %1034 = vmatprep.subr.mxu0 0.0
      %1035 = vmatpush1.msra.mxu0 %v948
      %1036 = vmatprep.subr.mxu0 0.0
      %1037 = vmatpush1.msra.mxu0 %v949
      %1038 = vmatprep.subr.mxu0 0.0
      %1039 = vmatpush1.msra.mxu0 %v950
      %1040 = vmatprep.subr.mxu0 0.0
      %1041 = vmatpush1.msra.mxu0 0.0
      %1042 = vmatprep.subr.mxu0 0.0
      %1043 = vmatpush1.msra.mxu0 0.0
      %1044 = vmatprep.subr.mxu0 0.0
      %1045 = vmatpush1.msra.mxu0 0.0
      %1046 = vmatprep.subr.mxu0 0.0
      %1047 = vmatpush1.msra.mxu0 0.0
      %1048 = vmatprep.subr.mxu0 0.0
      %1049 = vmatpush1.msra.mxu0 0.0
      %1050 = vmatprep.subr.mxu0 0.0
      %1051 = vmatpush1.msra.mxu0 0.0
      %1052 = vmatprep.subr.mxu0 0.0
      %1053 = vmatpush1.msra.mxu0 0.0
      %1054 = vmatprep.subr.mxu0 0.0
      %1055 = vmatpush1.msra.mxu0 0.0
      %1056 = vmatprep.subr.mxu0 0.0
      %1057 = vmatpush1.msra.mxu0 0.0
      %1058 = vmatprep.subr.mxu0 0.0
      %1059 = vmatpush1.msra.mxu0 0.0
      %1060 = vmatprep.subr.mxu0 0.0
      %1061 = vmatpush1.msra.mxu0 0.0
      %1062 = vmatprep.subr.mxu0 0.0
      %1063 = vmatpush1.msra.mxu0 0.0
      %1064 = vmatprep.subr.mxu0 0.0
      %1065 = vmatpush1.msra.mxu0 0.0
      %1066 = vmatprep.subr.mxu0 0.0
      %1067 = vmatpush1.msra.mxu0 0.0
      %1068 = vmatprep.subr.mxu0 0.0
      %1069 = vmatpush1.msra.mxu0 0.0
      %1070 = vmatprep.subr.mxu0 0.0
      %1071 = vmatpush1.msra.mxu0 0.0
      %1072 = vmatprep.subr.mxu0 0.0
      %1073 = vmatpush1.msra.mxu0 0.0
      %1074 = vmatprep.subr.mxu0 0.0
      %1075 = vmatpush1.msra.mxu0 0.0
      %1076 = vmatprep.subr.mxu0 0.0
      %1077 = vmatpush1.msra.mxu0 0.0
      %1078 = vmatprep.subr.mxu0 0.0
      %1079 = vmatpush1.msra.mxu0 0.0
      %1080 = vmatprep.subr.mxu0 0.0
      %1081 = vmatpush1.msra.mxu0 0.0
      %1082 = vmatprep.subr.mxu0 0.0
      %1083 = vmatpush1.msra.mxu0 0.0
      %1084 = vmatprep.subr.mxu0 0.0
      %1085 = vmatpush1.msra.mxu0 0.0
      %1086 = vmatprep.subr.mxu0 0.0
      %1087 = vmatpush1.msra.mxu0 0.0
      %1088 = vmatprep.subr.mxu0 0.0
      %1089 = vmatpush1.msra.mxu0 0.0
      %1090 = vmatprep.subr.mxu0 0.0
      %1091 = vmatpush1.msra.mxu0 0.0
      %1092 = vmatprep.subr.mxu0 0.0
      %1093 = vmatpush1.msra.mxu0 0.0
      %1094 = vmatprep.subr.mxu0 0.0
      %1095 = vmatpush1.msra.mxu0 0.0
      %1096 = vmatprep.mubr.f32.mxu0 0.0
      %1097 = vmatmul.mubr.f32.gmra.mrb[0].mxu0 %v1030
      %v1098 = vpop.f32.mrb[0].mxu0
      %v1099 = vadd.f32 %v1026, %v1098
      %v1100 = vpop.f32.mrb[0].mxu0
      %1101 = vdwg.mxu0
      %s1102 = scalar_lea.vmem %s6, 64
      %v1103 = vld [vmem:[%s1102] sm:$0xff]
      %v1104 = vld [vmem:[%s1102 + $0x8] sm:$0xff]
      %v1105 = vld [vmem:[%s1102 + $0x10] sm:$0xff]
      %v1106 = vld [vmem:[%s1102 + $0x18] sm:$0xff]
      %v1108 = vsel %vm542, %v944, 0
      %1110 = vmatprep.subr.mxu0 0.0
      %1111 = vmatpush1.msra.mxu0 %v1103
      %1112 = vmatprep.subr.mxu0 0.0
      %1113 = vmatpush1.msra.mxu0 %v1104
      %1114 = vmatprep.subr.mxu0 0.0
      %1115 = vmatpush1.msra.mxu0 %v1105
      %1116 = vmatprep.subr.mxu0 0.0
      %1117 = vmatpush1.msra.mxu0 %v1106
      %1118 = vmatprep.subr.mxu0 0.0
      %1119 = vmatpush1.msra.mxu0 0.0
      %1120 = vmatprep.subr.mxu0 0.0
      %1121 = vmatpush1.msra.mxu0 0.0
      %1122 = vmatprep.subr.mxu0 0.0
      %1123 = vmatpush1.msra.mxu0 0.0
      %1124 = vmatprep.subr.mxu0 0.0
      %1125 = vmatpush1.msra.mxu0 0.0
      %1126 = vmatprep.subr.mxu0 0.0
      %1127 = vmatpush1.msra.mxu0 0.0
      %1128 = vmatprep.subr.mxu0 0.0
      %1129 = vmatpush1.msra.mxu0 0.0
      %1130 = vmatprep.subr.mxu0 0.0
      %1131 = vmatpush1.msra.mxu0 0.0
      %1132 = vmatprep.subr.mxu0 0.0
      %1133 = vmatpush1.msra.mxu0 0.0
      %1134 = vmatprep.subr.mxu0 0.0
      %1135 = vmatpush1.msra.mxu0 0.0
      %1136 = vmatprep.subr.mxu0 0.0
      %1137 = vmatpush1.msra.mxu0 0.0
      %1138 = vmatprep.subr.mxu0 0.0
      %1139 = vmatpush1.msra.mxu0 0.0
      %1140 = vmatprep.subr.mxu0 0.0
      %1141 = vmatpush1.msra.mxu0 0.0
      %1142 = vmatprep.subr.mxu0 0.0
      %1143 = vmatpush1.msra.mxu0 0.0
      %1144 = vmatprep.subr.mxu0 0.0
      %1145 = vmatpush1.msra.mxu0 0.0
      %1146 = vmatprep.subr.mxu0 0.0
      %1147 = vmatpush1.msra.mxu0 0.0
      %1148 = vmatprep.subr.mxu0 0.0
      %1149 = vmatpush1.msra.mxu0 0.0
      %1150 = vmatprep.subr.mxu0 0.0
      %1151 = vmatpush1.msra.mxu0 0.0
      %1152 = vmatprep.subr.mxu0 0.0
      %1153 = vmatpush1.msra.mxu0 0.0
      %1154 = vmatprep.subr.mxu0 0.0
      %1155 = vmatpush1.msra.mxu0 0.0
      %1156 = vmatprep.subr.mxu0 0.0
      %1157 = vmatpush1.msra.mxu0 0.0
      %1158 = vmatprep.subr.mxu0 0.0
      %1159 = vmatpush1.msra.mxu0 0.0
      %1160 = vmatprep.subr.mxu0 0.0
      %1161 = vmatpush1.msra.mxu0 0.0
      %1162 = vmatprep.subr.mxu0 0.0
      %1163 = vmatpush1.msra.mxu0 0.0
      %1164 = vmatprep.subr.mxu0 0.0
      %1165 = vmatpush1.msra.mxu0 0.0
      %1166 = vmatprep.subr.mxu0 0.0
      %1167 = vmatpush1.msra.mxu0 0.0
      %1168 = vmatprep.subr.mxu0 0.0
      %1169 = vmatpush1.msra.mxu0 0.0
      %1170 = vmatprep.subr.mxu0 0.0
      %1171 = vmatpush1.msra.mxu0 0.0
      %1172 = vmatprep.subr.mxu0 0.0
      %1173 = vmatpush1.msra.mxu0 0.0
      %1174 = vmatprep.mubr.f32.mxu0 0.0
      %1175 = vmatmul.mubr.f32.gmra.mrb[0].mxu0 %v1108
      %v1176 = vpop.f32.mrb[0].mxu0
      %v1177 = vadd.f32 0.0, %v1176
      %v1178 = vpop.f32.mrb[0].mxu0
      %1179 = vdwg.mxu0
      %v1180 = vadd.f32 %v1099, %v1177
      %v1181 = vld [vmem:[%s7] sm:$0x1]
      %v1183 = vlaneseq
      %v1184 = vshrl.u32 %v1183, 7
      %v1185 = vsub.s32 0, %v1184
      %v1186 = vrot.slane %v1181, %v1185
      %v1188 = vadd.f32 %v1180, %v1186
      %v1189 = vmax.f32 %v1188, 0.0
      %1190 = vmatprep.subr.mxu0 0.0
      %1191 = vmatpush1.msra.mxu0 %v1189
      %1192 = vmatprep.subr.mxu0 0.0
      %1193 = vmatpush1.msra.mxu0 0.0
      %1194 = vmatprep.subr.mxu0 0.0
      %1195 = vmatpush1.msra.mxu0 0.0
      %1196 = vmatprep.subr.mxu0 0.0
      %1197 = vmatpush1.msra.mxu0 0.0
      %1198 = vmatprep.subr.mxu0 0.0
      %1199 = vmatpush1.msra.mxu0 0.0
      %1200 = vmatprep.subr.mxu0 0.0
      %1201 = vmatpush1.msra.mxu0 0.0
      %1202 = vmatprep.subr.mxu0 0.0
      %1203 = vmatpush1.msra.mxu0 0.0
      %1204 = vmatprep.subr.mxu0 0.0
      %1205 = vmatpush1.msra.mxu0 0.0
      %1206 = vmatprep.subr.mxu0 0.0
      %1207 = vmatpush1.msra.mxu0 0.0
      %1208 = vmatprep.subr.mxu0 0.0
      %1209 = vmatpush1.msra.mxu0 0.0
      %1210 = vmatprep.subr.mxu0 0.0
      %1211 = vmatpush1.msra.mxu0 0.0
      %1212 = vmatprep.subr.mxu0 0.0
      %1213 = vmatpush1.msra.mxu0 0.0
      %1214 = vmatprep.subr.mxu0 0.0
      %1215 = vmatpush1.msra.mxu0 0.0
      %1216 = vmatprep.subr.mxu0 0.0
      %1217 = vmatpush1.msra.mxu0 0.0
      %1218 = vmatprep.subr.mxu0 0.0
      %1219 = vmatpush1.msra.mxu0 0.0
      %1220 = vmatprep.subr.mxu0 0.0
      %1221 = vmatpush1.msra.mxu0 0.0
      %1222 = vmatprep.subr.mxu0 0.0
      %1223 = vmatpush1.msra.mxu0 0.0
      %1224 = vmatprep.subr.mxu0 0.0
      %1225 = vmatpush1.msra.mxu0 0.0
      %1226 = vmatprep.subr.mxu0 0.0
      %1227 = vmatpush1.msra.mxu0 0.0
      %1228 = vmatprep.subr.mxu0 0.0
      %1229 = vmatpush1.msra.mxu0 0.0
      %1230 = vmatprep.subr.mxu0 0.0
      %1231 = vmatpush1.msra.mxu0 0.0
      %1232 = vmatprep.subr.mxu0 0.0
      %1233 = vmatpush1.msra.mxu0 0.0
      %1234 = vmatprep.subr.mxu0 0.0
      %1235 = vmatpush1.msra.mxu0 0.0
      %1236 = vmatprep.subr.mxu0 0.0
      %1237 = vmatpush1.msra.mxu0 0.0
      %1238 = vmatprep.subr.mxu0 0.0
      %1239 = vmatpush1.msra.mxu0 0.0
      %1240 = vmatprep.subr.mxu0 0.0
      %1241 = vmatpush1.msra.mxu0 0.0
      %1242 = vmatprep.subr.mxu0 0.0
      %1243 = vmatpush1.msra.mxu0 0.0
      %1244 = vmatprep.subr.mxu0 0.0
      %1245 = vmatpush1.msra.mxu0 0.0
      %1246 = vmatprep.subr.mxu0 0.0
      %1247 = vmatpush1.msra.mxu0 0.0
      %1248 = vmatprep.subr.mxu0 0.0
      %1249 = vmatpush1.msra.mxu0 0.0
      %1250 = vmatprep.subr.mxu0 0.0
      %1251 = vmatpush1.msra.mxu0 0.0
      %1252 = vmatprep.subr.mxu0 0.0
      %1253 = vmatpush1.msra.mxu0 0.0
      %1254 = vmatprep.mubr.f32.mxu0 0.0
      %1255 = vmatmul.mubr.f32.gmra.mrb[0].mxu0 %v388
      %v1256 = vpop.f32.mrb[0].mxu0
      %v1257 = vadd.f32 0.0, %v1256
      %v1258 = vpop.f32.mrb[0].mxu0
      %1259 = vdwg.mxu0
      %1260 = vmatprep.subr.mxu0 0.0
      %1261 = vmatpush1.msra.mxu0 %v1189
      %1262 = vmatprep.subr.mxu0 0.0
      %1263 = vmatpush1.msra.mxu0 0.0
      %1264 = vmatprep.subr.mxu0 0.0
      %1265 = vmatpush1.msra.mxu0 0.0
      %1266 = vmatprep.subr.mxu0 0.0
      %1267 = vmatpush1.msra.mxu0 0.0
      %1268 = vmatprep.subr.mxu0 0.0
      %1269 = vmatpush1.msra.mxu0 0.0
      %1270 = vmatprep.subr.mxu0 0.0
      %1271 = vmatpush1.msra.mxu0 0.0
      %1272 = vmatprep.subr.mxu0 0.0
      %1273 = vmatpush1.msra.mxu0 0.0
      %1274 = vmatprep.subr.mxu0 0.0
      %1275 = vmatpush1.msra.mxu0 0.0
      %1276 = vmatprep.subr.mxu0 0.0
      %1277 = vmatpush1.msra.mxu0 0.0
      %1278 = vmatprep.subr.mxu0 0.0
      %1279 = vmatpush1.msra.mxu0 0.0
      %1280 = vmatprep.subr.mxu0 0.0
      %1281 = vmatpush1.msra.mxu0 0.0
      %1282 = vmatprep.subr.mxu0 0.0
      %1283 = vmatpush1.msra.mxu0 0.0
      %1284 = vmatprep.subr.mxu0 0.0
      %1285 = vmatpush1.msra.mxu0 0.0
      %1286 = vmatprep.subr.mxu0 0.0
      %1287 = vmatpush1.msra.mxu0 0.0
      %1288 = vmatprep.subr.mxu0 0.0
      %1289 = vmatpush1.msra.mxu0 0.0
      %1290 = vmatprep.subr.mxu0 0.0
      %1291 = vmatpush1.msra.mxu0 0.0
      %1292 = vmatprep.subr.mxu0 0.0
      %1293 = vmatpush1.msra.mxu0 0.0
      %1294 = vmatprep.subr.mxu0 0.0
      %1295 = vmatpush1.msra.mxu0 0.0
      %1296 = vmatprep.subr.mxu0 0.0
      %1297 = vmatpush1.msra.mxu0 0.0
      %1298 = vmatprep.subr.mxu0 0.0
      %1299 = vmatpush1.msra.mxu0 0.0
      %1300 = vmatprep.subr.mxu0 0.0
      %1301 = vmatpush1.msra.mxu0 0.0
      %1302 = vmatprep.subr.mxu0 0.0
      %1303 = vmatpush1.msra.mxu0 0.0
      %1304 = vmatprep.subr.mxu0 0.0
      %1305 = vmatpush1.msra.mxu0 0.0
      %1306 = vmatprep.subr.mxu0 0.0
      %1307 = vmatpush1.msra.mxu0 0.0
      %1308 = vmatprep.subr.mxu0 0.0
      %1309 = vmatpush1.msra.mxu0 0.0
      %1310 = vmatprep.subr.mxu0 0.0
      %1311 = vmatpush1.msra.mxu0 0.0
      %1312 = vmatprep.subr.mxu0 0.0
      %1313 = vmatpush1.msra.mxu0 0.0
      %1314 = vmatprep.subr.mxu0 0.0
      %1315 = vmatpush1.msra.mxu0 0.0
      %1316 = vmatprep.subr.mxu0 0.0
      %1317 = vmatpush1.msra.mxu0 0.0
      %1318 = vmatprep.subr.mxu0 0.0
      %1319 = vmatpush1.msra.mxu0 0.0
      %1320 = vmatprep.subr.mxu0 0.0
      %1321 = vmatpush1.msra.mxu0 0.0
      %1322 = vmatprep.subr.mxu0 0.0
      %1323 = vmatpush1.msra.mxu0 0.0
      %1324 = vmatprep.mubr.f32.mxu0 0.0
      %1325 = vmatmul.mubr.f32.gmra.mrb[0].mxu0 %v461
      %v1326 = vpop.f32.mrb[0].mxu0
      %v1327 = vadd.f32 0.0, %v1326
      %v1328 = vpop.f32.mrb[0].mxu0
      %1329 = vdwg.mxu0
      %v1330 = vld [vmem:[%s8] sm:$0xff]
      %v1331 = vld [vmem:[%s8 + $0x8] sm:$0xff]
      %v1332 = vld [vmem:[%s8 + $0x10] sm:$0xff]
      %v1333 = vld [vmem:[%s8 + $0x18] sm:$0xff]
      %v1334 = vld [vmem:[%s8 + $0x20] sm:$0xff]
      %v1335 = vld [vmem:[%s8 + $0x28] sm:$0xff]
      %v1336 = vld [vmem:[%s8 + $0x30] sm:$0xff]
      %v1337 = vld [vmem:[%s8 + $0x38] sm:$0xff]
      %s1338 = scalar_lea.vmem %s8, 64
      %v1339 = vld [vmem:[%s1338] sm:$0xff]
      %v1340 = vld [vmem:[%s1338 + $0x8] sm:$0xff]
      %v1341 = vld [vmem:[%s1338 + $0x10] sm:$0xff]
      %v1342 = vld [vmem:[%s1338 + $0x18] sm:$0xff]
      %v1343 = vld [vmem:[%s1338 + $0x20] sm:$0xff]
      %v1344 = vld [vmem:[%s1338 + $0x28] sm:$0xff]
      %v1345 = vld [vmem:[%s1338 + $0x30] sm:$0xff]
      %v1346 = vld [vmem:[%s1338 + $0x38] sm:$0xff]
      %vm1347 = vcmask 523264
      %v1349 = vsel %vm1347, %v1189, 0
      %1351 = vmatprep.subr.mxu0 0.0
      %1352 = vmatpush1.msra.mxu0 %v1339
      %1353 = vmatprep.subr.mxu0 0.0
      %1354 = vmatpush1.msra.mxu0 %v1340
      %1355 = vmatprep.subr.mxu0 0.0
      %1356 = vmatpush1.msra.mxu0 %v1341
      %1357 = vmatprep.subr.mxu0 0.0
      %1358 = vmatpush1.msra.mxu0 %v1342
      %1359 = vmatprep.subr.mxu0 0.0
      %1360 = vmatpush1.msra.mxu0 %v1343
      %1361 = vmatprep.subr.mxu0 0.0
      %1362 = vmatpush1.msra.mxu0 %v1344
      %1363 = vmatprep.subr.mxu0 0.0
      %1364 = vmatpush1.msra.mxu0 %v1345
      %1365 = vmatprep.subr.mxu0 0.0
      %1366 = vmatpush1.msra.mxu0 %v1346
      %1367 = vmatprep.subr.mxu0 0.0
      %1368 = vmatpush1.msra.mxu0 0.0
      %1369 = vmatprep.subr.mxu0 0.0
      %1370 = vmatpush1.msra.mxu0 0.0
      %1371 = vmatprep.subr.mxu0 0.0
      %1372 = vmatpush1.msra.mxu0 0.0
      %1373 = vmatprep.subr.mxu0 0.0
      %1374 = vmatpush1.msra.mxu0 0.0
      %1375 = vmatprep.subr.mxu0 0.0
      %1376 = vmatpush1.msra.mxu0 0.0
      %1377 = vmatprep.subr.mxu0 0.0
      %1378 = vmatpush1.msra.mxu0 0.0
      %1379 = vmatprep.subr.mxu0 0.0
      %1380 = vmatpush1.msra.mxu0 0.0
      %1381 = vmatprep.subr.mxu0 0.0
      %1382 = vmatpush1.msra.mxu0 0.0
      %1383 = vmatprep.subr.mxu0 0.0
      %1384 = vmatpush1.msra.mxu0 0.0
      %1385 = vmatprep.subr.mxu0 0.0
      %1386 = vmatpush1.msra.mxu0 0.0
      %1387 = vmatprep.subr.mxu0 0.0
      %1388 = vmatpush1.msra.mxu0 0.0
      %1389 = vmatprep.subr.mxu0 0.0
      %1390 = vmatpush1.msra.mxu0 0.0
      %1391 = vmatprep.subr.mxu0 0.0
      %1392 = vmatpush1.msra.mxu0 0.0
      %1393 = vmatprep.subr.mxu0 0.0
      %1394 = vmatpush1.msra.mxu0 0.0
      %1395 = vmatprep.subr.mxu0 0.0
      %1396 = vmatpush1.msra.mxu0 0.0
      %1397 = vmatprep.subr.mxu0 0.0
      %1398 = vmatpush1.msra.mxu0 0.0
      %1399 = vmatprep.subr.mxu0 0.0
      %1400 = vmatpush1.msra.mxu0 0.0
      %1401 = vmatprep.subr.mxu0 0.0
      %1402 = vmatpush1.msra.mxu0 0.0
      %1403 = vmatprep.subr.mxu0 0.0
      %1404 = vmatpush1.msra.mxu0 0.0
      %1405 = vmatprep.subr.mxu0 0.0
      %1406 = vmatpush1.msra.mxu0 0.0
      %1407 = vmatprep.subr.mxu0 0.0
      %1408 = vmatpush1.msra.mxu0 0.0
      %1409 = vmatprep.subr.mxu0 0.0
      %1410 = vmatpush1.msra.mxu0 0.0
      %1411 = vmatprep.subr.mxu0 0.0
      %1412 = vmatpush1.msra.mxu0 0.0
      %1413 = vmatprep.subr.mxu0 0.0
      %1414 = vmatpush1.msra.mxu0 0.0
      %1415 = vmatprep.mubr.f32.mxu0 0.0
      %1416 = vmatmul.mubr.f32.gmra.mrb[0].mxu0 %v1349
      %v1417 = vpop.f32.mrb[0].mxu0
      %v1418 = vadd.f32 0.0, %v1417
      %v1419 = vpop.f32.mrb[0].mxu0
      %1420 = vdwg.mxu0
      %v1422 = vsel %vm1347, %v1257, 0
      %1424 = vmatprep.subr.mxu0 0.0
      %1425 = vmatpush1.msra.mxu0 %v1330
      %1426 = vmatprep.subr.mxu0 0.0
      %1427 = vmatpush1.msra.mxu0 %v1331
      %1428 = vmatprep.subr.mxu0 0.0
      %1429 = vmatpush1.msra.mxu0 %v1332
      %1430 = vmatprep.subr.mxu0 0.0
      %1431 = vmatpush1.msra.mxu0 %v1333
      %1432 = vmatprep.subr.mxu0 0.0
      %1433 = vmatpush1.msra.mxu0 %v1334
      %1434 = vmatprep.subr.mxu0 0.0
      %1435 = vmatpush1.msra.mxu0 %v1335
      %1436 = vmatprep.subr.mxu0 0.0
      %1437 = vmatpush1.msra.mxu0 %v1336
      %1438 = vmatprep.subr.mxu0 0.0
      %1439 = vmatpush1.msra.mxu0 %v1337
      %1440 = vmatprep.subr.mxu0 0.0
      %1441 = vmatpush1.msra.mxu0 0.0
      %1442 = vmatprep.subr.mxu0 0.0
      %1443 = vmatpush1.msra.mxu0 0.0
      %1444 = vmatprep.subr.mxu0 0.0
      %1445 = vmatpush1.msra.mxu0 0.0
      %1446 = vmatprep.subr.mxu0 0.0
      %1447 = vmatpush1.msra.mxu0 0.0
      %1448 = vmatprep.subr.mxu0 0.0
      %1449 = vmatpush1.msra.mxu0 0.0
      %1450 = vmatprep.subr.mxu0 0.0
      %1451 = vmatpush1.msra.mxu0 0.0
      %1452 = vmatprep.subr.mxu0 0.0
      %1453 = vmatpush1.msra.mxu0 0.0
      %1454 = vmatprep.subr.mxu0 0.0
      %1455 = vmatpush1.msra.mxu0 0.0
      %1456 = vmatprep.subr.mxu0 0.0
      %1457 = vmatpush1.msra.mxu0 0.0
      %1458 = vmatprep.subr.mxu0 0.0
      %1459 = vmatpush1.msra.mxu0 0.0
      %1460 = vmatprep.subr.mxu0 0.0
      %1461 = vmatpush1.msra.mxu0 0.0
      %1462 = vmatprep.subr.mxu0 0.0
      %1463 = vmatpush1.msra.mxu0 0.0
      %1464 = vmatprep.subr.mxu0 0.0
      %1465 = vmatpush1.msra.mxu0 0.0
      %1466 = vmatprep.subr.mxu0 0.0
      %1467 = vmatpush1.msra.mxu0 0.0
      %1468 = vmatprep.subr.mxu0 0.0
      %1469 = vmatpush1.msra.mxu0 0.0
      %1470 = vmatprep.subr.mxu0 0.0
      %1471 = vmatpush1.msra.mxu0 0.0
      %1472 = vmatprep.subr.mxu0 0.0
      %1473 = vmatpush1.msra.mxu0 0.0
      %1474 = vmatprep.subr.mxu0 0.0
      %1475 = vmatpush1.msra.mxu0 0.0
      %1476 = vmatprep.subr.mxu0 0.0
      %1477 = vmatpush1.msra.mxu0 0.0
      %1478 = vmatprep.subr.mxu0 0.0
      %1479 = vmatpush1.msra.mxu0 0.0
      %1480 = vmatprep.subr.mxu0 0.0
      %1481 = vmatpush1.msra.mxu0 0.0
      %1482 = vmatprep.subr.mxu0 0.0
      %1483 = vmatpush1.msra.mxu0 0.0
      %1484 = vmatprep.subr.mxu0 0.0
      %1485 = vmatpush1.msra.mxu0 0.0
      %1486 = vmatprep.subr.mxu0 0.0
      %1487 = vmatpush1.msra.mxu0 0.0
      %1488 = vmatprep.mubr.f32.mxu0 0.0
      %1489 = vmatmul.mubr.f32.gmra.mrb[0].mxu0 %v1422
      %v1490 = vpop.f32.mrb[0].mxu0
      %v1491 = vadd.f32 %v1418, %v1490
      %v1492 = vpop.f32.mrb[0].mxu0
      %1493 = vdwg.mxu0
      %s1494 = scalar_lea.vmem %s8, 128
      %v1495 = vld [vmem:[%s1494] sm:$0xff]
      %v1496 = vld [vmem:[%s1494 + $0x8] sm:$0xff]
      %v1497 = vld [vmem:[%s1494 + $0x10] sm:$0xff]
      %v1498 = vld [vmem:[%s1494 + $0x18] sm:$0xff]
      %v1499 = vld [vmem:[%s1494 + $0x20] sm:$0xff]
      %v1500 = vld [vmem:[%s1494 + $0x28] sm:$0xff]
      %v1501 = vld [vmem:[%s1494 + $0x30] sm:$0xff]
      %v1502 = vld [vmem:[%s1494 + $0x38] sm:$0xff]
      %v1504 = vsel %vm1347, %v1327, 0
      %1506 = vmatprep.subr.mxu0 0.0
      %1507 = vmatpush1.msra.mxu0 %v1495
      %1508 = vmatprep.subr.mxu0 0.0
      %1509 = vmatpush1.msra.mxu0 %v1496
      %1510 = vmatprep.subr.mxu0 0.0
      %1511 = vmatpush1.msra.mxu0 %v1497
      %1512 = vmatprep.subr.mxu0 0.0
      %1513 = vmatpush1.msra.mxu0 %v1498
      %1514 = vmatprep.subr.mxu0 0.0
      %1515 = vmatpush1.msra.mxu0 %v1499
      %1516 = vmatprep.subr.mxu0 0.0
      %1517 = vmatpush1.msra.mxu0 %v1500
      %1518 = vmatprep.subr.mxu0 0.0
      %1519 = vmatpush1.msra.mxu0 %v1501
      %1520 = vmatprep.subr.mxu0 0.0
      %1521 = vmatpush1.msra.mxu0 %v1502
      %1522 = vmatprep.subr.mxu0 0.0
      %1523 = vmatpush1.msra.mxu0 0.0
      %1524 = vmatprep.subr.mxu0 0.0
      %1525 = vmatpush1.msra.mxu0 0.0
      %1526 = vmatprep.subr.mxu0 0.0
      %1527 = vmatpush1.msra.mxu0 0.0
      %1528 = vmatprep.subr.mxu0 0.0
      %1529 = vmatpush1.msra.mxu0 0.0
      %1530 = vmatprep.subr.mxu0 0.0
      %1531 = vmatpush1.msra.mxu0 0.0
      %1532 = vmatprep.subr.mxu0 0.0
      %1533 = vmatpush1.msra.mxu0 0.0
      %1534 = vmatprep.subr.mxu0 0.0
      %1535 = vmatpush1.msra.mxu0 0.0
      %1536 = vmatprep.subr.mxu0 0.0
      %1537 = vmatpush1.msra.mxu0 0.0
      %1538 = vmatprep.subr.mxu0 0.0
      %1539 = vmatpush1.msra.mxu0 0.0
      %1540 = vmatprep.subr.mxu0 0.0
      %1541 = vmatpush1.msra.mxu0 0.0
      %1542 = vmatprep.subr.mxu0 0.0
      %1543 = vmatpush1.msra.mxu0 0.0
      %1544 = vmatprep.subr.mxu0 0.0
      %1545 = vmatpush1.msra.mxu0 0.0
      %1546 = vmatprep.subr.mxu0 0.0
      %1547 = vmatpush1.msra.mxu0 0.0
      %1548 = vmatprep.subr.mxu0 0.0
      %1549 = vmatpush1.msra.mxu0 0.0
      %1550 = vmatprep.subr.mxu0 0.0
      %1551 = vmatpush1.msra.mxu0 0.0
      %1552 = vmatprep.subr.mxu0 0.0
      %1553 = vmatpush1.msra.mxu0 0.0
      %1554 = vmatprep.subr.mxu0 0.0
      %1555 = vmatpush1.msra.mxu0 0.0
      %1556 = vmatprep.subr.mxu0 0.0
      %1557 = vmatpush1.msra.mxu0 0.0
      %1558 = vmatprep.subr.mxu0 0.0
      %1559 = vmatpush1.msra.mxu0 0.0
      %1560 = vmatprep.subr.mxu0 0.0
      %1561 = vmatpush1.msra.mxu0 0.0
      %1562 = vmatprep.subr.mxu0 0.0
      %1563 = vmatpush1.msra.mxu0 0.0
      %1564 = vmatprep.subr.mxu0 0.0
      %1565 = vmatpush1.msra.mxu0 0.0
      %1566 = vmatprep.subr.mxu0 0.0
      %1567 = vmatpush1.msra.mxu0 0.0
      %1568 = vmatprep.subr.mxu0 0.0
      %1569 = vmatpush1.msra.mxu0 0.0
      %1570 = vmatprep.mubr.f32.mxu0 0.0
      %1571 = vmatmul.mubr.f32.gmra.mrb[0].mxu0 %v1504
      %v1572 = vpop.f32.mrb[0].mxu0
      %v1573 = vadd.f32 0.0, %v1572
      %v1574 = vpop.f32.mrb[0].mxu0
      %1575 = vdwg.mxu0
      %v1576 = vadd.f32 %v1491, %v1573
      %v1577 = vld [vmem:[%s9] sm:$0x1]
      %v1579 = vlaneseq
      %v1580 = vshrl.u32 %v1579, 7
      %v1581 = vsub.s32 0, %v1580
      %v1582 = vrot.slane %v1577, %v1581
      %v1584 = vadd.f32 %v1576, %v1582
      %v1585 = vadd.f32 %v776, %v1584
      %1586 = vst.msk [vmem:[%s371] sm:$0xff] %vm542, %v1585
      %p1587 = scmp.lt.s32.totalorder %s21, 1
      %s1588 = scalar_select %p1587, %s21, 1
      %s1589 = smul.addr %s1588, 8
      %s1590 = scalar_lea.vmem %s10, %s1589
      // Predicated region
      $region61: #{_encoder_forward.21} parent=59 // pred_check
        %p1591 = pneg %p259
      $region62: #{_encoder_forward.21} parent=59 // pred_check_branch
        %1593 = sbr.rel (%p1591) target = $region64
      $region63: #{_encoder_forward.21} parent=59 // pred_region
        _
      $region64: #{_encoder_forward.21} parent=59 // pred_fallthru
        _
    $region60: #{_encoder_forward.21} parent=5 // pred_fallthru
      _
    %p1594 = scmp.le.s32.totalorder 2, %s16
    // Predicated region
    $region65: #{_encoder_forward.21} parent=5 // pred_check
      %p1595 = pneg %p1594
    $region66: #{_encoder_forward.21} parent=5 // pred_check_branch
      %1597 = sbr.rel (%p1595) target = $region68
    $region67: #{_encoder_forward.21} parent=5 // pred_region
      %s1598 = ssub.s32 %s16, 2
      // Predicated region
      $region69: #{_encoder_forward.21} parent=67 // pred_check
        %p1599 = pneg %p265
      $region70: #{_encoder_forward.21} parent=67 // pred_check_branch
        %1601 = sbr.rel (%p1599) target = $region72
      $region71: #{_encoder_forward.21} parent=67 // pred_region
        %p1602 = scmp.lt.s32.totalorder %s22, 1
        %s1603 = scalar_select %p1602, %s22, 1
        %s1604 = smul.addr %s1603, 8
        %s1605 = scalar_lea.vmem %s10, %s1604
      $region72: #{_encoder_forward.21} parent=67 // pred_fallthru
        _
    $region68: #{_encoder_forward.21} parent=5 // pred_fallthru
      _
  $region6: #{_encoder_forward.21} parent=0 // loop_footer
    %s20 = sadd.s32 1, %s16
  $region7: #{_encoder_forward.21} parent=0 // loop_footer_branch
    %15 = sbr.rel target = $region3
  $region8: #{_encoder_forward.21} parent=0 // loop_exit
    _

</llo_original>
